<compile_context>
chip_gen: v7x
topology: tpu7x:2x2x1
jax: 0.10.0
libtpu: 0.0.40
codegen_flags: <defaults>
</compile_context>

<pallas_src>
import functools
import jax
import jax.numpy as jnp
from jax import lax
from jax.experimental import pallas as pl
from jax.experimental.pallas import tpu as pltpu


# ---------------------------------------------------------------------------
# In-kernel helpers
# ---------------------------------------------------------------------------
def _layer_norm(x, gamma, beta, eps=1e-5):
    mu = jnp.mean(x, axis=-1, keepdims=True)
    var = jnp.mean((x - mu) ** 2, axis=-1, keepdims=True)
    return (x - mu) * lax.rsqrt(var + eps) * gamma + beta


def _gelu_exact(x):
    # nn.GELU() default: exact erf-based gelu
    return 0.5 * x * (1.0 + lax.erf(x * (2.0 ** -0.5)))


# ---------------------------------------------------------------------------
# Pallas kernel: full TransformerEncoder forward for one block of Bt batch rows
# (all layers unrolled inside; layers share identical parameters)
# ---------------------------------------------------------------------------
def encoder_kernel(x_ref, adjt_ref,
                   wqkv_ref, bqkv_ref, wo_ref, bo_ref,
                   w1_ref, b1_ref, w2_ref, b2_ref,
                   g1_ref, be1_ref, g2_ref, be2_ref,
                   out_ref, score_ref,
                   *, num_heads, num_layers, block_batch):
    Bt = block_batch
    H = num_heads
    S = x_ref.shape[1]
    D = x_ref.shape[2]
    hd = D // H
    inv_heads = 1.0 / float(H)

    # Flatten the Bt batch rows into one (Bt*S, D) activation slab so every weight
    # matmul runs with M = Bt*S (amortizes MXU push/pop latency and sublane idle).
    if Bt == 1:
        xf = x_ref[0]
    else:
        xf = jnp.concatenate([x_ref[b] for b in range(Bt)], axis=0)

    # Load shared weights once (reused by every layer).
    wqkv = wqkv_ref[...]        # (D, 3D): [Wq*scale | Wk | Wv]
    bqkv = bqkv_ref[...]        # (1, 3D)
    wo = wo_ref[...]            # (D, D)   original unsplit output projection
    bo = bo_ref[...]            # (1, D)
    w1 = w1_ref[...]
    b1 = b1_ref[...]
    w2 = w2_ref[...]
    b2 = b2_ref[...]
    g1 = g1_ref[...]
    be1 = be1_ref[...]
    g2 = g2_ref[...]
    be2 = be2_ref[...]

    for layer in range(num_layers):     # static unroll; identical params per layer
        # ---- fused QKV projection: ONE (Bt*S, D) @ (D, 3D) MXU matmul
        qkv = jnp.dot(xf, wqkv, preferred_element_type=jnp.float32) + bqkv

        # ---- scaled dot-product attention (per-head contraction is inherent: K = hd)
        ctx_rows = []
        for b in range(Bt):                         # static, tiny
            row = qkv[b * S:(b + 1) * S, :]         # (S, 3D) sublane slice
            p_heads = []
            ctx_heads = []
            for h in range(H):                      # static
                q = row[:, h * hd:(h + 1) * hd]                 # (S, hd); scale folded in
                k = row[:, D + h * hd:D + (h + 1) * hd]         # (S, hd)
                v = row[:, 2 * D + h * hd:2 * D + (h + 1) * hd]  # (S, hd)
                logits = jnp.dot(q, k.T, preferred_element_type=jnp.float32)  # (S, S)
                m = jnp.max(logits, axis=-1, keepdims=True)
                p = jnp.exp(logits - m)
                p = p / jnp.sum(p, axis=-1, keepdims=True)
                p_heads.append(p)
                ctx_heads.append(jnp.dot(p, v, preferred_element_type=jnp.float32))
            # Averaged attention weights (PyTorch need_weights=True averages over heads).
            score = sum(p_heads[1:], p_heads[0]) * inv_heads
            score_ref[layer, b] = score.astype(score_ref.dtype)
            # head concat -> (S, D) lane-wise
            ctx_rows.append(jnp.concatenate(ctx_heads, axis=-1))

        ctx = ctx_rows[0] if Bt == 1 else jnp.concatenate(ctx_rows, axis=0)   # (Bt*S, D)

        # ---- output projection: ONE (Bt*S, D) @ (D, D) matmul on concatenated heads
        attn_out = jnp.dot(ctx, wo, preferred_element_type=jnp.float32) + bo  # (Bt*S, D)

        # ---- adjacency mixing: src2 = adj^T @ attn_out per batch row
        # (adjacency pre-transposed in the wrapper)
        mixed_rows = [
            jnp.dot(adjt_ref[b], attn_out[b * S:(b + 1) * S, :],
                    preferred_element_type=jnp.float32)
            for b in range(Bt)
        ]
        mixed = mixed_rows[0] if Bt == 1 else jnp.concatenate(mixed_rows, axis=0)

        # ---- residual + norm1
        x1 = _layer_norm(xf + mixed, g1, be1)

        # ---- feed-forward (dim_feedforward == d_model), exact GELU; M = Bt*S matmuls
        h1 = _gelu_exact(jnp.dot(x1, w1, preferred_element_type=jnp.float32) + b1)
        ffn = jnp.dot(h1, w2, preferred_element_type=jnp.float32) + b2

        # ---- residual + norm2
        xf = _layer_norm(x1 + ffn, g2, be2)

    for b in range(Bt):
        out_ref[b] = xf[b * S:(b + 1) * S, :].astype(out_ref.dtype)


# ---------------------------------------------------------------------------
# Parameter packing (weights pre-fused / pre-scaled OUTSIDE the hot path)
# ---------------------------------------------------------------------------
def _pack_params(params, num_heads):
    (wq, wk, wv, bq, bk, bv, wo, bo, w1, b1, w2, b2, g1, be1, g2, be2) = params
    D = wq.shape[0]
    hd = D // num_heads
    scale = 1.0 / (float(hd) ** 0.5)
    # Fused QKV weight (D, 3D): [Wq*scale | Wk | Wv]; head h owns columns h*hd:(h+1)*hd
    # of each D-wide group (same grouping as the PyTorch head reshape).
    wqkv = jnp.concatenate([wq * scale, wk, wv], axis=1)        # (D, 3D)
    bqkv = jnp.concatenate([bq * scale, bk, bv], axis=1)        # (1, 3D)
    return (wqkv, bqkv, wo, bo, w1, b1, w2, b2, g1, be1, g2, be2)


def _num_batch_blocks(B):
    # v7x has 2 TensorCores per chip -> one block per TC; single-TC v5e/v6e collapse the
    # whole batch into one grid step (the grid is a serial loop there: pure overhead).
    try:
        kind = jax.devices()[0].device_kind.lower()
    except Exception:
        kind = ""
    want = 2 if "v7" in kind else 1
    want = max(1, min(want, B))
    while B % want:
        want -= 1
    return want


# ---------------------------------------------------------------------------
# Wrapper: whole encoder in one pallas_call (grid over batch blocks, "parallel")
# ---------------------------------------------------------------------------
@functools.partial(jax.jit, static_argnames=("num_layers", "num_heads"))
def transformer_encoder(src, adjacency, params, *, num_layers, num_heads):
    B, S, D = src.shape
    packed = _pack_params(params, num_heads)
    adj_t = jnp.swapaxes(adjacency, 1, 2)          # hoisted out of the kernel

    nblocks = _num_batch_blocks(B)                 # trace-time Python constant
    Bt = B // nblocks

    def full_spec(shape):
        nd = len(shape)
        return pl.BlockSpec(shape, lambda b, _nd=nd: (0,) * _nd)

    in_specs = [
        pl.BlockSpec((Bt, S, D), lambda b: (b, 0, 0)),   # src rows for this block
        pl.BlockSpec((Bt, S, S), lambda b: (b, 0, 0)),   # pre-transposed adjacency rows
    ] + [full_spec(p.shape) for p in packed]

    out_specs = (
        pl.BlockSpec((Bt, S, D), lambda b: (b, 0, 0)),
        pl.BlockSpec((num_layers, Bt, S, S), lambda b: (0, b, 0, 0)),
    )
    out_shape = (
        jax.ShapeDtypeStruct((B, S, D), jnp.float32),
        jax.ShapeDtypeStruct((num_layers, B, S, S), jnp.float32),
    )

    kernel = functools.partial(encoder_kernel, num_heads=num_heads,
                               num_layers=num_layers, block_batch=Bt)
    out, scores = pl.pallas_call(
        kernel,
        grid=(nblocks,),
        in_specs=in_specs,
        out_specs=out_specs,
        out_shape=out_shape,
        compiler_params=pltpu.CompilerParams(
            dimension_semantics=("parallel",),           # 2 TCs split blocks on v7x
            vmem_limit_bytes=32 * 1024 * 1024),          # explicit; revisit if D grows (v7x: 64 MiB)
    )(src, adj_t, *packed)
    return out, scores


# ---------------------------------------------------------------------------
# Deterministic parameter init (mirrors shapes / init style of the PyTorch module)
# ---------------------------------------------------------------------------
def init_params(key, d_model):
    E = d_model
    ks = jax.random.split(key, 6)
    # in_proj_weight (3E, E): xavier_uniform_
    lim_xav = (6.0 / (E + 3 * E)) ** 0.5
    in_proj_w = jax.random.uniform(ks[0], (3 * E, E), jnp.float32, -lim_xav, lim_xav)
    wq = in_proj_w[:E].T            # pre-transpose so kernel does x @ W
    wk = in_proj_w[E:2 * E].T
    wv = in_proj_w[2 * E:].T
    bq = jnp.zeros((1, E), jnp.float32)   # constant_(in_proj_bias, 0.)
    bk = jnp.zeros((1, E), jnp.float32)
    bv = jnp.zeros((1, E), jnp.float32)
    lim = 1.0 / (E ** 0.5)
    wo = jax.random.uniform(ks[1], (E, E), jnp.float32, -lim, lim).T
    bo = jnp.zeros((1, E), jnp.float32)   # constant_(out_proj.bias, 0.)
    # linear1 / linear2 (PyTorch nn.Linear default init, d_model -> d_model)
    w1 = jax.random.uniform(ks[2], (E, E), jnp.float32, -lim, lim).T
    b1 = jax.random.uniform(ks[3], (1, E), jnp.float32, -lim, lim)
    w2 = jax.random.uniform(ks[4], (E, E), jnp.float32, -lim, lim).T
    b2 = jax.random.uniform(ks[5], (1, E), jnp.float32, -lim, lim)
    # LayerNorm affine params
    g1 = jnp.ones((1, E), jnp.float32)
    be1 = jnp.zeros((1, E), jnp.float32)
    g2 = jnp.ones((1, E), jnp.float32)
    be2 = jnp.zeros((1, E), jnp.float32)
    return (wq, wk, wv, bq, bk, bv, wo, bo, w1, b1, w2, b2, g1, be1, g2, be2)


# ---------------------------------------------------------------------------
# Pure-JAX reference (for correctness check)
# ---------------------------------------------------------------------------
def ref_layer(src, adj, params, num_heads):
    (wq, wk, wv, bq, bk, bv, wo, bo, w1, b1, w2, b2, g1, be1, g2, be2) = params
    B, S, D = src.shape
    hd = D // num_heads
    q = (src @ wq + bq).reshape(B, S, num_heads, hd).transpose(0, 2, 1, 3) / (hd ** 0.5)
    k = (src @ wk + bk).reshape(B, S, num_heads, hd).transpose(0, 2, 1, 3)
    v = (src @ wv + bv).reshape(B, S, num_heads, hd).transpose(0, 2, 1, 3)
    p = jax.nn.softmax(jnp.einsum('bhqd,bhkd->bhqk', q, k), axis=-1)
    score = p.mean(axis=1)
    attn = jnp.einsum('bhqk,bhkd->bhqd', p, v).transpose(0, 2, 1, 3).reshape(B, S, D)
    attn_out = attn @ wo + bo
    mixed = jnp.einsum('bts,btd->bsd', adj, attn_out)
    x1 = _layer_norm(src + mixed, g1, be1)
    ffn = jax.nn.gelu(x1 @ w1 + b1, approximate=False) @ w2 + b2
    x2 = _layer_norm(x1 + ffn, g2, be2)
    return x2, score


def ref_encoder(src, adj, params, num_layers, num_heads):
    out = src
    scores = []
    for _ in range(num_layers):
        out, s = ref_layer(out, adj, params, num_heads)
        scores.append(s)
    return out, scores


# ---------------------------------------------------------------------------
if __name__ == "__main__":
    B, S, D = 2, 8, 32       # batch, sequence, embed (d_model)
    NHEAD = 4
    NUM_LAYERS = 2

    key = jax.random.PRNGKey(0)
    k_src, k_adj, k_par = jax.random.split(key, 3)
    src = jax.random.normal(k_src, (B, S, D), jnp.float32)
    adjacency = jax.random.normal(k_adj, (B, S, S), jnp.float32)
    params = init_params(k_par, D)

    out, scores = transformer_encoder(src, adjacency, params,
                                      num_layers=NUM_LAYERS, num_heads=NHEAD)
    out = jax.block_until_ready(out)
    scores = jax.block_until_ready(scores)     # (NUM_LAYERS, B, S, S)

    # correctness check against pure-JAX reference
    ref_out, ref_scores = ref_encoder(src, adjacency, params, NUM_LAYERS, NHEAD)
    assert jnp.allclose(out, ref_out, rtol=1e-4, atol=1e-4), "output mismatch"
    for l in range(NUM_LAYERS):
        assert jnp.allclose(scores[l], ref_scores[l], rtol=1e-4, atol=1e-4), "score mismatch"

    print("KERNEL_OK")
</pallas_src>

<mosaic_0001>
module attributes {stable_mosaic.version = 11 : i64} {
  func.func @encoder_kernel(%arg0: i32, %arg1: memref<2x8x32xf32, #tpu.memory_space<vmem>>, %arg2: memref<2x8x8xf32, #tpu.memory_space<vmem>>, %arg3: memref<32x96xf32, #tpu.memory_space<vmem>>, %arg4: memref<1x96xf32, #tpu.memory_space<vmem>>, %arg5: memref<32x32xf32, #tpu.memory_space<vmem>>, %arg6: memref<1x32xf32, #tpu.memory_space<vmem>>, %arg7: memref<32x32xf32, #tpu.memory_space<vmem>>, %arg8: memref<1x32xf32, #tpu.memory_space<vmem>>, %arg9: memref<32x32xf32, #tpu.memory_space<vmem>>, %arg10: memref<1x32xf32, #tpu.memory_space<vmem>>, %arg11: memref<1x32xf32, #tpu.memory_space<vmem>>, %arg12: memref<1x32xf32, #tpu.memory_space<vmem>>, %arg13: memref<1x32xf32, #tpu.memory_space<vmem>>, %arg14: memref<1x32xf32, #tpu.memory_space<vmem>>, %arg15: memref<2x8x32xf32, #tpu.memory_space<vmem>>, %arg16: memref<2x2x8x8xf32, #tpu.memory_space<vmem>>) attributes {dimension_semantics = [#tpu.dimension_semantics<parallel>], iteration_bounds = array<i64: 1>, scalar_prefetch = 0 : i64, scratch_operands = 0 : i64, tpu.core_type = #tpu.core_type<tc>, window_params = [{transform_indices = @transform_0, window_bounds = array<i64: 2, 8, 32>}, {transform_indices = @transform_1, window_bounds = array<i64: 2, 8, 8>}, {pipeline_mode = #tpu.pipeline_mode<synchronous>, transform_indices = @transform_2, window_bounds = array<i64: 32, 96>}, {pipeline_mode = #tpu.pipeline_mode<synchronous>, transform_indices = @transform_3, window_bounds = array<i64: 1, 96>}, {pipeline_mode = #tpu.pipeline_mode<synchronous>, transform_indices = @transform_4, window_bounds = array<i64: 32, 32>}, {pipeline_mode = #tpu.pipeline_mode<synchronous>, transform_indices = @transform_5, window_bounds = array<i64: 1, 32>}, {pipeline_mode = #tpu.pipeline_mode<synchronous>, transform_indices = @transform_6, window_bounds = array<i64: 32, 32>}, {pipeline_mode = #tpu.pipeline_mode<synchronous>, transform_indices = @transform_7, window_bounds = array<i64: 1, 32>}, {pipeline_mode = #tpu.pipeline_mode<synchronous>, transform_indices = @transform_8, window_bounds = array<i64: 32, 32>}, {pipeline_mode = #tpu.pipeline_mode<synchronous>, transform_indices = @transform_9, window_bounds = array<i64: 1, 32>}, {pipeline_mode = #tpu.pipeline_mode<synchronous>, transform_indices = @transform_10, window_bounds = array<i64: 1, 32>}, {pipeline_mode = #tpu.pipeline_mode<synchronous>, transform_indices = @transform_11, window_bounds = array<i64: 1, 32>}, {pipeline_mode = #tpu.pipeline_mode<synchronous>, transform_indices = @transform_12, window_bounds = array<i64: 1, 32>}, {pipeline_mode = #tpu.pipeline_mode<synchronous>, transform_indices = @transform_13, window_bounds = array<i64: 1, 32>}, {transform_indices = @transform_14, window_bounds = array<i64: 2, 8, 32>}, {transform_indices = @transform_15, window_bounds = array<i64: 2, 2, 8, 8>}]} {
    %c0 = arith.constant 0 : index
    %c0_0 = arith.constant 0 : index
    %c0_1 = arith.constant 0 : index
    %0 = vector.load %arg1[%c0, %c0_0, %c0_1] : memref<2x8x32xf32, #tpu.memory_space<vmem>>, vector<1x8x32xf32>
    %1 = vector.shape_cast %0 : vector<1x8x32xf32> to vector<8x32xf32>
    %c1 = arith.constant 1 : index
    %c0_2 = arith.constant 0 : index
    %c0_3 = arith.constant 0 : index
    %2 = vector.load %arg1[%c1, %c0_2, %c0_3] : memref<2x8x32xf32, #tpu.memory_space<vmem>>, vector<1x8x32xf32>
    %3 = vector.shape_cast %2 : vector<1x8x32xf32> to vector<8x32xf32>
    %4 = tpu.concatenate %1, %3 in 0 : vector<8x32xf32>, vector<8x32xf32> -> vector<16x32xf32>
    %c0_4 = arith.constant 0 : index
    %c0_5 = arith.constant 0 : index
    %5 = vector.load %arg3[%c0_4, %c0_5] : memref<32x96xf32, #tpu.memory_space<vmem>>, vector<32x96xf32>
    %c0_6 = arith.constant 0 : index
    %c0_7 = arith.constant 0 : index
    %6 = vector.load %arg4[%c0_6, %c0_7] : memref<1x96xf32, #tpu.memory_space<vmem>>, vector<1x96xf32>
    %c0_8 = arith.constant 0 : index
    %c0_9 = arith.constant 0 : index
    %7 = vector.load %arg5[%c0_8, %c0_9] : memref<32x32xf32, #tpu.memory_space<vmem>>, vector<32x32xf32>
    %c0_10 = arith.constant 0 : index
    %c0_11 = arith.constant 0 : index
    %8 = vector.load %arg6[%c0_10, %c0_11] : memref<1x32xf32, #tpu.memory_space<vmem>>, vector<1x32xf32>
    %c0_12 = arith.constant 0 : index
    %c0_13 = arith.constant 0 : index
    %9 = vector.load %arg7[%c0_12, %c0_13] : memref<32x32xf32, #tpu.memory_space<vmem>>, vector<32x32xf32>
    %c0_14 = arith.constant 0 : index
    %c0_15 = arith.constant 0 : index
    %10 = vector.load %arg8[%c0_14, %c0_15] : memref<1x32xf32, #tpu.memory_space<vmem>>, vector<1x32xf32>
    %c0_16 = arith.constant 0 : index
    %c0_17 = arith.constant 0 : index
    %11 = vector.load %arg9[%c0_16, %c0_17] : memref<32x32xf32, #tpu.memory_space<vmem>>, vector<32x32xf32>
    %c0_18 = arith.constant 0 : index
    %c0_19 = arith.constant 0 : index
    %12 = vector.load %arg10[%c0_18, %c0_19] : memref<1x32xf32, #tpu.memory_space<vmem>>, vector<1x32xf32>
    %c0_20 = arith.constant 0 : index
    %c0_21 = arith.constant 0 : index
    %13 = vector.load %arg11[%c0_20, %c0_21] : memref<1x32xf32, #tpu.memory_space<vmem>>, vector<1x32xf32>
    %c0_22 = arith.constant 0 : index
    %c0_23 = arith.constant 0 : index
    %14 = vector.load %arg12[%c0_22, %c0_23] : memref<1x32xf32, #tpu.memory_space<vmem>>, vector<1x32xf32>
    %c0_24 = arith.constant 0 : index
    %c0_25 = arith.constant 0 : index
    %15 = vector.load %arg13[%c0_24, %c0_25] : memref<1x32xf32, #tpu.memory_space<vmem>>, vector<1x32xf32>
    %c0_26 = arith.constant 0 : index
    %c0_27 = arith.constant 0 : index
    %16 = vector.load %arg14[%c0_26, %c0_27] : memref<1x32xf32, #tpu.memory_space<vmem>>, vector<1x32xf32>
    %cst = arith.constant dense<0.000000e+00> : vector<16x96xf32>
    %17 = tpu.matmul %4, %5, %cst {dimension_numbers = #tpu.dot_dimension_numbers<[1], [0], [0], [1], [0, 0, 1, 1], [], []>} : vector<16x32xf32>, vector<32x96xf32>, vector<16x96xf32> -> vector<16x96xf32>
    %18 = vector.broadcast %6 : vector<1x96xf32> to vector<16x96xf32>
    %19 = arith.addf %17, %18 : vector<16x96xf32>
    %20 = vector.extract_strided_slice %19 {offsets = [0, 0], sizes = [8, 96], strides = [1, 1]} : vector<16x96xf32> to vector<8x96xf32>
    %21 = vector.extract_strided_slice %20 {offsets = [0, 0], sizes = [8, 8], strides = [1, 1]} : vector<8x96xf32> to vector<8x8xf32>
    %22 = vector.extract_strided_slice %20 {offsets = [0, 32], sizes = [8, 8], strides = [1, 1]} : vector<8x96xf32> to vector<8x8xf32>
    %23 = vector.extract_strided_slice %20 {offsets = [0, 64], sizes = [8, 8], strides = [1, 1]} : vector<8x96xf32> to vector<8x8xf32>
    %24 = tpu.transpose %22, [1, 0] : vector<8x8xf32> -> vector<8x8xf32>
    %cst_28 = arith.constant dense<0.000000e+00> : vector<8x8xf32>
    %25 = tpu.matmul %21, %24, %cst_28 {dimension_numbers = #tpu.dot_dimension_numbers<[1], [0], [0], [1], [0, 0, 1, 1], [], []>} : vector<8x8xf32>, vector<8x8xf32>, vector<8x8xf32> -> vector<8x8xf32>
    %cst_29 = arith.constant dense<0xFF800000> : vector<8xf32>
    %26 = vector.multi_reduction <maximumf>, %25, %cst_29 [1] : vector<8x8xf32> to vector<8xf32>
    %27 = vector.shape_cast %26 : vector<8xf32> to vector<8x1xf32>
    %28 = vector.broadcast %27 : vector<8x1xf32> to vector<8x8xf32>
    %29 = arith.subf %25, %28 : vector<8x8xf32>
    %30 = math.exp %29 : vector<8x8xf32>
    %cst_30 = arith.constant dense<0.000000e+00> : vector<8xf32>
    %31 = vector.multi_reduction <add>, %30, %cst_30 [1] : vector<8x8xf32> to vector<8xf32>
    %32 = vector.shape_cast %31 : vector<8xf32> to vector<8x1xf32>
    %33 = vector.broadcast %32 : vector<8x1xf32> to vector<8x8xf32>
    %34 = arith.divf %30, %33 : vector<8x8xf32>
    %cst_31 = arith.constant dense<0.000000e+00> : vector<8x8xf32>
    %35 = tpu.matmul %34, %23, %cst_31 {dimension_numbers = #tpu.dot_dimension_numbers<[1], [0], [0], [1], [0, 0, 1, 1], [], []>} : vector<8x8xf32>, vector<8x8xf32>, vector<8x8xf32> -> vector<8x8xf32>
    %36 = vector.extract_strided_slice %20 {offsets = [0, 8], sizes = [8, 8], strides = [1, 1]} : vector<8x96xf32> to vector<8x8xf32>
    %37 = vector.extract_strided_slice %20 {offsets = [0, 40], sizes = [8, 8], strides = [1, 1]} : vector<8x96xf32> to vector<8x8xf32>
    %38 = vector.extract_strided_slice %20 {offsets = [0, 72], sizes = [8, 8], strides = [1, 1]} : vector<8x96xf32> to vector<8x8xf32>
    %39 = tpu.transpose %37, [1, 0] : vector<8x8xf32> -> vector<8x8xf32>
    %cst_32 = arith.constant dense<0.000000e+00> : vector<8x8xf32>
    %40 = tpu.matmul %36, %39, %cst_32 {dimension_numbers = #tpu.dot_dimension_numbers<[1], [0], [0], [1], [0, 0, 1, 1], [], []>} : vector<8x8xf32>, vector<8x8xf32>, vector<8x8xf32> -> vector<8x8xf32>
    %cst_33 = arith.constant dense<0xFF800000> : vector<8xf32>
    %41 = vector.multi_reduction <maximumf>, %40, %cst_33 [1] : vector<8x8xf32> to vector<8xf32>
    %42 = vector.shape_cast %41 : vector<8xf32> to vector<8x1xf32>
    %43 = vector.broadcast %42 : vector<8x1xf32> to vector<8x8xf32>
    %44 = arith.subf %40, %43 : vector<8x8xf32>
    %45 = math.exp %44 : vector<8x8xf32>
    %cst_34 = arith.constant dense<0.000000e+00> : vector<8xf32>
    %46 = vector.multi_reduction <add>, %45, %cst_34 [1] : vector<8x8xf32> to vector<8xf32>
    %47 = vector.shape_cast %46 : vector<8xf32> to vector<8x1xf32>
    %48 = vector.broadcast %47 : vector<8x1xf32> to vector<8x8xf32>
    %49 = arith.divf %45, %48 : vector<8x8xf32>
    %cst_35 = arith.constant dense<0.000000e+00> : vector<8x8xf32>
    %50 = tpu.matmul %49, %38, %cst_35 {dimension_numbers = #tpu.dot_dimension_numbers<[1], [0], [0], [1], [0, 0, 1, 1], [], []>} : vector<8x8xf32>, vector<8x8xf32>, vector<8x8xf32> -> vector<8x8xf32>
    %51 = vector.extract_strided_slice %20 {offsets = [0, 16], sizes = [8, 8], strides = [1, 1]} : vector<8x96xf32> to vector<8x8xf32>
    %52 = vector.extract_strided_slice %20 {offsets = [0, 48], sizes = [8, 8], strides = [1, 1]} : vector<8x96xf32> to vector<8x8xf32>
    %53 = vector.extract_strided_slice %20 {offsets = [0, 80], sizes = [8, 8], strides = [1, 1]} : vector<8x96xf32> to vector<8x8xf32>
    %54 = tpu.transpose %52, [1, 0] : vector<8x8xf32> -> vector<8x8xf32>
    %cst_36 = arith.constant dense<0.000000e+00> : vector<8x8xf32>
    %55 = tpu.matmul %51, %54, %cst_36 {dimension_numbers = #tpu.dot_dimension_numbers<[1], [0], [0], [1], [0, 0, 1, 1], [], []>} : vector<8x8xf32>, vector<8x8xf32>, vector<8x8xf32> -> vector<8x8xf32>
    %cst_37 = arith.constant dense<0xFF800000> : vector<8xf32>
    %56 = vector.multi_reduction <maximumf>, %55, %cst_37 [1] : vector<8x8xf32> to vector<8xf32>
    %57 = vector.shape_cast %56 : vector<8xf32> to vector<8x1xf32>
    %58 = vector.broadcast %57 : vector<8x1xf32> to vector<8x8xf32>
    %59 = arith.subf %55, %58 : vector<8x8xf32>
    %60 = math.exp %59 : vector<8x8xf32>
    %cst_38 = arith.constant dense<0.000000e+00> : vector<8xf32>
    %61 = vector.multi_reduction <add>, %60, %cst_38 [1] : vector<8x8xf32> to vector<8xf32>
    %62 = vector.shape_cast %61 : vector<8xf32> to vector<8x1xf32>
    %63 = vector.broadcast %62 : vector<8x1xf32> to vector<8x8xf32>
    %64 = arith.divf %60, %63 : vector<8x8xf32>
    %cst_39 = arith.constant dense<0.000000e+00> : vector<8x8xf32>
    %65 = tpu.matmul %64, %53, %cst_39 {dimension_numbers = #tpu.dot_dimension_numbers<[1], [0], [0], [1], [0, 0, 1, 1], [], []>} : vector<8x8xf32>, vector<8x8xf32>, vector<8x8xf32> -> vector<8x8xf32>
    %66 = vector.extract_strided_slice %20 {offsets = [0, 24], sizes = [8, 8], strides = [1, 1]} : vector<8x96xf32> to vector<8x8xf32>
    %67 = vector.extract_strided_slice %20 {offsets = [0, 56], sizes = [8, 8], strides = [1, 1]} : vector<8x96xf32> to vector<8x8xf32>
    %68 = vector.extract_strided_slice %20 {offsets = [0, 88], sizes = [8, 8], strides = [1, 1]} : vector<8x96xf32> to vector<8x8xf32>
    %69 = tpu.transpose %67, [1, 0] : vector<8x8xf32> -> vector<8x8xf32>
    %cst_40 = arith.constant dense<0.000000e+00> : vector<8x8xf32>
    %70 = tpu.matmul %66, %69, %cst_40 {dimension_numbers = #tpu.dot_dimension_numbers<[1], [0], [0], [1], [0, 0, 1, 1], [], []>} : vector<8x8xf32>, vector<8x8xf32>, vector<8x8xf32> -> vector<8x8xf32>
    %cst_41 = arith.constant dense<0xFF800000> : vector<8xf32>
    %71 = vector.multi_reduction <maximumf>, %70, %cst_41 [1] : vector<8x8xf32> to vector<8xf32>
    %72 = vector.shape_cast %71 : vector<8xf32> to vector<8x1xf32>
    %73 = vector.broadcast %72 : vector<8x1xf32> to vector<8x8xf32>
    %74 = arith.subf %70, %73 : vector<8x8xf32>
    %75 = math.exp %74 : vector<8x8xf32>
    %cst_42 = arith.constant dense<0.000000e+00> : vector<8xf32>
    %76 = vector.multi_reduction <add>, %75, %cst_42 [1] : vector<8x8xf32> to vector<8xf32>
    %77 = vector.shape_cast %76 : vector<8xf32> to vector<8x1xf32>
    %78 = vector.broadcast %77 : vector<8x1xf32> to vector<8x8xf32>
    %79 = arith.divf %75, %78 : vector<8x8xf32>
    %cst_43 = arith.constant dense<0.000000e+00> : vector<8x8xf32>
    %80 = tpu.matmul %79, %68, %cst_43 {dimension_numbers = #tpu.dot_dimension_numbers<[1], [0], [0], [1], [0, 0, 1, 1], [], []>} : vector<8x8xf32>, vector<8x8xf32>, vector<8x8xf32> -> vector<8x8xf32>
    %81 = arith.addf %34, %49 : vector<8x8xf32>
    %82 = arith.addf %81, %64 : vector<8x8xf32>
    %83 = arith.addf %82, %79 : vector<8x8xf32>
    %cst_44 = arith.constant 2.500000e-01 : f32
    %84 = vector.broadcast %cst_44 : f32 to vector<8x8xf32>
    %85 = arith.mulf %83, %84 : vector<8x8xf32>
    %c0_45 = arith.constant 0 : index
    %c0_46 = arith.constant 0 : index
    %c0_47 = arith.constant 0 : index
    %c0_48 = arith.constant 0 : index
    %86 = vector.load %arg16[%c0_45, %c0_46, %c0_47, %c0_48] : memref<2x2x8x8xf32, #tpu.memory_space<vmem>>, vector<1x1x8x8xf32>
    %87 = vector.shape_cast %86 : vector<1x1x8x8xf32> to vector<8x8xf32>
    %88 = vector.shape_cast %85 : vector<8x8xf32> to vector<1x1x8x8xf32>
    tpu.vector_store %arg16[%c0_45, %c0_46, %c0_47, %c0_48], %88 {strides = array<i32>} : memref<2x2x8x8xf32, #tpu.memory_space<vmem>>, vector<1x1x8x8xf32>,
    %89 = tpu.concatenate %35, %50, %65, %80 in 1 : vector<8x8xf32>, vector<8x8xf32>, vector<8x8xf32>, vector<8x8xf32> -> vector<8x32xf32>
    %90 = vector.extract_strided_slice %19 {offsets = [8, 0], sizes = [8, 96], strides = [1, 1]} : vector<16x96xf32> to vector<8x96xf32>
    %91 = vector.extract_strided_slice %90 {offsets = [0, 0], sizes = [8, 8], strides = [1, 1]} : vector<8x96xf32> to vector<8x8xf32>
    %92 = vector.extract_strided_slice %90 {offsets = [0, 32], sizes = [8, 8], strides = [1, 1]} : vector<8x96xf32> to vector<8x8xf32>
    %93 = vector.extract_strided_slice %90 {offsets = [0, 64], sizes = [8, 8], strides = [1, 1]} : vector<8x96xf32> to vector<8x8xf32>
    %94 = tpu.transpose %92, [1, 0] : vector<8x8xf32> -> vector<8x8xf32>
    %cst_49 = arith.constant dense<0.000000e+00> : vector<8x8xf32>
    %95 = tpu.matmul %91, %94, %cst_49 {dimension_numbers = #tpu.dot_dimension_numbers<[1], [0], [0], [1], [0, 0, 1, 1], [], []>} : vector<8x8xf32>, vector<8x8xf32>, vector<8x8xf32> -> vector<8x8xf32>
    %cst_50 = arith.constant dense<0xFF800000> : vector<8xf32>
    %96 = vector.multi_reduction <maximumf>, %95, %cst_50 [1] : vector<8x8xf32> to vector<8xf32>
    %97 = vector.shape_cast %96 : vector<8xf32> to vector<8x1xf32>
    %98 = vector.broadcast %97 : vector<8x1xf32> to vector<8x8xf32>
    %99 = arith.subf %95, %98 : vector<8x8xf32>
    %100 = math.exp %99 : vector<8x8xf32>
    %cst_51 = arith.constant dense<0.000000e+00> : vector<8xf32>
    %101 = vector.multi_reduction <add>, %100, %cst_51 [1] : vector<8x8xf32> to vector<8xf32>
    %102 = vector.shape_cast %101 : vector<8xf32> to vector<8x1xf32>
    %103 = vector.broadcast %102 : vector<8x1xf32> to vector<8x8xf32>
    %104 = arith.divf %100, %103 : vector<8x8xf32>
    %cst_52 = arith.constant dense<0.000000e+00> : vector<8x8xf32>
    %105 = tpu.matmul %104, %93, %cst_52 {dimension_numbers = #tpu.dot_dimension_numbers<[1], [0], [0], [1], [0, 0, 1, 1], [], []>} : vector<8x8xf32>, vector<8x8xf32>, vector<8x8xf32> -> vector<8x8xf32>
    %106 = vector.extract_strided_slice %90 {offsets = [0, 8], sizes = [8, 8], strides = [1, 1]} : vector<8x96xf32> to vector<8x8xf32>
    %107 = vector.extract_strided_slice %90 {offsets = [0, 40], sizes = [8, 8], strides = [1, 1]} : vector<8x96xf32> to vector<8x8xf32>
    %108 = vector.extract_strided_slice %90 {offsets = [0, 72], sizes = [8, 8], strides = [1, 1]} : vector<8x96xf32> to vector<8x8xf32>
    %109 = tpu.transpose %107, [1, 0] : vector<8x8xf32> -> vector<8x8xf32>
    %cst_53 = arith.constant dense<0.000000e+00> : vector<8x8xf32>
    %110 = tpu.matmul %106, %109, %cst_53 {dimension_numbers = #tpu.dot_dimension_numbers<[1], [0], [0], [1], [0, 0, 1, 1], [], []>} : vector<8x8xf32>, vector<8x8xf32>, vector<8x8xf32> -> vector<8x8xf32>
    %cst_54 = arith.constant dense<0xFF800000> : vector<8xf32>
    %111 = vector.multi_reduction <maximumf>, %110, %cst_54 [1] : vector<8x8xf32> to vector<8xf32>
    %112 = vector.shape_cast %111 : vector<8xf32> to vector<8x1xf32>
    %113 = vector.broadcast %112 : vector<8x1xf32> to vector<8x8xf32>
    %114 = arith.subf %110, %113 : vector<8x8xf32>
    %115 = math.exp %114 : vector<8x8xf32>
    %cst_55 = arith.constant dense<0.000000e+00> : vector<8xf32>
    %116 = vector.multi_reduction <add>, %115, %cst_55 [1] : vector<8x8xf32> to vector<8xf32>
    %117 = vector.shape_cast %116 : vector<8xf32> to vector<8x1xf32>
    %118 = vector.broadcast %117 : vector<8x1xf32> to vector<8x8xf32>
    %119 = arith.divf %115, %118 : vector<8x8xf32>
    %cst_56 = arith.constant dense<0.000000e+00> : vector<8x8xf32>
    %120 = tpu.matmul %119, %108, %cst_56 {dimension_numbers = #tpu.dot_dimension_numbers<[1], [0], [0], [1], [0, 0, 1, 1], [], []>} : vector<8x8xf32>, vector<8x8xf32>, vector<8x8xf32> -> vector<8x8xf32>
    %121 = vector.extract_strided_slice %90 {offsets = [0, 16], sizes = [8, 8], strides = [1, 1]} : vector<8x96xf32> to vector<8x8xf32>
    %122 = vector.extract_strided_slice %90 {offsets = [0, 48], sizes = [8, 8], strides = [1, 1]} : vector<8x96xf32> to vector<8x8xf32>
    %123 = vector.extract_strided_slice %90 {offsets = [0, 80], sizes = [8, 8], strides = [1, 1]} : vector<8x96xf32> to vector<8x8xf32>
    %124 = tpu.transpose %122, [1, 0] : vector<8x8xf32> -> vector<8x8xf32>
    %cst_57 = arith.constant dense<0.000000e+00> : vector<8x8xf32>
    %125 = tpu.matmul %121, %124, %cst_57 {dimension_numbers = #tpu.dot_dimension_numbers<[1], [0], [0], [1], [0, 0, 1, 1], [], []>} : vector<8x8xf32>, vector<8x8xf32>, vector<8x8xf32> -> vector<8x8xf32>
    %cst_58 = arith.constant dense<0xFF800000> : vector<8xf32>
    %126 = vector.multi_reduction <maximumf>, %125, %cst_58 [1] : vector<8x8xf32> to vector<8xf32>
    %127 = vector.shape_cast %126 : vector<8xf32> to vector<8x1xf32>
    %128 = vector.broadcast %127 : vector<8x1xf32> to vector<8x8xf32>
    %129 = arith.subf %125, %128 : vector<8x8xf32>
    %130 = math.exp %129 : vector<8x8xf32>
    %cst_59 = arith.constant dense<0.000000e+00> : vector<8xf32>
    %131 = vector.multi_reduction <add>, %130, %cst_59 [1] : vector<8x8xf32> to vector<8xf32>
    %132 = vector.shape_cast %131 : vector<8xf32> to vector<8x1xf32>
    %133 = vector.broadcast %132 : vector<8x1xf32> to vector<8x8xf32>
    %134 = arith.divf %130, %133 : vector<8x8xf32>
    %cst_60 = arith.constant dense<0.000000e+00> : vector<8x8xf32>
    %135 = tpu.matmul %134, %123, %cst_60 {dimension_numbers = #tpu.dot_dimension_numbers<[1], [0], [0], [1], [0, 0, 1, 1], [], []>} : vector<8x8xf32>, vector<8x8xf32>, vector<8x8xf32> -> vector<8x8xf32>
    %136 = vector.extract_strided_slice %90 {offsets = [0, 24], sizes = [8, 8], strides = [1, 1]} : vector<8x96xf32> to vector<8x8xf32>
    %137 = vector.extract_strided_slice %90 {offsets = [0, 56], sizes = [8, 8], strides = [1, 1]} : vector<8x96xf32> to vector<8x8xf32>
    %138 = vector.extract_strided_slice %90 {offsets = [0, 88], sizes = [8, 8], strides = [1, 1]} : vector<8x96xf32> to vector<8x8xf32>
    %139 = tpu.transpose %137, [1, 0] : vector<8x8xf32> -> vector<8x8xf32>
    %cst_61 = arith.constant dense<0.000000e+00> : vector<8x8xf32>
    %140 = tpu.matmul %136, %139, %cst_61 {dimension_numbers = #tpu.dot_dimension_numbers<[1], [0], [0], [1], [0, 0, 1, 1], [], []>} : vector<8x8xf32>, vector<8x8xf32>, vector<8x8xf32> -> vector<8x8xf32>
    %cst_62 = arith.constant dense<0xFF800000> : vector<8xf32>
    %141 = vector.multi_reduction <maximumf>, %140, %cst_62 [1] : vector<8x8xf32> to vector<8xf32>
    %142 = vector.shape_cast %141 : vector<8xf32> to vector<8x1xf32>
    %143 = vector.broadcast %142 : vector<8x1xf32> to vector<8x8xf32>
    %144 = arith.subf %140, %143 : vector<8x8xf32>
    %145 = math.exp %144 : vector<8x8xf32>
    %cst_63 = arith.constant dense<0.000000e+00> : vector<8xf32>
    %146 = vector.multi_reduction <add>, %145, %cst_63 [1] : vector<8x8xf32> to vector<8xf32>
    %147 = vector.shape_cast %146 : vector<8xf32> to vector<8x1xf32>
    %148 = vector.broadcast %147 : vector<8x1xf32> to vector<8x8xf32>
    %149 = arith.divf %145, %148 : vector<8x8xf32>
    %cst_64 = arith.constant dense<0.000000e+00> : vector<8x8xf32>
    %150 = tpu.matmul %149, %138, %cst_64 {dimension_numbers = #tpu.dot_dimension_numbers<[1], [0], [0], [1], [0, 0, 1, 1], [], []>} : vector<8x8xf32>, vector<8x8xf32>, vector<8x8xf32> -> vector<8x8xf32>
    %151 = arith.addf %104, %119 : vector<8x8xf32>
    %152 = arith.addf %151, %134 : vector<8x8xf32>
    %153 = arith.addf %152, %149 : vector<8x8xf32>
    %cst_65 = arith.constant 2.500000e-01 : f32
    %154 = vector.broadcast %cst_65 : f32 to vector<8x8xf32>
    %155 = arith.mulf %153, %154 : vector<8x8xf32>
    %c0_66 = arith.constant 0 : index
    %c1_67 = arith.constant 1 : index
    %c0_68 = arith.constant 0 : index
    %c0_69 = arith.constant 0 : index
    %156 = vector.load %arg16[%c0_66, %c1_67, %c0_68, %c0_69] : memref<2x2x8x8xf32, #tpu.memory_space<vmem>>, vector<1x1x8x8xf32>
    %157 = vector.shape_cast %156 : vector<1x1x8x8xf32> to vector<8x8xf32>
    %158 = vector.shape_cast %155 : vector<8x8xf32> to vector<1x1x8x8xf32>
    tpu.vector_store %arg16[%c0_66, %c1_67, %c0_68, %c0_69], %158 {strides = array<i32>} : memref<2x2x8x8xf32, #tpu.memory_space<vmem>>, vector<1x1x8x8xf32>,
    %159 = tpu.concatenate %105, %120, %135, %150 in 1 : vector<8x8xf32>, vector<8x8xf32>, vector<8x8xf32>, vector<8x8xf32> -> vector<8x32xf32>
    %160 = tpu.concatenate %89, %159 in 0 : vector<8x32xf32>, vector<8x32xf32> -> vector<16x32xf32>
    %cst_70 = arith.constant dense<0.000000e+00> : vector<16x32xf32>
    %161 = tpu.matmul %160, %7, %cst_70 {dimension_numbers = #tpu.dot_dimension_numbers<[1], [0], [0], [1], [0, 0, 1, 1], [], []>} : vector<16x32xf32>, vector<32x32xf32>, vector<16x32xf32> -> vector<16x32xf32>
    %162 = vector.broadcast %8 : vector<1x32xf32> to vector<16x32xf32>
    %163 = arith.addf %161, %162 : vector<16x32xf32>
    %c0_71 = arith.constant 0 : index
    %c0_72 = arith.constant 0 : index
    %c0_73 = arith.constant 0 : index
    %164 = vector.load %arg2[%c0_71, %c0_72, %c0_73] : memref<2x8x8xf32, #tpu.memory_space<vmem>>, vector<1x8x8xf32>
    %165 = vector.shape_cast %164 : vector<1x8x8xf32> to vector<8x8xf32>
    %166 = vector.extract_strided_slice %163 {offsets = [0, 0], sizes = [8, 32], strides = [1, 1]} : vector<16x32xf32> to vector<8x32xf32>
    %cst_74 = arith.constant dense<0.000000e+00> : vector<8x32xf32>
    %167 = tpu.matmul %165, %166, %cst_74 {dimension_numbers = #tpu.dot_dimension_numbers<[1], [0], [0], [1], [0, 0, 1, 1], [], []>} : vector<8x8xf32>, vector<8x32xf32>, vector<8x32xf32> -> vector<8x32xf32>
    %c1_75 = arith.constant 1 : index
    %c0_76 = arith.constant 0 : index
    %c0_77 = arith.constant 0 : index
    %168 = vector.load %arg2[%c1_75, %c0_76, %c0_77] : memref<2x8x8xf32, #tpu.memory_space<vmem>>, vector<1x8x8xf32>
    %169 = vector.shape_cast %168 : vector<1x8x8xf32> to vector<8x8xf32>
    %170 = vector.extract_strided_slice %163 {offsets = [8, 0], sizes = [8, 32], strides = [1, 1]} : vector<16x32xf32> to vector<8x32xf32>
    %cst_78 = arith.constant dense<0.000000e+00> : vector<8x32xf32>
    %171 = tpu.matmul %169, %170, %cst_78 {dimension_numbers = #tpu.dot_dimension_numbers<[1], [0], [0], [1], [0, 0, 1, 1], [], []>} : vector<8x8xf32>, vector<8x32xf32>, vector<8x32xf32> -> vector<8x32xf32>
    %172 = tpu.concatenate %167, %171 in 0 : vector<8x32xf32>, vector<8x32xf32> -> vector<16x32xf32>
    %173 = arith.addf %4, %172 : vector<16x32xf32>
    %cst_79 = arith.constant dense<0.000000e+00> : vector<16xf32>
    %174 = vector.multi_reduction <add>, %173, %cst_79 [1] : vector<16x32xf32> to vector<16xf32>
    %175 = vector.shape_cast %174 : vector<16xf32> to vector<16x1xf32>
    %cst_80 = arith.constant 3.200000e+01 : f32
    %176 = vector.broadcast %cst_80 : f32 to vector<16x1xf32>
    %177 = arith.divf %175, %176 : vector<16x1xf32>
    %178 = vector.broadcast %177 : vector<16x1xf32> to vector<16x32xf32>
    %179 = arith.subf %173, %178 : vector<16x32xf32>
    %180 = arith.mulf %179, %179 : vector<16x32xf32>
    %cst_81 = arith.constant dense<0.000000e+00> : vector<16xf32>
    %181 = vector.multi_reduction <add>, %180, %cst_81 [1] : vector<16x32xf32> to vector<16xf32>
    %182 = vector.shape_cast %181 : vector<16xf32> to vector<16x1xf32>
    %cst_82 = arith.constant 3.200000e+01 : f32
    %183 = vector.broadcast %cst_82 : f32 to vector<16x1xf32>
    %184 = arith.divf %182, %183 : vector<16x1xf32>
    %185 = vector.broadcast %177 : vector<16x1xf32> to vector<16x32xf32>
    %186 = arith.subf %173, %185 : vector<16x32xf32>
    %cst_83 = arith.constant 9.99999974E-6 : f32
    %187 = vector.broadcast %cst_83 : f32 to vector<16x1xf32>
    %188 = arith.addf %184, %187 : vector<16x1xf32>
    %189 = math.rsqrt %188 : vector<16x1xf32>
    %190 = vector.broadcast %189 : vector<16x1xf32> to vector<16x32xf32>
    %191 = arith.mulf %186, %190 : vector<16x32xf32>
    %192 = vector.broadcast %13 : vector<1x32xf32> to vector<16x32xf32>
    %193 = arith.mulf %191, %192 : vector<16x32xf32>
    %194 = vector.broadcast %14 : vector<1x32xf32> to vector<16x32xf32>
    %195 = arith.addf %193, %194 : vector<16x32xf32>
    %cst_84 = arith.constant dense<0.000000e+00> : vector<16x32xf32>
    %196 = tpu.matmul %195, %9, %cst_84 {dimension_numbers = #tpu.dot_dimension_numbers<[1], [0], [0], [1], [0, 0, 1, 1], [], []>} : vector<16x32xf32>, vector<32x32xf32>, vector<16x32xf32> -> vector<16x32xf32>
    %197 = vector.broadcast %10 : vector<1x32xf32> to vector<16x32xf32>
    %198 = arith.addf %196, %197 : vector<16x32xf32>
    %cst_85 = arith.constant 5.000000e-01 : f32
    %199 = vector.broadcast %cst_85 : f32 to vector<16x32xf32>
    %200 = arith.mulf %199, %198 : vector<16x32xf32>
    %cst_86 = arith.constant 0.707106769 : f32
    %201 = vector.broadcast %cst_86 : f32 to vector<16x32xf32>
    %202 = arith.mulf %198, %201 : vector<16x32xf32>
    %203 = math.erf %202 : vector<16x32xf32>
    %cst_87 = arith.constant 1.000000e+00 : f32
    %204 = vector.broadcast %cst_87 : f32 to vector<16x32xf32>
    %205 = arith.addf %204, %203 : vector<16x32xf32>
    %206 = arith.mulf %200, %205 : vector<16x32xf32>
    %cst_88 = arith.constant dense<0.000000e+00> : vector<16x32xf32>
    %207 = tpu.matmul %206, %11, %cst_88 {dimension_numbers = #tpu.dot_dimension_numbers<[1], [0], [0], [1], [0, 0, 1, 1], [], []>} : vector<16x32xf32>, vector<32x32xf32>, vector<16x32xf32> -> vector<16x32xf32>
    %208 = vector.broadcast %12 : vector<1x32xf32> to vector<16x32xf32>
    %209 = arith.addf %207, %208 : vector<16x32xf32>
    %210 = arith.addf %195, %209 : vector<16x32xf32>
    %cst_89 = arith.constant dense<0.000000e+00> : vector<16xf32>
    %211 = vector.multi_reduction <add>, %210, %cst_89 [1] : vector<16x32xf32> to vector<16xf32>
    %212 = vector.shape_cast %211 : vector<16xf32> to vector<16x1xf32>
    %cst_90 = arith.constant 3.200000e+01 : f32
    %213 = vector.broadcast %cst_90 : f32 to vector<16x1xf32>
    %214 = arith.divf %212, %213 : vector<16x1xf32>
    %215 = vector.broadcast %214 : vector<16x1xf32> to vector<16x32xf32>
    %216 = arith.subf %210, %215 : vector<16x32xf32>
    %217 = arith.mulf %216, %216 : vector<16x32xf32>
    %cst_91 = arith.constant dense<0.000000e+00> : vector<16xf32>
    %218 = vector.multi_reduction <add>, %217, %cst_91 [1] : vector<16x32xf32> to vector<16xf32>
    %219 = vector.shape_cast %218 : vector<16xf32> to vector<16x1xf32>
    %cst_92 = arith.constant 3.200000e+01 : f32
    %220 = vector.broadcast %cst_92 : f32 to vector<16x1xf32>
    %221 = arith.divf %219, %220 : vector<16x1xf32>
    %222 = vector.broadcast %214 : vector<16x1xf32> to vector<16x32xf32>
    %223 = arith.subf %210, %222 : vector<16x32xf32>
    %cst_93 = arith.constant 9.99999974E-6 : f32
    %224 = vector.broadcast %cst_93 : f32 to vector<16x1xf32>
    %225 = arith.addf %221, %224 : vector<16x1xf32>
    %226 = math.rsqrt %225 : vector<16x1xf32>
    %227 = vector.broadcast %226 : vector<16x1xf32> to vector<16x32xf32>
    %228 = arith.mulf %223, %227 : vector<16x32xf32>
    %229 = vector.broadcast %15 : vector<1x32xf32> to vector<16x32xf32>
    %230 = arith.mulf %228, %229 : vector<16x32xf32>
    %231 = vector.broadcast %16 : vector<1x32xf32> to vector<16x32xf32>
    %232 = arith.addf %230, %231 : vector<16x32xf32>
    %cst_94 = arith.constant dense<0.000000e+00> : vector<16x96xf32>
    %233 = tpu.matmul %232, %5, %cst_94 {dimension_numbers = #tpu.dot_dimension_numbers<[1], [0], [0], [1], [0, 0, 1, 1], [], []>} : vector<16x32xf32>, vector<32x96xf32>, vector<16x96xf32> -> vector<16x96xf32>
    %234 = vector.broadcast %6 : vector<1x96xf32> to vector<16x96xf32>
    %235 = arith.addf %233, %234 : vector<16x96xf32>
    %236 = vector.extract_strided_slice %235 {offsets = [0, 0], sizes = [8, 96], strides = [1, 1]} : vector<16x96xf32> to vector<8x96xf32>
    %237 = vector.extract_strided_slice %236 {offsets = [0, 0], sizes = [8, 8], strides = [1, 1]} : vector<8x96xf32> to vector<8x8xf32>
    %238 = vector.extract_strided_slice %236 {offsets = [0, 32], sizes = [8, 8], strides = [1, 1]} : vector<8x96xf32> to vector<8x8xf32>
    %239 = vector.extract_strided_slice %236 {offsets = [0, 64], sizes = [8, 8], strides = [1, 1]} : vector<8x96xf32> to vector<8x8xf32>
    %240 = tpu.transpose %238, [1, 0] : vector<8x8xf32> -> vector<8x8xf32>
    %cst_95 = arith.constant dense<0.000000e+00> : vector<8x8xf32>
    %241 = tpu.matmul %237, %240, %cst_95 {dimension_numbers = #tpu.dot_dimension_numbers<[1], [0], [0], [1], [0, 0, 1, 1], [], []>} : vector<8x8xf32>, vector<8x8xf32>, vector<8x8xf32> -> vector<8x8xf32>
    %cst_96 = arith.constant dense<0xFF800000> : vector<8xf32>
    %242 = vector.multi_reduction <maximumf>, %241, %cst_96 [1] : vector<8x8xf32> to vector<8xf32>
    %243 = vector.shape_cast %242 : vector<8xf32> to vector<8x1xf32>
    %244 = vector.broadcast %243 : vector<8x1xf32> to vector<8x8xf32>
    %245 = arith.subf %241, %244 : vector<8x8xf32>
    %246 = math.exp %245 : vector<8x8xf32>
    %cst_97 = arith.constant dense<0.000000e+00> : vector<8xf32>
    %247 = vector.multi_reduction <add>, %246, %cst_97 [1] : vector<8x8xf32> to vector<8xf32>
    %248 = vector.shape_cast %247 : vector<8xf32> to vector<8x1xf32>
    %249 = vector.broadcast %248 : vector<8x1xf32> to vector<8x8xf32>
    %250 = arith.divf %246, %249 : vector<8x8xf32>
    %cst_98 = arith.constant dense<0.000000e+00> : vector<8x8xf32>
    %251 = tpu.matmul %250, %239, %cst_98 {dimension_numbers = #tpu.dot_dimension_numbers<[1], [0], [0], [1], [0, 0, 1, 1], [], []>} : vector<8x8xf32>, vector<8x8xf32>, vector<8x8xf32> -> vector<8x8xf32>
    %252 = vector.extract_strided_slice %236 {offsets = [0, 8], sizes = [8, 8], strides = [1, 1]} : vector<8x96xf32> to vector<8x8xf32>
    %253 = vector.extract_strided_slice %236 {offsets = [0, 40], sizes = [8, 8], strides = [1, 1]} : vector<8x96xf32> to vector<8x8xf32>
    %254 = vector.extract_strided_slice %236 {offsets = [0, 72], sizes = [8, 8], strides = [1, 1]} : vector<8x96xf32> to vector<8x8xf32>
    %255 = tpu.transpose %253, [1, 0] : vector<8x8xf32> -> vector<8x8xf32>
    %cst_99 = arith.constant dense<0.000000e+00> : vector<8x8xf32>
    %256 = tpu.matmul %252, %255, %cst_99 {dimension_numbers = #tpu.dot_dimension_numbers<[1], [0], [0], [1], [0, 0, 1, 1], [], []>} : vector<8x8xf32>, vector<8x8xf32>, vector<8x8xf32> -> vector<8x8xf32>
    %cst_100 = arith.constant dense<0xFF800000> : vector<8xf32>
    %257 = vector.multi_reduction <maximumf>, %256, %cst_100 [1] : vector<8x8xf32> to vector<8xf32>
    %258 = vector.shape_cast %257 : vector<8xf32> to vector<8x1xf32>
    %259 = vector.broadcast %258 : vector<8x1xf32> to vector<8x8xf32>
    %260 = arith.subf %256, %259 : vector<8x8xf32>
    %261 = math.exp %260 : vector<8x8xf32>
    %cst_101 = arith.constant dense<0.000000e+00> : vector<8xf32>
    %262 = vector.multi_reduction <add>, %261, %cst_101 [1] : vector<8x8xf32> to vector<8xf32>
    %263 = vector.shape_cast %262 : vector<8xf32> to vector<8x1xf32>
    %264 = vector.broadcast %263 : vector<8x1xf32> to vector<8x8xf32>
    %265 = arith.divf %261, %264 : vector<8x8xf32>
    %cst_102 = arith.constant dense<0.000000e+00> : vector<8x8xf32>
    %266 = tpu.matmul %265, %254, %cst_102 {dimension_numbers = #tpu.dot_dimension_numbers<[1], [0], [0], [1], [0, 0, 1, 1], [], []>} : vector<8x8xf32>, vector<8x8xf32>, vector<8x8xf32> -> vector<8x8xf32>
    %267 = vector.extract_strided_slice %236 {offsets = [0, 16], sizes = [8, 8], strides = [1, 1]} : vector<8x96xf32> to vector<8x8xf32>
    %268 = vector.extract_strided_slice %236 {offsets = [0, 48], sizes = [8, 8], strides = [1, 1]} : vector<8x96xf32> to vector<8x8xf32>
    %269 = vector.extract_strided_slice %236 {offsets = [0, 80], sizes = [8, 8], strides = [1, 1]} : vector<8x96xf32> to vector<8x8xf32>
    %270 = tpu.transpose %268, [1, 0] : vector<8x8xf32> -> vector<8x8xf32>
    %cst_103 = arith.constant dense<0.000000e+00> : vector<8x8xf32>
    %271 = tpu.matmul %267, %270, %cst_103 {dimension_numbers = #tpu.dot_dimension_numbers<[1], [0], [0], [1], [0, 0, 1, 1], [], []>} : vector<8x8xf32>, vector<8x8xf32>, vector<8x8xf32> -> vector<8x8xf32>
    %cst_104 = arith.constant dense<0xFF800000> : vector<8xf32>
    %272 = vector.multi_reduction <maximumf>, %271, %cst_104 [1] : vector<8x8xf32> to vector<8xf32>
    %273 = vector.shape_cast %272 : vector<8xf32> to vector<8x1xf32>
    %274 = vector.broadcast %273 : vector<8x1xf32> to vector<8x8xf32>
    %275 = arith.subf %271, %274 : vector<8x8xf32>
    %276 = math.exp %275 : vector<8x8xf32>
    %cst_105 = arith.constant dense<0.000000e+00> : vector<8xf32>
    %277 = vector.multi_reduction <add>, %276, %cst_105 [1] : vector<8x8xf32> to vector<8xf32>
    %278 = vector.shape_cast %277 : vector<8xf32> to vector<8x1xf32>
    %279 = vector.broadcast %278 : vector<8x1xf32> to vector<8x8xf32>
    %280 = arith.divf %276, %279 : vector<8x8xf32>
    %cst_106 = arith.constant dense<0.000000e+00> : vector<8x8xf32>
    %281 = tpu.matmul %280, %269, %cst_106 {dimension_numbers = #tpu.dot_dimension_numbers<[1], [0], [0], [1], [0, 0, 1, 1], [], []>} : vector<8x8xf32>, vector<8x8xf32>, vector<8x8xf32> -> vector<8x8xf32>
    %282 = vector.extract_strided_slice %236 {offsets = [0, 24], sizes = [8, 8], strides = [1, 1]} : vector<8x96xf32> to vector<8x8xf32>
    %283 = vector.extract_strided_slice %236 {offsets = [0, 56], sizes = [8, 8], strides = [1, 1]} : vector<8x96xf32> to vector<8x8xf32>
    %284 = vector.extract_strided_slice %236 {offsets = [0, 88], sizes = [8, 8], strides = [1, 1]} : vector<8x96xf32> to vector<8x8xf32>
    %285 = tpu.transpose %283, [1, 0] : vector<8x8xf32> -> vector<8x8xf32>
    %cst_107 = arith.constant dense<0.000000e+00> : vector<8x8xf32>
    %286 = tpu.matmul %282, %285, %cst_107 {dimension_numbers = #tpu.dot_dimension_numbers<[1], [0], [0], [1], [0, 0, 1, 1], [], []>} : vector<8x8xf32>, vector<8x8xf32>, vector<8x8xf32> -> vector<8x8xf32>
    %cst_108 = arith.constant dense<0xFF800000> : vector<8xf32>
    %287 = vector.multi_reduction <maximumf>, %286, %cst_108 [1] : vector<8x8xf32> to vector<8xf32>
    %288 = vector.shape_cast %287 : vector<8xf32> to vector<8x1xf32>
    %289 = vector.broadcast %288 : vector<8x1xf32> to vector<8x8xf32>
    %290 = arith.subf %286, %289 : vector<8x8xf32>
    %291 = math.exp %290 : vector<8x8xf32>
    %cst_109 = arith.constant dense<0.000000e+00> : vector<8xf32>
    %292 = vector.multi_reduction <add>, %291, %cst_109 [1] : vector<8x8xf32> to vector<8xf32>
    %293 = vector.shape_cast %292 : vector<8xf32> to vector<8x1xf32>
    %294 = vector.broadcast %293 : vector<8x1xf32> to vector<8x8xf32>
    %295 = arith.divf %291, %294 : vector<8x8xf32>
    %cst_110 = arith.constant dense<0.000000e+00> : vector<8x8xf32>
    %296 = tpu.matmul %295, %284, %cst_110 {dimension_numbers = #tpu.dot_dimension_numbers<[1], [0], [0], [1], [0, 0, 1, 1], [], []>} : vector<8x8xf32>, vector<8x8xf32>, vector<8x8xf32> -> vector<8x8xf32>
    %297 = arith.addf %250, %265 : vector<8x8xf32>
    %298 = arith.addf %297, %280 : vector<8x8xf32>
    %299 = arith.addf %298, %295 : vector<8x8xf32>
    %cst_111 = arith.constant 2.500000e-01 : f32
    %300 = vector.broadcast %cst_111 : f32 to vector<8x8xf32>
    %301 = arith.mulf %299, %300 : vector<8x8xf32>
    %c1_112 = arith.constant 1 : index
    %c0_113 = arith.constant 0 : index
    %c0_114 = arith.constant 0 : index
    %c0_115 = arith.constant 0 : index
    %302 = vector.load %arg16[%c1_112, %c0_113, %c0_114, %c0_115] : memref<2x2x8x8xf32, #tpu.memory_space<vmem>>, vector<1x1x8x8xf32>
    %303 = vector.shape_cast %302 : vector<1x1x8x8xf32> to vector<8x8xf32>
    %304 = vector.shape_cast %301 : vector<8x8xf32> to vector<1x1x8x8xf32>
    tpu.vector_store %arg16[%c1_112, %c0_113, %c0_114, %c0_115], %304 {strides = array<i32>} : memref<2x2x8x8xf32, #tpu.memory_space<vmem>>, vector<1x1x8x8xf32>,
    %305 = tpu.concatenate %251, %266, %281, %296 in 1 : vector<8x8xf32>, vector<8x8xf32>, vector<8x8xf32>, vector<8x8xf32> -> vector<8x32xf32>
    %306 = vector.extract_strided_slice %235 {offsets = [8, 0], sizes = [8, 96], strides = [1, 1]} : vector<16x96xf32> to vector<8x96xf32>
    %307 = vector.extract_strided_slice %306 {offsets = [0, 0], sizes = [8, 8], strides = [1, 1]} : vector<8x96xf32> to vector<8x8xf32>
    %308 = vector.extract_strided_slice %306 {offsets = [0, 32], sizes = [8, 8], strides = [1, 1]} : vector<8x96xf32> to vector<8x8xf32>
    %309 = vector.extract_strided_slice %306 {offsets = [0, 64], sizes = [8, 8], strides = [1, 1]} : vector<8x96xf32> to vector<8x8xf32>
    %310 = tpu.transpose %308, [1, 0] : vector<8x8xf32> -> vector<8x8xf32>
    %cst_116 = arith.constant dense<0.000000e+00> : vector<8x8xf32>
    %311 = tpu.matmul %307, %310, %cst_116 {dimension_numbers = #tpu.dot_dimension_numbers<[1], [0], [0], [1], [0, 0, 1, 1], [], []>} : vector<8x8xf32>, vector<8x8xf32>, vector<8x8xf32> -> vector<8x8xf32>
    %cst_117 = arith.constant dense<0xFF800000> : vector<8xf32>
    %312 = vector.multi_reduction <maximumf>, %311, %cst_117 [1] : vector<8x8xf32> to vector<8xf32>
    %313 = vector.shape_cast %312 : vector<8xf32> to vector<8x1xf32>
    %314 = vector.broadcast %313 : vector<8x1xf32> to vector<8x8xf32>
    %315 = arith.subf %311, %314 : vector<8x8xf32>
    %316 = math.exp %315 : vector<8x8xf32>
    %cst_118 = arith.constant dense<0.000000e+00> : vector<8xf32>
    %317 = vector.multi_reduction <add>, %316, %cst_118 [1] : vector<8x8xf32> to vector<8xf32>
    %318 = vector.shape_cast %317 : vector<8xf32> to vector<8x1xf32>
    %319 = vector.broadcast %318 : vector<8x1xf32> to vector<8x8xf32>
    %320 = arith.divf %316, %319 : vector<8x8xf32>
    %cst_119 = arith.constant dense<0.000000e+00> : vector<8x8xf32>
    %321 = tpu.matmul %320, %309, %cst_119 {dimension_numbers = #tpu.dot_dimension_numbers<[1], [0], [0], [1], [0, 0, 1, 1], [], []>} : vector<8x8xf32>, vector<8x8xf32>, vector<8x8xf32> -> vector<8x8xf32>
    %322 = vector.extract_strided_slice %306 {offsets = [0, 8], sizes = [8, 8], strides = [1, 1]} : vector<8x96xf32> to vector<8x8xf32>
    %323 = vector.extract_strided_slice %306 {offsets = [0, 40], sizes = [8, 8], strides = [1, 1]} : vector<8x96xf32> to vector<8x8xf32>
    %324 = vector.extract_strided_slice %306 {offsets = [0, 72], sizes = [8, 8], strides = [1, 1]} : vector<8x96xf32> to vector<8x8xf32>
    %325 = tpu.transpose %323, [1, 0] : vector<8x8xf32> -> vector<8x8xf32>
    %cst_120 = arith.constant dense<0.000000e+00> : vector<8x8xf32>
    %326 = tpu.matmul %322, %325, %cst_120 {dimension_numbers = #tpu.dot_dimension_numbers<[1], [0], [0], [1], [0, 0, 1, 1], [], []>} : vector<8x8xf32>, vector<8x8xf32>, vector<8x8xf32> -> vector<8x8xf32>
    %cst_121 = arith.constant dense<0xFF800000> : vector<8xf32>
    %327 = vector.multi_reduction <maximumf>, %326, %cst_121 [1] : vector<8x8xf32> to vector<8xf32>
    %328 = vector.shape_cast %327 : vector<8xf32> to vector<8x1xf32>
    %329 = vector.broadcast %328 : vector<8x1xf32> to vector<8x8xf32>
    %330 = arith.subf %326, %329 : vector<8x8xf32>
    %331 = math.exp %330 : vector<8x8xf32>
    %cst_122 = arith.constant dense<0.000000e+00> : vector<8xf32>
    %332 = vector.multi_reduction <add>, %331, %cst_122 [1] : vector<8x8xf32> to vector<8xf32>
    %333 = vector.shape_cast %332 : vector<8xf32> to vector<8x1xf32>
    %334 = vector.broadcast %333 : vector<8x1xf32> to vector<8x8xf32>
    %335 = arith.divf %331, %334 : vector<8x8xf32>
    %cst_123 = arith.constant dense<0.000000e+00> : vector<8x8xf32>
    %336 = tpu.matmul %335, %324, %cst_123 {dimension_numbers = #tpu.dot_dimension_numbers<[1], [0], [0], [1], [0, 0, 1, 1], [], []>} : vector<8x8xf32>, vector<8x8xf32>, vector<8x8xf32> -> vector<8x8xf32>
    %337 = vector.extract_strided_slice %306 {offsets = [0, 16], sizes = [8, 8], strides = [1, 1]} : vector<8x96xf32> to vector<8x8xf32>
    %338 = vector.extract_strided_slice %306 {offsets = [0, 48], sizes = [8, 8], strides = [1, 1]} : vector<8x96xf32> to vector<8x8xf32>
    %339 = vector.extract_strided_slice %306 {offsets = [0, 80], sizes = [8, 8], strides = [1, 1]} : vector<8x96xf32> to vector<8x8xf32>
    %340 = tpu.transpose %338, [1, 0] : vector<8x8xf32> -> vector<8x8xf32>
    %cst_124 = arith.constant dense<0.000000e+00> : vector<8x8xf32>
    %341 = tpu.matmul %337, %340, %cst_124 {dimension_numbers = #tpu.dot_dimension_numbers<[1], [0], [0], [1], [0, 0, 1, 1], [], []>} : vector<8x8xf32>, vector<8x8xf32>, vector<8x8xf32> -> vector<8x8xf32>
    %cst_125 = arith.constant dense<0xFF800000> : vector<8xf32>
    %342 = vector.multi_reduction <maximumf>, %341, %cst_125 [1] : vector<8x8xf32> to vector<8xf32>
    %343 = vector.shape_cast %342 : vector<8xf32> to vector<8x1xf32>
    %344 = vector.broadcast %343 : vector<8x1xf32> to vector<8x8xf32>
    %345 = arith.subf %341, %344 : vector<8x8xf32>
    %346 = math.exp %345 : vector<8x8xf32>
    %cst_126 = arith.constant dense<0.000000e+00> : vector<8xf32>
    %347 = vector.multi_reduction <add>, %346, %cst_126 [1] : vector<8x8xf32> to vector<8xf32>
    %348 = vector.shape_cast %347 : vector<8xf32> to vector<8x1xf32>
    %349 = vector.broadcast %348 : vector<8x1xf32> to vector<8x8xf32>
    %350 = arith.divf %346, %349 : vector<8x8xf32>
    %cst_127 = arith.constant dense<0.000000e+00> : vector<8x8xf32>
    %351 = tpu.matmul %350, %339, %cst_127 {dimension_numbers = #tpu.dot_dimension_numbers<[1], [0], [0], [1], [0, 0, 1, 1], [], []>} : vector<8x8xf32>, vector<8x8xf32>, vector<8x8xf32> -> vector<8x8xf32>
    %352 = vector.extract_strided_slice %306 {offsets = [0, 24], sizes = [8, 8], strides = [1, 1]} : vector<8x96xf32> to vector<8x8xf32>
    %353 = vector.extract_strided_slice %306 {offsets = [0, 56], sizes = [8, 8], strides = [1, 1]} : vector<8x96xf32> to vector<8x8xf32>
    %354 = vector.extract_strided_slice %306 {offsets = [0, 88], sizes = [8, 8], strides = [1, 1]} : vector<8x96xf32> to vector<8x8xf32>
    %355 = tpu.transpose %353, [1, 0] : vector<8x8xf32> -> vector<8x8xf32>
    %cst_128 = arith.constant dense<0.000000e+00> : vector<8x8xf32>
    %356 = tpu.matmul %352, %355, %cst_128 {dimension_numbers = #tpu.dot_dimension_numbers<[1], [0], [0], [1], [0, 0, 1, 1], [], []>} : vector<8x8xf32>, vector<8x8xf32>, vector<8x8xf32> -> vector<8x8xf32>
    %cst_129 = arith.constant dense<0xFF800000> : vector<8xf32>
    %357 = vector.multi_reduction <maximumf>, %356, %cst_129 [1] : vector<8x8xf32> to vector<8xf32>
    %358 = vector.shape_cast %357 : vector<8xf32> to vector<8x1xf32>
    %359 = vector.broadcast %358 : vector<8x1xf32> to vector<8x8xf32>
    %360 = arith.subf %356, %359 : vector<8x8xf32>
    %361 = math.exp %360 : vector<8x8xf32>
    %cst_130 = arith.constant dense<0.000000e+00> : vector<8xf32>
    %362 = vector.multi_reduction <add>, %361, %cst_130 [1] : vector<8x8xf32> to vector<8xf32>
    %363 = vector.shape_cast %362 : vector<8xf32> to vector<8x1xf32>
    %364 = vector.broadcast %363 : vector<8x1xf32> to vector<8x8xf32>
    %365 = arith.divf %361, %364 : vector<8x8xf32>
    %cst_131 = arith.constant dense<0.000000e+00> : vector<8x8xf32>
    %366 = tpu.matmul %365, %354, %cst_131 {dimension_numbers = #tpu.dot_dimension_numbers<[1], [0], [0], [1], [0, 0, 1, 1], [], []>} : vector<8x8xf32>, vector<8x8xf32>, vector<8x8xf32> -> vector<8x8xf32>
    %367 = arith.addf %320, %335 : vector<8x8xf32>
    %368 = arith.addf %367, %350 : vector<8x8xf32>
    %369 = arith.addf %368, %365 : vector<8x8xf32>
    %cst_132 = arith.constant 2.500000e-01 : f32
    %370 = vector.broadcast %cst_132 : f32 to vector<8x8xf32>
    %371 = arith.mulf %369, %370 : vector<8x8xf32>
    %c1_133 = arith.constant 1 : index
    %c1_134 = arith.constant 1 : index
    %c0_135 = arith.constant 0 : index
    %c0_136 = arith.constant 0 : index
    %372 = vector.load %arg16[%c1_133, %c1_134, %c0_135, %c0_136] : memref<2x2x8x8xf32, #tpu.memory_space<vmem>>, vector<1x1x8x8xf32>
    %373 = vector.shape_cast %372 : vector<1x1x8x8xf32> to vector<8x8xf32>
    %374 = vector.shape_cast %371 : vector<8x8xf32> to vector<1x1x8x8xf32>
    tpu.vector_store %arg16[%c1_133, %c1_134, %c0_135, %c0_136], %374 {strides = array<i32>} : memref<2x2x8x8xf32, #tpu.memory_space<vmem>>, vector<1x1x8x8xf32>,
    %375 = tpu.concatenate %321, %336, %351, %366 in 1 : vector<8x8xf32>, vector<8x8xf32>, vector<8x8xf32>, vector<8x8xf32> -> vector<8x32xf32>
    %376 = tpu.concatenate %305, %375 in 0 : vector<8x32xf32>, vector<8x32xf32> -> vector<16x32xf32>
    %cst_137 = arith.constant dense<0.000000e+00> : vector<16x32xf32>
    %377 = tpu.matmul %376, %7, %cst_137 {dimension_numbers = #tpu.dot_dimension_numbers<[1], [0], [0], [1], [0, 0, 1, 1], [], []>} : vector<16x32xf32>, vector<32x32xf32>, vector<16x32xf32> -> vector<16x32xf32>
    %378 = vector.broadcast %8 : vector<1x32xf32> to vector<16x32xf32>
    %379 = arith.addf %377, %378 : vector<16x32xf32>
    %c0_138 = arith.constant 0 : index
    %c0_139 = arith.constant 0 : index
    %c0_140 = arith.constant 0 : index
    %380 = vector.load %arg2[%c0_138, %c0_139, %c0_140] : memref<2x8x8xf32, #tpu.memory_space<vmem>>, vector<1x8x8xf32>
    %381 = vector.shape_cast %380 : vector<1x8x8xf32> to vector<8x8xf32>
    %382 = vector.extract_strided_slice %379 {offsets = [0, 0], sizes = [8, 32], strides = [1, 1]} : vector<16x32xf32> to vector<8x32xf32>
    %cst_141 = arith.constant dense<0.000000e+00> : vector<8x32xf32>
    %383 = tpu.matmul %381, %382, %cst_141 {dimension_numbers = #tpu.dot_dimension_numbers<[1], [0], [0], [1], [0, 0, 1, 1], [], []>} : vector<8x8xf32>, vector<8x32xf32>, vector<8x32xf32> -> vector<8x32xf32>
    %c1_142 = arith.constant 1 : index
    %c0_143 = arith.constant 0 : index
    %c0_144 = arith.constant 0 : index
    %384 = vector.load %arg2[%c1_142, %c0_143, %c0_144] : memref<2x8x8xf32, #tpu.memory_space<vmem>>, vector<1x8x8xf32>
    %385 = vector.shape_cast %384 : vector<1x8x8xf32> to vector<8x8xf32>
    %386 = vector.extract_strided_slice %379 {offsets = [8, 0], sizes = [8, 32], strides = [1, 1]} : vector<16x32xf32> to vector<8x32xf32>
    %cst_145 = arith.constant dense<0.000000e+00> : vector<8x32xf32>
    %387 = tpu.matmul %385, %386, %cst_145 {dimension_numbers = #tpu.dot_dimension_numbers<[1], [0], [0], [1], [0, 0, 1, 1], [], []>} : vector<8x8xf32>, vector<8x32xf32>, vector<8x32xf32> -> vector<8x32xf32>
    %388 = tpu.concatenate %383, %387 in 0 : vector<8x32xf32>, vector<8x32xf32> -> vector<16x32xf32>
    %389 = arith.addf %232, %388 : vector<16x32xf32>
    %cst_146 = arith.constant dense<0.000000e+00> : vector<16xf32>
    %390 = vector.multi_reduction <add>, %389, %cst_146 [1] : vector<16x32xf32> to vector<16xf32>
    %391 = vector.shape_cast %390 : vector<16xf32> to vector<16x1xf32>
    %cst_147 = arith.constant 3.200000e+01 : f32
    %392 = vector.broadcast %cst_147 : f32 to vector<16x1xf32>
    %393 = arith.divf %391, %392 : vector<16x1xf32>
    %394 = vector.broadcast %393 : vector<16x1xf32> to vector<16x32xf32>
    %395 = arith.subf %389, %394 : vector<16x32xf32>
    %396 = arith.mulf %395, %395 : vector<16x32xf32>
    %cst_148 = arith.constant dense<0.000000e+00> : vector<16xf32>
    %397 = vector.multi_reduction <add>, %396, %cst_148 [1] : vector<16x32xf32> to vector<16xf32>
    %398 = vector.shape_cast %397 : vector<16xf32> to vector<16x1xf32>
    %cst_149 = arith.constant 3.200000e+01 : f32
    %399 = vector.broadcast %cst_149 : f32 to vector<16x1xf32>
    %400 = arith.divf %398, %399 : vector<16x1xf32>
    %401 = vector.broadcast %393 : vector<16x1xf32> to vector<16x32xf32>
    %402 = arith.subf %389, %401 : vector<16x32xf32>
    %cst_150 = arith.constant 9.99999974E-6 : f32
    %403 = vector.broadcast %cst_150 : f32 to vector<16x1xf32>
    %404 = arith.addf %400, %403 : vector<16x1xf32>
    %405 = math.rsqrt %404 : vector<16x1xf32>
    %406 = vector.broadcast %405 : vector<16x1xf32> to vector<16x32xf32>
    %407 = arith.mulf %402, %406 : vector<16x32xf32>
    %408 = vector.broadcast %13 : vector<1x32xf32> to vector<16x32xf32>
    %409 = arith.mulf %407, %408 : vector<16x32xf32>
    %410 = vector.broadcast %14 : vector<1x32xf32> to vector<16x32xf32>
    %411 = arith.addf %409, %410 : vector<16x32xf32>
    %cst_151 = arith.constant dense<0.000000e+00> : vector<16x32xf32>
    %412 = tpu.matmul %411, %9, %cst_151 {dimension_numbers = #tpu.dot_dimension_numbers<[1], [0], [0], [1], [0, 0, 1, 1], [], []>} : vector<16x32xf32>, vector<32x32xf32>, vector<16x32xf32> -> vector<16x32xf32>
    %413 = vector.broadcast %10 : vector<1x32xf32> to vector<16x32xf32>
    %414 = arith.addf %412, %413 : vector<16x32xf32>
    %cst_152 = arith.constant 5.000000e-01 : f32
    %415 = vector.broadcast %cst_152 : f32 to vector<16x32xf32>
    %416 = arith.mulf %415, %414 : vector<16x32xf32>
    %cst_153 = arith.constant 0.707106769 : f32
    %417 = vector.broadcast %cst_153 : f32 to vector<16x32xf32>
    %418 = arith.mulf %414, %417 : vector<16x32xf32>
    %419 = math.erf %418 : vector<16x32xf32>
    %cst_154 = arith.constant 1.000000e+00 : f32
    %420 = vector.broadcast %cst_154 : f32 to vector<16x32xf32>
    %421 = arith.addf %420, %419 : vector<16x32xf32>
    %422 = arith.mulf %416, %421 : vector<16x32xf32>
    %cst_155 = arith.constant dense<0.000000e+00> : vector<16x32xf32>
    %423 = tpu.matmul %422, %11, %cst_155 {dimension_numbers = #tpu.dot_dimension_numbers<[1], [0], [0], [1], [0, 0, 1, 1], [], []>} : vector<16x32xf32>, vector<32x32xf32>, vector<16x32xf32> -> vector<16x32xf32>
    %424 = vector.broadcast %12 : vector<1x32xf32> to vector<16x32xf32>
    %425 = arith.addf %423, %424 : vector<16x32xf32>
    %426 = arith.addf %411, %425 : vector<16x32xf32>
    %cst_156 = arith.constant dense<0.000000e+00> : vector<16xf32>
    %427 = vector.multi_reduction <add>, %426, %cst_156 [1] : vector<16x32xf32> to vector<16xf32>
    %428 = vector.shape_cast %427 : vector<16xf32> to vector<16x1xf32>
    %cst_157 = arith.constant 3.200000e+01 : f32
    %429 = vector.broadcast %cst_157 : f32 to vector<16x1xf32>
    %430 = arith.divf %428, %429 : vector<16x1xf32>
    %431 = vector.broadcast %430 : vector<16x1xf32> to vector<16x32xf32>
    %432 = arith.subf %426, %431 : vector<16x32xf32>
    %433 = arith.mulf %432, %432 : vector<16x32xf32>
    %cst_158 = arith.constant dense<0.000000e+00> : vector<16xf32>
    %434 = vector.multi_reduction <add>, %433, %cst_158 [1] : vector<16x32xf32> to vector<16xf32>
    %435 = vector.shape_cast %434 : vector<16xf32> to vector<16x1xf32>
    %cst_159 = arith.constant 3.200000e+01 : f32
    %436 = vector.broadcast %cst_159 : f32 to vector<16x1xf32>
    %437 = arith.divf %435, %436 : vector<16x1xf32>
    %438 = vector.broadcast %430 : vector<16x1xf32> to vector<16x32xf32>
    %439 = arith.subf %426, %438 : vector<16x32xf32>
    %cst_160 = arith.constant 9.99999974E-6 : f32
    %440 = vector.broadcast %cst_160 : f32 to vector<16x1xf32>
    %441 = arith.addf %437, %440 : vector<16x1xf32>
    %442 = math.rsqrt %441 : vector<16x1xf32>
    %443 = vector.broadcast %442 : vector<16x1xf32> to vector<16x32xf32>
    %444 = arith.mulf %439, %443 : vector<16x32xf32>
    %445 = vector.broadcast %15 : vector<1x32xf32> to vector<16x32xf32>
    %446 = arith.mulf %444, %445 : vector<16x32xf32>
    %447 = vector.broadcast %16 : vector<1x32xf32> to vector<16x32xf32>
    %448 = arith.addf %446, %447 : vector<16x32xf32>
    %449 = vector.extract_strided_slice %448 {offsets = [0, 0], sizes = [8, 32], strides = [1, 1]} : vector<16x32xf32> to vector<8x32xf32>
    %c0_161 = arith.constant 0 : index
    %c0_162 = arith.constant 0 : index
    %c0_163 = arith.constant 0 : index
    %450 = vector.load %arg15[%c0_161, %c0_162, %c0_163] : memref<2x8x32xf32, #tpu.memory_space<vmem>>, vector<1x8x32xf32>
    %451 = vector.shape_cast %450 : vector<1x8x32xf32> to vector<8x32xf32>
    %452 = vector.shape_cast %449 : vector<8x32xf32> to vector<1x8x32xf32>
    tpu.vector_store %arg15[%c0_161, %c0_162, %c0_163], %452 {strides = array<i32>} : memref<2x8x32xf32, #tpu.memory_space<vmem>>, vector<1x8x32xf32>,
    %453 = vector.extract_strided_slice %448 {offsets = [8, 0], sizes = [8, 32], strides = [1, 1]} : vector<16x32xf32> to vector<8x32xf32>
    %c1_164 = arith.constant 1 : index
    %c0_165 = arith.constant 0 : index
    %c0_166 = arith.constant 0 : index
    %454 = vector.load %arg15[%c1_164, %c0_165, %c0_166] : memref<2x8x32xf32, #tpu.memory_space<vmem>>, vector<1x8x32xf32>
    %455 = vector.shape_cast %454 : vector<1x8x32xf32> to vector<8x32xf32>
    %456 = vector.shape_cast %453 : vector<8x32xf32> to vector<1x8x32xf32>
    tpu.vector_store %arg15[%c1_164, %c0_165, %c0_166], %456 {strides = array<i32>} : memref<2x8x32xf32, #tpu.memory_space<vmem>>, vector<1x8x32xf32>,
    return
  }
  func.func @transform_0(%arg0: i32) -> (i32, i32, i32) {
    %c0_i32 = arith.constant 0 : i32
    %c0_i32_0 = arith.constant 0 : i32
    %c0_i32_1 = arith.constant 0 : i32
    return %arg0, %c0_i32, %c0_i32_0 : i32, i32, i32
  }
  func.func @transform_1(%arg0: i32) -> (i32, i32, i32) {
    %c0_i32 = arith.constant 0 : i32
    %c0_i32_0 = arith.constant 0 : i32
    %c0_i32_1 = arith.constant 0 : i32
    return %arg0, %c0_i32, %c0_i32_0 : i32, i32, i32
  }
  func.func @transform_2(%arg0: i32) -> (i32, i32) {
    %c0_i32 = arith.constant 0 : i32
    %c0_i32_0 = arith.constant 0 : i32
    %c0_i32_1 = arith.constant 0 : i32
    return %c0_i32, %c0_i32_0 : i32, i32
  }
  func.func @transform_3(%arg0: i32) -> (i32, i32) {
    %c0_i32 = arith.constant 0 : i32
    %c0_i32_0 = arith.constant 0 : i32
    %c0_i32_1 = arith.constant 0 : i32
    return %c0_i32, %c0_i32_0 : i32, i32
  }
  func.func @transform_4(%arg0: i32) -> (i32, i32) {
    %c0_i32 = arith.constant 0 : i32
    %c0_i32_0 = arith.constant 0 : i32
    %c0_i32_1 = arith.constant 0 : i32
    return %c0_i32, %c0_i32_0 : i32, i32
  }
  func.func @transform_5(%arg0: i32) -> (i32, i32) {
    %c0_i32 = arith.constant 0 : i32
    %c0_i32_0 = arith.constant 0 : i32
    %c0_i32_1 = arith.constant 0 : i32
    return %c0_i32, %c0_i32_0 : i32, i32
  }
  func.func @transform_6(%arg0: i32) -> (i32, i32) {
    %c0_i32 = arith.constant 0 : i32
    %c0_i32_0 = arith.constant 0 : i32
    %c0_i32_1 = arith.constant 0 : i32
    return %c0_i32, %c0_i32_0 : i32, i32
  }
  func.func @transform_7(%arg0: i32) -> (i32, i32) {
    %c0_i32 = arith.constant 0 : i32
    %c0_i32_0 = arith.constant 0 : i32
    %c0_i32_1 = arith.constant 0 : i32
    return %c0_i32, %c0_i32_0 : i32, i32
  }
  func.func @transform_8(%arg0: i32) -> (i32, i32) {
    %c0_i32 = arith.constant 0 : i32
    %c0_i32_0 = arith.constant 0 : i32
    %c0_i32_1 = arith.constant 0 : i32
    return %c0_i32, %c0_i32_0 : i32, i32
  }
  func.func @transform_9(%arg0: i32) -> (i32, i32) {
    %c0_i32 = arith.constant 0 : i32
    %c0_i32_0 = arith.constant 0 : i32
    %c0_i32_1 = arith.constant 0 : i32
    return %c0_i32, %c0_i32_0 : i32, i32
  }
  func.func @transform_10(%arg0: i32) -> (i32, i32) {
    %c0_i32 = arith.constant 0 : i32
    %c0_i32_0 = arith.constant 0 : i32
    %c0_i32_1 = arith.constant 0 : i32
    return %c0_i32, %c0_i32_0 : i32, i32
  }
  func.func @transform_11(%arg0: i32) -> (i32, i32) {
    %c0_i32 = arith.constant 0 : i32
    %c0_i32_0 = arith.constant 0 : i32
    %c0_i32_1 = arith.constant 0 : i32
    return %c0_i32, %c0_i32_0 : i32, i32
  }
  func.func @transform_12(%arg0: i32) -> (i32, i32) {
    %c0_i32 = arith.constant 0 : i32
    %c0_i32_0 = arith.constant 0 : i32
    %c0_i32_1 = arith.constant 0 : i32
    return %c0_i32, %c0_i32_0 : i32, i32
  }
  func.func @transform_13(%arg0: i32) -> (i32, i32) {
    %c0_i32 = arith.constant 0 : i32
    %c0_i32_0 = arith.constant 0 : i32
    %c0_i32_1 = arith.constant 0 : i32
    return %c0_i32, %c0_i32_0 : i32, i32
  }
  func.func @transform_14(%arg0: i32) -> (i32, i32, i32) {
    %c0_i32 = arith.constant 0 : i32
    %c0_i32_0 = arith.constant 0 : i32
    %c0_i32_1 = arith.constant 0 : i32
    return %arg0, %c0_i32, %c0_i32_0 : i32, i32, i32
  }
  func.func @transform_15(%arg0: i32) -> (i32, i32, i32, i32) {
    %c0_i32 = arith.constant 0 : i32
    %c0_i32_0 = arith.constant 0 : i32
    %c0_i32_1 = arith.constant 0 : i32
    %c0_i32_2 = arith.constant 0 : i32
    return %c0_i32, %arg0, %c0_i32_0, %c0_i32_1 : i32, i32, i32, i32
  }
}

</mosaic_0001>

<llo_original>
// kernel: transformer_encoder.1
$region0: #{transformer_encoder.1}
  #allocation0 [shape = 'u32[]', space=smem, size = 0x4, offset = 0x4, fixed_abs, tag = 'smem constant byte address 0x4 - core index']
  #allocation1 [shape = 'u32[144,128]{1,0:T(1,128)}', space=vmem, size = 0x12000, scoped, tag = 'internal scratch']
  %s0 = inlined_call_operand.vmem [shape: f32[2,8,32], index: 0, kind: input, shape index: {}]
  %s1 = inlined_call_operand.vmem [shape: f32[2,8,8], index: 1, kind: input, shape index: {}]
  %s2 = inlined_call_operand.vmem [shape: f32[32,96], index: 2, kind: input, shape index: {}]
  %s3 = inlined_call_operand.vmem [shape: f32[1,96], index: 3, kind: input, shape index: {}]
  %s4 = inlined_call_operand.vmem [shape: f32[32,32], index: 4, kind: input, shape index: {}]
  %s5 = inlined_call_operand.vmem [shape: f32[1,32], index: 5, kind: input, shape index: {}]
  %s6 = inlined_call_operand.vmem [shape: f32[32,32], index: 6, kind: input, shape index: {}]
  %s7 = inlined_call_operand.vmem [shape: f32[1,32], index: 7, kind: input, shape index: {}]
  %s8 = inlined_call_operand.vmem [shape: f32[32,32], index: 8, kind: input, shape index: {}]
  %s9 = inlined_call_operand.vmem [shape: f32[1,32], index: 9, kind: input, shape index: {}]
  %s10 = inlined_call_operand.vmem [shape: f32[1,32], index: 10, kind: input, shape index: {}]
  %s11 = inlined_call_operand.vmem [shape: f32[1,32], index: 11, kind: input, shape index: {}]
  %s12 = inlined_call_operand.vmem [shape: f32[1,32], index: 12, kind: input, shape index: {}]
  %s13 = inlined_call_operand.vmem [shape: f32[1,32], index: 13, kind: input, shape index: {}]
  %s14 = inlined_call_operand.hbm [shape: f32[2,8,32], index: 14, kind: output, shape index: {0}]
  %s15 = inlined_call_operand.hbm [shape: f32[2,2,8,8], index: 15, kind: output, shape index: {1}]
  %16 = xla_tuple %s14, %s15
  %s17 = sld [smem:[#allocation0]]
  $region74: #{transformer_encoder.1} parent=0
    _
  %s19 = ssub.s32 1, %s17
  %s20 = scalar_select 0, %s19, %s17
  $region1: #{transformer_encoder.1} parent=0
    #allocation2 [shape = 'u8[8192]{0}', space=vmem, size = 0x2000, scoped, tag = 'output window, operand 0, single buffered']
    #allocation3 [shape = 's32[1]{0}', space=sflag, size = 0x4, scoped, tag = 'scoped memory for transformer_encoder.1']
    #allocation4 [shape = 'u8[16384]{0}', space=vmem, size = 0x4000, scoped, tag = 'output window, operand 1, single buffered']
    #allocation5 [shape = 's32[1]{0}', space=sflag, size = 0x4, scoped, tag = 'scoped memory for transformer_encoder.1']
    %21 = vsyncpa [#allocation3], 0
    %22 = vsyncpa [#allocation5], 0
    // Predicated region
    $region2: #{transformer_encoder.1} parent=1 // pred_check
      _
    $region3: #{transformer_encoder.1} parent=1 // pred_check_branch
      %24 = sbr.rel (0) target = $region5
    $region4: #{transformer_encoder.1} parent=1 // pred_region
      _
    $region5: #{transformer_encoder.1} parent=1 // pred_fallthru
      _
    // Predicated region
    $region6: #{transformer_encoder.1} parent=1 // pred_check
      _
    $region7: #{transformer_encoder.1} parent=1 // pred_check_branch
      %26 = sbr.rel (0) target = $region9
    $region8: #{transformer_encoder.1} parent=1 // pred_region
      _
    $region9: #{transformer_encoder.1} parent=1 // pred_fallthru
      _
    // Predicated region
    $region10: #{transformer_encoder.1} parent=1 // pred_check
      _
    $region11: #{transformer_encoder.1} parent=1 // pred_check_branch
      %28 = sbr.rel (0) target = $region13
    $region12: #{transformer_encoder.1} parent=1 // pred_region
      _
    $region13: #{transformer_encoder.1} parent=1 // pred_fallthru
      _
    // Predicated region
    $region14: #{transformer_encoder.1} parent=1 // pred_check
      _
    $region15: #{transformer_encoder.1} parent=1 // pred_check_branch
      %30 = sbr.rel (0) target = $region17
    $region16: #{transformer_encoder.1} parent=1 // pred_region
      _
    $region17: #{transformer_encoder.1} parent=1 // pred_fallthru
      _
    // Predicated region
    $region18: #{transformer_encoder.1} parent=1 // pred_check
      _
    $region19: #{transformer_encoder.1} parent=1 // pred_check_branch
      %32 = sbr.rel (0) target = $region21
    $region20: #{transformer_encoder.1} parent=1 // pred_region
      _
    $region21: #{transformer_encoder.1} parent=1 // pred_fallthru
      _
    // Predicated region
    $region22: #{transformer_encoder.1} parent=1 // pred_check
      _
    $region23: #{transformer_encoder.1} parent=1 // pred_check_branch
      %34 = sbr.rel (0) target = $region25
    $region24: #{transformer_encoder.1} parent=1 // pred_region
      _
    $region25: #{transformer_encoder.1} parent=1 // pred_fallthru
      _
    // Predicated region
    $region26: #{transformer_encoder.1} parent=1 // pred_check
      _
    $region27: #{transformer_encoder.1} parent=1 // pred_check_branch
      %36 = sbr.rel (0) target = $region29
    $region28: #{transformer_encoder.1} parent=1 // pred_region
      _
    $region29: #{transformer_encoder.1} parent=1 // pred_fallthru
      _
    // Predicated region
    $region30: #{transformer_encoder.1} parent=1 // pred_check
      _
    $region31: #{transformer_encoder.1} parent=1 // pred_check_branch
      %38 = sbr.rel (0) target = $region33
    $region32: #{transformer_encoder.1} parent=1 // pred_region
      _
    $region33: #{transformer_encoder.1} parent=1 // pred_fallthru
      _
    // Predicated region
    $region34: #{transformer_encoder.1} parent=1 // pred_check
      _
    $region35: #{transformer_encoder.1} parent=1 // pred_check_branch
      %40 = sbr.rel (0) target = $region37
    $region36: #{transformer_encoder.1} parent=1 // pred_region
      _
    $region37: #{transformer_encoder.1} parent=1 // pred_fallthru
      _
    // Predicated region
    $region38: #{transformer_encoder.1} parent=1 // pred_check
      _
    $region39: #{transformer_encoder.1} parent=1 // pred_check_branch
      %42 = sbr.rel (0) target = $region41
    $region40: #{transformer_encoder.1} parent=1 // pred_region
      _
    $region41: #{transformer_encoder.1} parent=1 // pred_fallthru
      _
    // Predicated region
    $region42: #{transformer_encoder.1} parent=1 // pred_check
      _
    $region43: #{transformer_encoder.1} parent=1 // pred_check_branch
      %44 = sbr.rel (0) target = $region45
    $region44: #{transformer_encoder.1} parent=1 // pred_region
      _
    $region45: #{transformer_encoder.1} parent=1 // pred_fallthru
      _
    // Predicated region
    $region46: #{transformer_encoder.1} parent=1 // pred_check
      _
    $region47: #{transformer_encoder.1} parent=1 // pred_check_branch
      %46 = sbr.rel (0) target = $region49
    $region48: #{transformer_encoder.1} parent=1 // pred_region
      _
    $region49: #{transformer_encoder.1} parent=1 // pred_fallthru
      _
    // Predicated region
    $region50: #{transformer_encoder.1} parent=1 // pred_check
      _
    $region51: #{transformer_encoder.1} parent=1 // pred_check_branch
      %48 = sbr.rel (0) target = $region53
    $region52: #{transformer_encoder.1} parent=1 // pred_region
      _
    $region53: #{transformer_encoder.1} parent=1 // pred_fallthru
      _
    // Predicated region
    $region54: #{transformer_encoder.1} parent=1 // pred_check
      _
    $region55: #{transformer_encoder.1} parent=1 // pred_check_branch
      %50 = sbr.rel (0) target = $region57
    $region56: #{transformer_encoder.1} parent=1 // pred_region
      _
    $region57: #{transformer_encoder.1} parent=1 // pred_fallthru
      _
    %v51 = vld [vmem:[%s0] sm:$0xff]
    %s52 = scalar_lea.vmem %s0, 8
    %v53 = vld [vmem:[%s52] sm:$0xff]
    %v54 = vld [vmem:[%s2] sm:$0xff]
    %v55 = vld [vmem:[%s2 + $0x8] sm:$0xff]
    %v56 = vld [vmem:[%s2 + $0x10] sm:$0xff]
    %v57 = vld [vmem:[%s2 + $0x18] sm:$0xff]
    %v58 = vld [vmem:[%s3] sm:$0x1]
    %v59 = vld [vmem:[%s4] sm:$0xff]
    %v60 = vld [vmem:[%s4 + $0x8] sm:$0xff]
    %v61 = vld [vmem:[%s4 + $0x10] sm:$0xff]
    %v62 = vld [vmem:[%s4 + $0x18] sm:$0xff]
    %v63 = vld [vmem:[%s5] sm:$0x1]
    %v64 = vld [vmem:[%s6] sm:$0xff]
    %v65 = vld [vmem:[%s6 + $0x8] sm:$0xff]
    %v66 = vld [vmem:[%s6 + $0x10] sm:$0xff]
    %v67 = vld [vmem:[%s6 + $0x18] sm:$0xff]
    %v68 = vld [vmem:[%s7] sm:$0x1]
    %v69 = vld [vmem:[%s8] sm:$0xff]
    %v70 = vld [vmem:[%s8 + $0x8] sm:$0xff]
    %v71 = vld [vmem:[%s8 + $0x10] sm:$0xff]
    %v72 = vld [vmem:[%s8 + $0x18] sm:$0xff]
    %v73 = vld [vmem:[%s9] sm:$0x1]
    %v74 = vld [vmem:[%s10] sm:$0x1]
    %v75 = vld [vmem:[%s11] sm:$0x1]
    %v76 = vld [vmem:[%s12] sm:$0x1]
    %v77 = vld [vmem:[%s13] sm:$0x1]
    %v79 = vlaneseq
    %v80 = vshrl.u32 %v79, 7
    %v81 = vsub.s32 0, %v80
    %v82 = vrot.slane %v58, %v81
    %vm84 = vcmask 261120
    %v86 = vsel %vm84, %v51, 0
    %v89 = vsel %vm84, %v53, 0
    %91 = vmatprep.subr.mxu0 0.0
    %92 = vmatpush1.msra.mxu0 %v54
    %93 = vmatprep.subr.mxu0 0.0
    %94 = vmatpush1.msra.mxu0 %v55
    %95 = vmatprep.subr.mxu0 0.0
    %96 = vmatpush1.msra.mxu0 %v56
    %97 = vmatprep.subr.mxu0 0.0
    %98 = vmatpush1.msra.mxu0 %v57
    %99 = vmatprep.subr.mxu0 0.0
    %100 = vmatpush1.msra.mxu0 0.0
    %101 = vmatprep.subr.mxu0 0.0
    %102 = vmatpush1.msra.mxu0 0.0
    %103 = vmatprep.subr.mxu0 0.0
    %104 = vmatpush1.msra.mxu0 0.0
    %105 = vmatprep.subr.mxu0 0.0
    %106 = vmatpush1.msra.mxu0 0.0
    %107 = vmatprep.subr.mxu0 0.0
    %108 = vmatpush1.msra.mxu0 0.0
    %109 = vmatprep.subr.mxu0 0.0
    %110 = vmatpush1.msra.mxu0 0.0
    %111 = vmatprep.subr.mxu0 0.0
    %112 = vmatpush1.msra.mxu0 0.0
    %113 = vmatprep.subr.mxu0 0.0
    %114 = vmatpush1.msra.mxu0 0.0
    %115 = vmatprep.subr.mxu0 0.0
    %116 = vmatpush1.msra.mxu0 0.0
    %117 = vmatprep.subr.mxu0 0.0
    %118 = vmatpush1.msra.mxu0 0.0
    %119 = vmatprep.subr.mxu0 0.0
    %120 = vmatpush1.msra.mxu0 0.0
    %121 = vmatprep.subr.mxu0 0.0
    %122 = vmatpush1.msra.mxu0 0.0
    %123 = vmatprep.subr.mxu0 0.0
    %124 = vmatpush1.msra.mxu0 0.0
    %125 = vmatprep.subr.mxu0 0.0
    %126 = vmatpush1.msra.mxu0 0.0
    %127 = vmatprep.subr.mxu0 0.0
    %128 = vmatpush1.msra.mxu0 0.0
    %129 = vmatprep.subr.mxu0 0.0
    %130 = vmatpush1.msra.mxu0 0.0
    %131 = vmatprep.subr.mxu0 0.0
    %132 = vmatpush1.msra.mxu0 0.0
    %133 = vmatprep.subr.mxu0 0.0
    %134 = vmatpush1.msra.mxu0 0.0
    %135 = vmatprep.subr.mxu0 0.0
    %136 = vmatpush1.msra.mxu0 0.0
    %137 = vmatprep.subr.mxu0 0.0
    %138 = vmatpush1.msra.mxu0 0.0
    %139 = vmatprep.subr.mxu0 0.0
    %140 = vmatpush1.msra.mxu0 0.0
    %141 = vmatprep.subr.mxu0 0.0
    %142 = vmatpush1.msra.mxu0 0.0
    %143 = vmatprep.subr.mxu0 0.0
    %144 = vmatpush1.msra.mxu0 0.0
    %145 = vmatprep.subr.mxu0 0.0
    %146 = vmatpush1.msra.mxu0 0.0
    %147 = vmatprep.subr.mxu0 0.0
    %148 = vmatpush1.msra.mxu0 0.0
    %149 = vmatprep.subr.mxu0 0.0
    %150 = vmatpush1.msra.mxu0 0.0
    %151 = vmatprep.subr.mxu0 0.0
    %152 = vmatpush1.msra.mxu0 0.0
    %153 = vmatprep.subr.mxu0 0.0
    %154 = vmatpush1.msra.mxu0 0.0
    %155 = vmatprep.mubr.f32.mxu0 0.0
    %156 = vmatmul.mubr.f32.gmra.mrb[0].mxu0 %v86
    %v157 = vpop.f32.mrb[0].mxu0
    %v158 = vadd.f32 %v82, %v157
    %v159 = vpop.f32.mrb[0].mxu0
    %160 = vmatprep.mubr.f32.mxu0 0.0
    %161 = vmatmul.mubr.f32.gmra.mrb[0].mxu0 %v89
    %v162 = vpop.f32.mrb[0].mxu0
    %v163 = vadd.f32 %v82, %v162
    %v164 = vpop.f32.mrb[0].mxu0
    %165 = vdwg.mxu0
    %167 = vrot.lane.b32.xlu0 %v158, 96
    %v168 = vpop.permute.xlu0 %167
    %vm169 = vcmask 64512
    %v170 = vsel %vm169, %v158, 0
    %v172 = vsel %vm169, %v168, 0
    %174 = vmatprep.subr.mxu0 0.0
    %175 = vmatpush1.xpose.msra.mxu0 %v172
    %176 = vmatprep.subr.mxu0 0.0
    %177 = vmatpush1.xpose.msra.mxu0 0.0
    %178 = vmatprep.subr.mxu0 0.0
    %179 = vmatpush1.xpose.msra.mxu0 0.0
    %180 = vmatprep.subr.mxu0 0.0
    %181 = vmatpush1.xpose.msra.mxu0 0.0
    %182 = vmatprep.subr.mxu0 0.0
    %183 = vmatpush1.xpose.msra.mxu0 0.0
    %184 = vmatprep.subr.mxu0 0.0
    %185 = vmatpush1.xpose.msra.mxu0 0.0
    %186 = vmatprep.subr.mxu0 0.0
    %187 = vmatpush1.xpose.msra.mxu0 0.0
    %188 = vmatprep.subr.mxu0 0.0
    %189 = vmatpush1.xpose.msra.mxu0 0.0
    %190 = vmatprep.subr.mxu0 0.0
    %191 = vmatpush1.xpose.msra.mxu0 0.0
    %192 = vmatprep.subr.mxu0 0.0
    %193 = vmatpush1.xpose.msra.mxu0 0.0
    %194 = vmatprep.subr.mxu0 0.0
    %195 = vmatpush1.xpose.msra.mxu0 0.0
    %196 = vmatprep.subr.mxu0 0.0
    %197 = vmatpush1.xpose.msra.mxu0 0.0
    %198 = vmatprep.subr.mxu0 0.0
    %199 = vmatpush1.xpose.msra.mxu0 0.0
    %200 = vmatprep.subr.mxu0 0.0
    %201 = vmatpush1.xpose.msra.mxu0 0.0
    %202 = vmatprep.subr.mxu0 0.0
    %203 = vmatpush1.xpose.msra.mxu0 0.0
    %204 = vmatprep.subr.mxu0 0.0
    %205 = vmatpush1.xpose.msra.mxu0 0.0
    %206 = vmatprep.subr.mxu0 0.0
    %207 = vmatpush1.xpose.msra.mxu0 0.0
    %208 = vmatprep.subr.mxu0 0.0
    %209 = vmatpush1.xpose.msra.mxu0 0.0
    %210 = vmatprep.subr.mxu0 0.0
    %211 = vmatpush1.xpose.msra.mxu0 0.0
    %212 = vmatprep.subr.mxu0 0.0
    %213 = vmatpush1.xpose.msra.mxu0 0.0
    %214 = vmatprep.subr.mxu0 0.0
    %215 = vmatpush1.xpose.msra.mxu0 0.0
    %216 = vmatprep.subr.mxu0 0.0
    %217 = vmatpush1.xpose.msra.mxu0 0.0
    %218 = vmatprep.subr.mxu0 0.0
    %219 = vmatpush1.xpose.msra.mxu0 0.0
    %220 = vmatprep.subr.mxu0 0.0
    %221 = vmatpush1.xpose.msra.mxu0 0.0
    %222 = vmatprep.subr.mxu0 0.0
    %223 = vmatpush1.xpose.msra.mxu0 0.0
    %224 = vmatprep.subr.mxu0 0.0
    %225 = vmatpush1.xpose.msra.mxu0 0.0
    %226 = vmatprep.subr.mxu0 0.0
    %227 = vmatpush1.xpose.msra.mxu0 0.0
    %228 = vmatprep.subr.mxu0 0.0
    %229 = vmatpush1.xpose.msra.mxu0 0.0
    %230 = vmatprep.subr.mxu0 0.0
    %231 = vmatpush1.xpose.msra.mxu0 0.0
    %232 = vmatprep.subr.mxu0 0.0
    %233 = vmatpush1.xpose.msra.mxu0 0.0
    %234 = vmatprep.subr.mxu0 0.0
    %235 = vmatpush1.xpose.msra.mxu0 0.0
    %236 = vmatprep.subr.mxu0 0.0
    %237 = vmatpush1.xpose.msra.mxu0 0.0
    %238 = vmatprep.mubr.f32.mxu0 0.0
    %239 = vmatmul.mubr.f32.gmra.mrb[0].mxu0 %v170
    %v240 = vpop.f32.mrb[0].mxu0
    %v241 = vadd.f32 0.0, %v240
    %v242 = vpop.f32.mrb[0].mxu0
    %243 = vdwg.mxu0
    %v244 = vsel %vm169, %v241, -inf
    %245 = vmax.xlane.f32.xlu0 %v244
    %v246 = vpop.xlane.xlu0 %245
    %v247 = vsub.f32 %v241, %v246
    %v248 = vmul.f32 %v247, 1.442695
    %v249 = vpow.pop %v248
    %v250 = vsel %vm169, %v249, 0.0
    %251 = vadd.xlane.f32.xlu0 %v250
    %v252 = vpop.xlane.xlu0 %251
    %v253 = vrcp.pop %v252
    %v254 = vmul.f32 %v249, %v253
    %255 = vrot.lane.b32.xlu0 %v158, 64
    %v256 = vpop.permute.xlu0 %255
    %v259 = vsel %vm169, %v254, 0
    %261 = vmatprep.subr.mxu0 0.0
    %262 = vmatpush1.msra.mxu0 %v256
    %263 = vmatprep.subr.mxu0 0.0
    %264 = vmatpush1.msra.mxu0 0.0
    %265 = vmatprep.subr.mxu0 0.0
    %266 = vmatpush1.msra.mxu0 0.0
    %267 = vmatprep.subr.mxu0 0.0
    %268 = vmatpush1.msra.mxu0 0.0
    %269 = vmatprep.subr.mxu0 0.0
    %270 = vmatpush1.msra.mxu0 0.0
    %271 = vmatprep.subr.mxu0 0.0
    %272 = vmatpush1.msra.mxu0 0.0
    %273 = vmatprep.subr.mxu0 0.0
    %274 = vmatpush1.msra.mxu0 0.0
    %275 = vmatprep.subr.mxu0 0.0
    %276 = vmatpush1.msra.mxu0 0.0
    %277 = vmatprep.subr.mxu0 0.0
    %278 = vmatpush1.msra.mxu0 0.0
    %279 = vmatprep.subr.mxu0 0.0
    %280 = vmatpush1.msra.mxu0 0.0
    %281 = vmatprep.subr.mxu0 0.0
    %282 = vmatpush1.msra.mxu0 0.0
    %283 = vmatprep.subr.mxu0 0.0
    %284 = vmatpush1.msra.mxu0 0.0
    %285 = vmatprep.subr.mxu0 0.0
    %286 = vmatpush1.msra.mxu0 0.0
    %287 = vmatprep.subr.mxu0 0.0
    %288 = vmatpush1.msra.mxu0 0.0
    %289 = vmatprep.subr.mxu0 0.0
    %290 = vmatpush1.msra.mxu0 0.0
    %291 = vmatprep.subr.mxu0 0.0
    %292 = vmatpush1.msra.mxu0 0.0
    %293 = vmatprep.subr.mxu0 0.0
    %294 = vmatpush1.msra.mxu0 0.0
    %295 = vmatprep.subr.mxu0 0.0
    %296 = vmatpush1.msra.mxu0 0.0
    %297 = vmatprep.subr.mxu0 0.0
    %298 = vmatpush1.msra.mxu0 0.0
    %299 = vmatprep.subr.mxu0 0.0
    %300 = vmatpush1.msra.mxu0 0.0
    %301 = vmatprep.subr.mxu0 0.0
    %302 = vmatpush1.msra.mxu0 0.0
    %303 = vmatprep.subr.mxu0 0.0
    %304 = vmatpush1.msra.mxu0 0.0
    %305 = vmatprep.subr.mxu0 0.0
    %306 = vmatpush1.msra.mxu0 0.0
    %307 = vmatprep.subr.mxu0 0.0
    %308 = vmatpush1.msra.mxu0 0.0
    %309 = vmatprep.subr.mxu0 0.0
    %310 = vmatpush1.msra.mxu0 0.0
    %311 = vmatprep.subr.mxu0 0.0
    %312 = vmatpush1.msra.mxu0 0.0
    %313 = vmatprep.subr.mxu0 0.0
    %314 = vmatpush1.msra.mxu0 0.0
    %315 = vmatprep.subr.mxu0 0.0
    %316 = vmatpush1.msra.mxu0 0.0
    %317 = vmatprep.subr.mxu0 0.0
    %318 = vmatpush1.msra.mxu0 0.0
    %319 = vmatprep.subr.mxu0 0.0
    %320 = vmatpush1.msra.mxu0 0.0
    %321 = vmatprep.subr.mxu0 0.0
    %322 = vmatpush1.msra.mxu0 0.0
    %323 = vmatprep.subr.mxu0 0.0
    %324 = vmatpush1.msra.mxu0 0.0
    %325 = vmatprep.mubr.f32.mxu0 0.0
    %326 = vmatmul.mubr.f32.gmra.mrb[0].mxu0 %v259
    %v327 = vpop.f32.mrb[0].mxu0
    %v328 = vadd.f32 0.0, %v327
    %v329 = vpop.f32.mrb[0].mxu0
    %330 = vdwg.mxu0
    %331 = vrot.lane.b32.xlu0 %v158, 120
    %v332 = vpop.permute.xlu0 %331
    %333 = vrot.lane.b32.xlu0 %v158, 88
    %v334 = vpop.permute.xlu0 %333
    %v335 = vsel %vm169, %v332, 0
    %v337 = vsel %vm169, %v334, 0
    %339 = vmatprep.subr.mxu0 0.0
    %340 = vmatpush1.xpose.msra.mxu0 %v337
    %341 = vmatprep.subr.mxu0 0.0
    %342 = vmatpush1.xpose.msra.mxu0 0.0
    %343 = vmatprep.subr.mxu0 0.0
    %344 = vmatpush1.xpose.msra.mxu0 0.0
    %345 = vmatprep.subr.mxu0 0.0
    %346 = vmatpush1.xpose.msra.mxu0 0.0
    %347 = vmatprep.subr.mxu0 0.0
    %348 = vmatpush1.xpose.msra.mxu0 0.0
    %349 = vmatprep.subr.mxu0 0.0
    %350 = vmatpush1.xpose.msra.mxu0 0.0
    %351 = vmatprep.subr.mxu0 0.0
    %352 = vmatpush1.xpose.msra.mxu0 0.0
    %353 = vmatprep.subr.mxu0 0.0
    %354 = vmatpush1.xpose.msra.mxu0 0.0
    %355 = vmatprep.subr.mxu0 0.0
    %356 = vmatpush1.xpose.msra.mxu0 0.0
    %357 = vmatprep.subr.mxu0 0.0
    %358 = vmatpush1.xpose.msra.mxu0 0.0
    %359 = vmatprep.subr.mxu0 0.0
    %360 = vmatpush1.xpose.msra.mxu0 0.0
    %361 = vmatprep.subr.mxu0 0.0
    %362 = vmatpush1.xpose.msra.mxu0 0.0
    %363 = vmatprep.subr.mxu0 0.0
    %364 = vmatpush1.xpose.msra.mxu0 0.0
    %365 = vmatprep.subr.mxu0 0.0
    %366 = vmatpush1.xpose.msra.mxu0 0.0
    %367 = vmatprep.subr.mxu0 0.0
    %368 = vmatpush1.xpose.msra.mxu0 0.0
    %369 = vmatprep.subr.mxu0 0.0
    %370 = vmatpush1.xpose.msra.mxu0 0.0
    %371 = vmatprep.subr.mxu0 0.0
    %372 = vmatpush1.xpose.msra.mxu0 0.0
    %373 = vmatprep.subr.mxu0 0.0
    %374 = vmatpush1.xpose.msra.mxu0 0.0
    %375 = vmatprep.subr.mxu0 0.0
    %376 = vmatpush1.xpose.msra.mxu0 0.0
    %377 = vmatprep.subr.mxu0 0.0
    %378 = vmatpush1.xpose.msra.mxu0 0.0
    %379 = vmatprep.subr.mxu0 0.0
    %380 = vmatpush1.xpose.msra.mxu0 0.0
    %381 = vmatprep.subr.mxu0 0.0
    %382 = vmatpush1.xpose.msra.mxu0 0.0
    %383 = vmatprep.subr.mxu0 0.0
    %384 = vmatpush1.xpose.msra.mxu0 0.0
    %385 = vmatprep.subr.mxu0 0.0
    %386 = vmatpush1.xpose.msra.mxu0 0.0
    %387 = vmatprep.subr.mxu0 0.0
    %388 = vmatpush1.xpose.msra.mxu0 0.0
    %389 = vmatprep.subr.mxu0 0.0
    %390 = vmatpush1.xpose.msra.mxu0 0.0
    %391 = vmatprep.subr.mxu0 0.0
    %392 = vmatpush1.xpose.msra.mxu0 0.0
    %393 = vmatprep.subr.mxu0 0.0
    %394 = vmatpush1.xpose.msra.mxu0 0.0
    %395 = vmatprep.subr.mxu0 0.0
    %396 = vmatpush1.xpose.msra.mxu0 0.0
    %397 = vmatprep.subr.mxu0 0.0
    %398 = vmatpush1.xpose.msra.mxu0 0.0
    %399 = vmatprep.subr.mxu0 0.0
    %400 = vmatpush1.xpose.msra.mxu0 0.0
    %401 = vmatprep.subr.mxu0 0.0
    %402 = vmatpush1.xpose.msra.mxu0 0.0
    %403 = vmatprep.mubr.f32.mxu0 0.0
    %404 = vmatmul.mubr.f32.gmra.mrb[0].mxu0 %v335
    %v405 = vpop.f32.mrb[0].mxu0
    %v406 = vadd.f32 0.0, %v405
    %v407 = vpop.f32.mrb[0].mxu0
    %408 = vdwg.mxu0
    %v409 = vsel %vm169, %v406, -inf
    %410 = vmax.xlane.f32.xlu0 %v409
    %v411 = vpop.xlane.xlu0 %410
    %v412 = vsub.f32 %v406, %v411
    %v413 = vmul.f32 %v412, 1.442695
    %v414 = vpow.pop %v413
    %v415 = vsel %vm169, %v414, 0.0
    %416 = vadd.xlane.f32.xlu0 %v415
    %v417 = vpop.xlane.xlu0 %416
    %v418 = vrcp.pop %v417
    %v419 = vmul.f32 %v414, %v418
    %420 = vrot.lane.b32.xlu0 %v158, 56
    %v421 = vpop.permute.xlu0 %420
    %v424 = vsel %vm169, %v419, 0
    %426 = vmatprep.subr.mxu0 0.0
    %427 = vmatpush1.msra.mxu0 %v421
    %428 = vmatprep.subr.mxu0 0.0
    %429 = vmatpush1.msra.mxu0 0.0
    %430 = vmatprep.subr.mxu0 0.0
    %431 = vmatpush1.msra.mxu0 0.0
    %432 = vmatprep.subr.mxu0 0.0
    %433 = vmatpush1.msra.mxu0 0.0
    %434 = vmatprep.subr.mxu0 0.0
    %435 = vmatpush1.msra.mxu0 0.0
    %436 = vmatprep.subr.mxu0 0.0
    %437 = vmatpush1.msra.mxu0 0.0
    %438 = vmatprep.subr.mxu0 0.0
    %439 = vmatpush1.msra.mxu0 0.0
    %440 = vmatprep.subr.mxu0 0.0
    %441 = vmatpush1.msra.mxu0 0.0
    %442 = vmatprep.subr.mxu0 0.0
    %443 = vmatpush1.msra.mxu0 0.0
    %444 = vmatprep.subr.mxu0 0.0
    %445 = vmatpush1.msra.mxu0 0.0
    %446 = vmatprep.subr.mxu0 0.0
    %447 = vmatpush1.msra.mxu0 0.0
    %448 = vmatprep.subr.mxu0 0.0
    %449 = vmatpush1.msra.mxu0 0.0
    %450 = vmatprep.subr.mxu0 0.0
    %451 = vmatpush1.msra.mxu0 0.0
    %452 = vmatprep.subr.mxu0 0.0
    %453 = vmatpush1.msra.mxu0 0.0
    %454 = vmatprep.subr.mxu0 0.0
    %455 = vmatpush1.msra.mxu0 0.0
    %456 = vmatprep.subr.mxu0 0.0
    %457 = vmatpush1.msra.mxu0 0.0
    %458 = vmatprep.subr.mxu0 0.0
    %459 = vmatpush1.msra.mxu0 0.0
    %460 = vmatprep.subr.mxu0 0.0
    %461 = vmatpush1.msra.mxu0 0.0
    %462 = vmatprep.subr.mxu0 0.0
    %463 = vmatpush1.msra.mxu0 0.0
    %464 = vmatprep.subr.mxu0 0.0
    %465 = vmatpush1.msra.mxu0 0.0
    %466 = vmatprep.subr.mxu0 0.0
    %467 = vmatpush1.msra.mxu0 0.0
    %468 = vmatprep.subr.mxu0 0.0
    %469 = vmatpush1.msra.mxu0 0.0
    %470 = vmatprep.subr.mxu0 0.0
    %471 = vmatpush1.msra.mxu0 0.0
    %472 = vmatprep.subr.mxu0 0.0
    %473 = vmatpush1.msra.mxu0 0.0
    %474 = vmatprep.subr.mxu0 0.0
    %475 = vmatpush1.msra.mxu0 0.0
    %476 = vmatprep.subr.mxu0 0.0
    %477 = vmatpush1.msra.mxu0 0.0
    %478 = vmatprep.subr.mxu0 0.0
    %479 = vmatpush1.msra.mxu0 0.0
    %480 = vmatprep.subr.mxu0 0.0
    %481 = vmatpush1.msra.mxu0 0.0
    %482 = vmatprep.subr.mxu0 0.0
    %483 = vmatpush1.msra.mxu0 0.0
    %484 = vmatprep.subr.mxu0 0.0
    %485 = vmatpush1.msra.mxu0 0.0
    %486 = vmatprep.subr.mxu0 0.0
    %487 = vmatpush1.msra.mxu0 0.0
    %488 = vmatprep.subr.mxu0 0.0
    %489 = vmatpush1.msra.mxu0 0.0
    %490 = vmatprep.mubr.f32.mxu0 0.0
    %491 = vmatmul.mubr.f32.gmra.mrb[0].mxu0 %v424
    %v492 = vpop.f32.mrb[0].mxu0
    %v493 = vadd.f32 0.0, %v492
    %v494 = vpop.f32.mrb[0].mxu0
    %495 = vdwg.mxu0
    %496 = vrot.lane.b32.xlu0 %v158, 112
    %v497 = vpop.permute.xlu0 %496
    %498 = vrot.lane.b32.xlu0 %v158, 80
    %v499 = vpop.permute.xlu0 %498
    %v500 = vsel %vm169, %v497, 0
    %v502 = vsel %vm169, %v499, 0
    %504 = vmatprep.subr.mxu0 0.0
    %505 = vmatpush1.xpose.msra.mxu0 %v502
    %506 = vmatprep.subr.mxu0 0.0
    %507 = vmatpush1.xpose.msra.mxu0 0.0
    %508 = vmatprep.subr.mxu0 0.0
    %509 = vmatpush1.xpose.msra.mxu0 0.0
    %510 = vmatprep.subr.mxu0 0.0
    %511 = vmatpush1.xpose.msra.mxu0 0.0
    %512 = vmatprep.subr.mxu0 0.0
    %513 = vmatpush1.xpose.msra.mxu0 0.0
    %514 = vmatprep.subr.mxu0 0.0
    %515 = vmatpush1.xpose.msra.mxu0 0.0
    %516 = vmatprep.subr.mxu0 0.0
    %517 = vmatpush1.xpose.msra.mxu0 0.0
    %518 = vmatprep.subr.mxu0 0.0
    %519 = vmatpush1.xpose.msra.mxu0 0.0
    %520 = vmatprep.subr.mxu0 0.0
    %521 = vmatpush1.xpose.msra.mxu0 0.0
    %522 = vmatprep.subr.mxu0 0.0
    %523 = vmatpush1.xpose.msra.mxu0 0.0
    %524 = vmatprep.subr.mxu0 0.0
    %525 = vmatpush1.xpose.msra.mxu0 0.0
    %526 = vmatprep.subr.mxu0 0.0
    %527 = vmatpush1.xpose.msra.mxu0 0.0
    %528 = vmatprep.subr.mxu0 0.0
    %529 = vmatpush1.xpose.msra.mxu0 0.0
    %530 = vmatprep.subr.mxu0 0.0
    %531 = vmatpush1.xpose.msra.mxu0 0.0
    %532 = vmatprep.subr.mxu0 0.0
    %533 = vmatpush1.xpose.msra.mxu0 0.0
    %534 = vmatprep.subr.mxu0 0.0
    %535 = vmatpush1.xpose.msra.mxu0 0.0
    %536 = vmatprep.subr.mxu0 0.0
    %537 = vmatpush1.xpose.msra.mxu0 0.0
    %538 = vmatprep.subr.mxu0 0.0
    %539 = vmatpush1.xpose.msra.mxu0 0.0
    %540 = vmatprep.subr.mxu0 0.0
    %541 = vmatpush1.xpose.msra.mxu0 0.0
    %542 = vmatprep.subr.mxu0 0.0
    %543 = vmatpush1.xpose.msra.mxu0 0.0
    %544 = vmatprep.subr.mxu0 0.0
    %545 = vmatpush1.xpose.msra.mxu0 0.0
    %546 = vmatprep.subr.mxu0 0.0
    %547 = vmatpush1.xpose.msra.mxu0 0.0
    %548 = vmatprep.subr.mxu0 0.0
    %549 = vmatpush1.xpose.msra.mxu0 0.0
    %550 = vmatprep.subr.mxu0 0.0
    %551 = vmatpush1.xpose.msra.mxu0 0.0
    %552 = vmatprep.subr.mxu0 0.0
    %553 = vmatpush1.xpose.msra.mxu0 0.0
    %554 = vmatprep.subr.mxu0 0.0
    %555 = vmatpush1.xpose.msra.mxu0 0.0
    %556 = vmatprep.subr.mxu0 0.0
    %557 = vmatpush1.xpose.msra.mxu0 0.0
    %558 = vmatprep.subr.mxu0 0.0
    %559 = vmatpush1.xpose.msra.mxu0 0.0
    %560 = vmatprep.subr.mxu0 0.0
    %561 = vmatpush1.xpose.msra.mxu0 0.0
    %562 = vmatprep.subr.mxu0 0.0
    %563 = vmatpush1.xpose.msra.mxu0 0.0
    %564 = vmatprep.subr.mxu0 0.0
    %565 = vmatpush1.xpose.msra.mxu0 0.0
    %566 = vmatprep.subr.mxu0 0.0
    %567 = vmatpush1.xpose.msra.mxu0 0.0
    %568 = vmatprep.mubr.f32.mxu0 0.0
    %569 = vmatmul.mubr.f32.gmra.mrb[0].mxu0 %v500
    %v570 = vpop.f32.mrb[0].mxu0
    %v571 = vadd.f32 0.0, %v570
    %v572 = vpop.f32.mrb[0].mxu0
    %573 = vdwg.mxu0
    %v574 = vsel %vm169, %v571, -inf
    %575 = vmax.xlane.f32.xlu0 %v574
    %v576 = vpop.xlane.xlu0 %575
    %v577 = vsub.f32 %v571, %v576
    %v578 = vmul.f32 %v577, 1.442695
    %v579 = vpow.pop %v578
    %v580 = vsel %vm169, %v579, 0.0
    %581 = vadd.xlane.f32.xlu0 %v580
    %v582 = vpop.xlane.xlu0 %581
    %v583 = vrcp.pop %v582
    %v584 = vmul.f32 %v579, %v583
    %585 = vrot.lane.b32.xlu0 %v158, 48
    %v586 = vpop.permute.xlu0 %585
    %v589 = vsel %vm169, %v584, 0
    %591 = vmatprep.subr.mxu0 0.0
    %592 = vmatpush1.msra.mxu0 %v586
    %593 = vmatprep.subr.mxu0 0.0
    %594 = vmatpush1.msra.mxu0 0.0
    %595 = vmatprep.subr.mxu0 0.0
    %596 = vmatpush1.msra.mxu0 0.0
    %597 = vmatprep.subr.mxu0 0.0
    %598 = vmatpush1.msra.mxu0 0.0
    %599 = vmatprep.subr.mxu0 0.0
    %600 = vmatpush1.msra.mxu0 0.0
    %601 = vmatprep.subr.mxu0 0.0
    %602 = vmatpush1.msra.mxu0 0.0
    %603 = vmatprep.subr.mxu0 0.0
    %604 = vmatpush1.msra.mxu0 0.0
    %605 = vmatprep.subr.mxu0 0.0
    %606 = vmatpush1.msra.mxu0 0.0
    %607 = vmatprep.subr.mxu0 0.0
    %608 = vmatpush1.msra.mxu0 0.0
    %609 = vmatprep.subr.mxu0 0.0
    %610 = vmatpush1.msra.mxu0 0.0
    %611 = vmatprep.subr.mxu0 0.0
    %612 = vmatpush1.msra.mxu0 0.0
    %613 = vmatprep.subr.mxu0 0.0
    %614 = vmatpush1.msra.mxu0 0.0
    %615 = vmatprep.subr.mxu0 0.0
    %616 = vmatpush1.msra.mxu0 0.0
    %617 = vmatprep.subr.mxu0 0.0
    %618 = vmatpush1.msra.mxu0 0.0
    %619 = vmatprep.subr.mxu0 0.0
    %620 = vmatpush1.msra.mxu0 0.0
    %621 = vmatprep.subr.mxu0 0.0
    %622 = vmatpush1.msra.mxu0 0.0
    %623 = vmatprep.subr.mxu0 0.0
    %624 = vmatpush1.msra.mxu0 0.0
    %625 = vmatprep.subr.mxu0 0.0
    %626 = vmatpush1.msra.mxu0 0.0
    %627 = vmatprep.subr.mxu0 0.0
    %628 = vmatpush1.msra.mxu0 0.0
    %629 = vmatprep.subr.mxu0 0.0
    %630 = vmatpush1.msra.mxu0 0.0
    %631 = vmatprep.subr.mxu0 0.0
    %632 = vmatpush1.msra.mxu0 0.0
    %633 = vmatprep.subr.mxu0 0.0
    %634 = vmatpush1.msra.mxu0 0.0
    %635 = vmatprep.subr.mxu0 0.0
    %636 = vmatpush1.msra.mxu0 0.0
    %637 = vmatprep.subr.mxu0 0.0
    %638 = vmatpush1.msra.mxu0 0.0
    %639 = vmatprep.subr.mxu0 0.0
    %640 = vmatpush1.msra.mxu0 0.0
    %641 = vmatprep.subr.mxu0 0.0
    %642 = vmatpush1.msra.mxu0 0.0
    %643 = vmatprep.subr.mxu0 0.0
    %644 = vmatpush1.msra.mxu0 0.0
    %645 = vmatprep.subr.mxu0 0.0
    %646 = vmatpush1.msra.mxu0 0.0
    %647 = vmatprep.subr.mxu0 0.0
    %648 = vmatpush1.msra.mxu0 0.0
    %649 = vmatprep.subr.mxu0 0.0
    %650 = vmatpush1.msra.mxu0 0.0
    %651 = vmatprep.subr.mxu0 0.0
    %652 = vmatpush1.msra.mxu0 0.0
    %653 = vmatprep.subr.mxu0 0.0
    %654 = vmatpush1.msra.mxu0 0.0
    %655 = vmatprep.mubr.f32.mxu0 0.0
    %656 = vmatmul.mubr.f32.gmra.mrb[0].mxu0 %v589
    %v657 = vpop.f32.mrb[0].mxu0
    %v658 = vadd.f32 0.0, %v657
    %v659 = vpop.f32.mrb[0].mxu0
    %660 = vdwg.mxu0
    %661 = vrot.lane.b32.xlu0 %v158, 104
    %v662 = vpop.permute.xlu0 %661
    %663 = vrot.lane.b32.xlu0 %v158, 72
    %v664 = vpop.permute.xlu0 %663
    %v665 = vsel %vm169, %v662, 0
    %v667 = vsel %vm169, %v664, 0
    %669 = vmatprep.subr.mxu0 0.0
    %670 = vmatpush1.xpose.msra.mxu0 %v667
    %671 = vmatprep.subr.mxu0 0.0
    %672 = vmatpush1.xpose.msra.mxu0 0.0
    %673 = vmatprep.subr.mxu0 0.0
    %674 = vmatpush1.xpose.msra.mxu0 0.0
    %675 = vmatprep.subr.mxu0 0.0
    %676 = vmatpush1.xpose.msra.mxu0 0.0
    %677 = vmatprep.subr.mxu0 0.0
    %678 = vmatpush1.xpose.msra.mxu0 0.0
    %679 = vmatprep.subr.mxu0 0.0
    %680 = vmatpush1.xpose.msra.mxu0 0.0
    %681 = vmatprep.subr.mxu0 0.0
    %682 = vmatpush1.xpose.msra.mxu0 0.0
    %683 = vmatprep.subr.mxu0 0.0
    %684 = vmatpush1.xpose.msra.mxu0 0.0
    %685 = vmatprep.subr.mxu0 0.0
    %686 = vmatpush1.xpose.msra.mxu0 0.0
    %687 = vmatprep.subr.mxu0 0.0
    %688 = vmatpush1.xpose.msra.mxu0 0.0
    %689 = vmatprep.subr.mxu0 0.0
    %690 = vmatpush1.xpose.msra.mxu0 0.0
    %691 = vmatprep.subr.mxu0 0.0
    %692 = vmatpush1.xpose.msra.mxu0 0.0
    %693 = vmatprep.subr.mxu0 0.0
    %694 = vmatpush1.xpose.msra.mxu0 0.0
    %695 = vmatprep.subr.mxu0 0.0
    %696 = vmatpush1.xpose.msra.mxu0 0.0
    %697 = vmatprep.subr.mxu0 0.0
    %698 = vmatpush1.xpose.msra.mxu0 0.0
    %699 = vmatprep.subr.mxu0 0.0
    %700 = vmatpush1.xpose.msra.mxu0 0.0
    %701 = vmatprep.subr.mxu0 0.0
    %702 = vmatpush1.xpose.msra.mxu0 0.0
    %703 = vmatprep.subr.mxu0 0.0
    %704 = vmatpush1.xpose.msra.mxu0 0.0
    %705 = vmatprep.subr.mxu0 0.0
    %706 = vmatpush1.xpose.msra.mxu0 0.0
    %707 = vmatprep.subr.mxu0 0.0
    %708 = vmatpush1.xpose.msra.mxu0 0.0
    %709 = vmatprep.subr.mxu0 0.0
    %710 = vmatpush1.xpose.msra.mxu0 0.0
    %711 = vmatprep.subr.mxu0 0.0
    %712 = vmatpush1.xpose.msra.mxu0 0.0
    %713 = vmatprep.subr.mxu0 0.0
    %714 = vmatpush1.xpose.msra.mxu0 0.0
    %715 = vmatprep.subr.mxu0 0.0
    %716 = vmatpush1.xpose.msra.mxu0 0.0
    %717 = vmatprep.subr.mxu0 0.0
    %718 = vmatpush1.xpose.msra.mxu0 0.0
    %719 = vmatprep.subr.mxu0 0.0
    %720 = vmatpush1.xpose.msra.mxu0 0.0
    %721 = vmatprep.subr.mxu0 0.0
    %722 = vmatpush1.xpose.msra.mxu0 0.0
    %723 = vmatprep.subr.mxu0 0.0
    %724 = vmatpush1.xpose.msra.mxu0 0.0
    %725 = vmatprep.subr.mxu0 0.0
    %726 = vmatpush1.xpose.msra.mxu0 0.0
    %727 = vmatprep.subr.mxu0 0.0
    %728 = vmatpush1.xpose.msra.mxu0 0.0
    %729 = vmatprep.subr.mxu0 0.0
    %730 = vmatpush1.xpose.msra.mxu0 0.0
    %731 = vmatprep.subr.mxu0 0.0
    %732 = vmatpush1.xpose.msra.mxu0 0.0
    %733 = vmatprep.mubr.f32.mxu0 0.0
    %734 = vmatmul.mubr.f32.gmra.mrb[0].mxu0 %v665
    %v735 = vpop.f32.mrb[0].mxu0
    %v736 = vadd.f32 0.0, %v735
    %v737 = vpop.f32.mrb[0].mxu0
    %738 = vdwg.mxu0
    %v739 = vsel %vm169, %v736, -inf
    %740 = vmax.xlane.f32.xlu0 %v739
    %v741 = vpop.xlane.xlu0 %740
    %v742 = vsub.f32 %v736, %v741
    %v743 = vmul.f32 %v742, 1.442695
    %v744 = vpow.pop %v743
    %v745 = vsel %vm169, %v744, 0.0
    %746 = vadd.xlane.f32.xlu0 %v745
    %v747 = vpop.xlane.xlu0 %746
    %v748 = vrcp.pop %v747
    %v749 = vmul.f32 %v744, %v748
    %750 = vrot.lane.b32.xlu0 %v158, 40
    %v751 = vpop.permute.xlu0 %750
    %v754 = vsel %vm169, %v749, 0
    %756 = vmatprep.subr.mxu0 0.0
    %757 = vmatpush1.msra.mxu0 %v751
    %758 = vmatprep.subr.mxu0 0.0
    %759 = vmatpush1.msra.mxu0 0.0
    %760 = vmatprep.subr.mxu0 0.0
    %761 = vmatpush1.msra.mxu0 0.0
    %762 = vmatprep.subr.mxu0 0.0
    %763 = vmatpush1.msra.mxu0 0.0
    %764 = vmatprep.subr.mxu0 0.0
    %765 = vmatpush1.msra.mxu0 0.0
    %766 = vmatprep.subr.mxu0 0.0
    %767 = vmatpush1.msra.mxu0 0.0
    %768 = vmatprep.subr.mxu0 0.0
    %769 = vmatpush1.msra.mxu0 0.0
    %770 = vmatprep.subr.mxu0 0.0
    %771 = vmatpush1.msra.mxu0 0.0
    %772 = vmatprep.subr.mxu0 0.0
    %773 = vmatpush1.msra.mxu0 0.0
    %774 = vmatprep.subr.mxu0 0.0
    %775 = vmatpush1.msra.mxu0 0.0
    %776 = vmatprep.subr.mxu0 0.0
    %777 = vmatpush1.msra.mxu0 0.0
    %778 = vmatprep.subr.mxu0 0.0
    %779 = vmatpush1.msra.mxu0 0.0
    %780 = vmatprep.subr.mxu0 0.0
    %781 = vmatpush1.msra.mxu0 0.0
    %782 = vmatprep.subr.mxu0 0.0
    %783 = vmatpush1.msra.mxu0 0.0
    %784 = vmatprep.subr.mxu0 0.0
    %785 = vmatpush1.msra.mxu0 0.0
    %786 = vmatprep.subr.mxu0 0.0
    %787 = vmatpush1.msra.mxu0 0.0
    %788 = vmatprep.subr.mxu0 0.0
    %789 = vmatpush1.msra.mxu0 0.0
    %790 = vmatprep.subr.mxu0 0.0
    %791 = vmatpush1.msra.mxu0 0.0
    %792 = vmatprep.subr.mxu0 0.0
    %793 = vmatpush1.msra.mxu0 0.0
    %794 = vmatprep.subr.mxu0 0.0
    %795 = vmatpush1.msra.mxu0 0.0
    %796 = vmatprep.subr.mxu0 0.0
    %797 = vmatpush1.msra.mxu0 0.0
    %798 = vmatprep.subr.mxu0 0.0
    %799 = vmatpush1.msra.mxu0 0.0
    %800 = vmatprep.subr.mxu0 0.0
    %801 = vmatpush1.msra.mxu0 0.0
    %802 = vmatprep.subr.mxu0 0.0
    %803 = vmatpush1.msra.mxu0 0.0
    %804 = vmatprep.subr.mxu0 0.0
    %805 = vmatpush1.msra.mxu0 0.0
    %806 = vmatprep.subr.mxu0 0.0
    %807 = vmatpush1.msra.mxu0 0.0
    %808 = vmatprep.subr.mxu0 0.0
    %809 = vmatpush1.msra.mxu0 0.0
    %810 = vmatprep.subr.mxu0 0.0
    %811 = vmatpush1.msra.mxu0 0.0
    %812 = vmatprep.subr.mxu0 0.0
    %813 = vmatpush1.msra.mxu0 0.0
    %814 = vmatprep.subr.mxu0 0.0
    %815 = vmatpush1.msra.mxu0 0.0
    %816 = vmatprep.subr.mxu0 0.0
    %817 = vmatpush1.msra.mxu0 0.0
    %818 = vmatprep.subr.mxu0 0.0
    %819 = vmatpush1.msra.mxu0 0.0
    %820 = vmatprep.mubr.f32.mxu0 0.0
    %821 = vmatmul.mubr.f32.gmra.mrb[0].mxu0 %v754
    %v822 = vpop.f32.mrb[0].mxu0
    %v823 = vadd.f32 0.0, %v822
    %v824 = vpop.f32.mrb[0].mxu0
    %825 = vdwg.mxu0
    %v826 = vadd.f32 %v254, %v419
    %v827 = vadd.f32 %v826, %v584
    %v828 = vadd.f32 %v827, %v749
    %v829 = vmul.f32 %v828, 0.25
    %830 = vst.msk [vmem:[#allocation4] sm:$0xff] %vm169, %v829
    %832 = vrot.lane.b32.xlu0 %v493, 8
    %v833 = vpop.permute.xlu0 %832
    %836 = vrot.lane.b32.xlu0 %v658, 16
    %v837 = vpop.permute.xlu0 %836
    %840 = vrot.lane.b32.xlu0 %v823, 24
    %v841 = vpop.permute.xlu0 %840
    %v843 = vsel %vm169, %v328, %v833
    %vm844 = vcmask 130048
    %v845 = vsel %vm844, %v843, %v837
    %vm846 = vcmask 195584
    %v847 = vsel %vm846, %v845, %v841
    %849 = vrot.lane.b32.xlu0 %v163, 96
    %v850 = vpop.permute.xlu0 %849
    %v851 = vsel %vm169, %v163, 0
    %v853 = vsel %vm169, %v850, 0
    %855 = vmatprep.subr.mxu0 0.0
    %856 = vmatpush1.xpose.msra.mxu0 %v853
    %857 = vmatprep.subr.mxu0 0.0
    %858 = vmatpush1.xpose.msra.mxu0 0.0
    %859 = vmatprep.subr.mxu0 0.0
    %860 = vmatpush1.xpose.msra.mxu0 0.0
    %861 = vmatprep.subr.mxu0 0.0
    %862 = vmatpush1.xpose.msra.mxu0 0.0
    %863 = vmatprep.subr.mxu0 0.0
    %864 = vmatpush1.xpose.msra.mxu0 0.0
    %865 = vmatprep.subr.mxu0 0.0
    %866 = vmatpush1.xpose.msra.mxu0 0.0
    %867 = vmatprep.subr.mxu0 0.0
    %868 = vmatpush1.xpose.msra.mxu0 0.0
    %869 = vmatprep.subr.mxu0 0.0
    %870 = vmatpush1.xpose.msra.mxu0 0.0
    %871 = vmatprep.subr.mxu0 0.0
    %872 = vmatpush1.xpose.msra.mxu0 0.0
    %873 = vmatprep.subr.mxu0 0.0
    %874 = vmatpush1.xpose.msra.mxu0 0.0
    %875 = vmatprep.subr.mxu0 0.0
    %876 = vmatpush1.xpose.msra.mxu0 0.0
    %877 = vmatprep.subr.mxu0 0.0
    %878 = vmatpush1.xpose.msra.mxu0 0.0
    %879 = vmatprep.subr.mxu0 0.0
    %880 = vmatpush1.xpose.msra.mxu0 0.0
    %881 = vmatprep.subr.mxu0 0.0
    %882 = vmatpush1.xpose.msra.mxu0 0.0
    %883 = vmatprep.subr.mxu0 0.0
    %884 = vmatpush1.xpose.msra.mxu0 0.0
    %885 = vmatprep.subr.mxu0 0.0
    %886 = vmatpush1.xpose.msra.mxu0 0.0
    %887 = vmatprep.subr.mxu0 0.0
    %888 = vmatpush1.xpose.msra.mxu0 0.0
    %889 = vmatprep.subr.mxu0 0.0
    %890 = vmatpush1.xpose.msra.mxu0 0.0
    %891 = vmatprep.subr.mxu0 0.0
    %892 = vmatpush1.xpose.msra.mxu0 0.0
    %893 = vmatprep.subr.mxu0 0.0
    %894 = vmatpush1.xpose.msra.mxu0 0.0
    %895 = vmatprep.subr.mxu0 0.0
    %896 = vmatpush1.xpose.msra.mxu0 0.0
    %897 = vmatprep.subr.mxu0 0.0
    %898 = vmatpush1.xpose.msra.mxu0 0.0
    %899 = vmatprep.subr.mxu0 0.0
    %900 = vmatpush1.xpose.msra.mxu0 0.0
    %901 = vmatprep.subr.mxu0 0.0
    %902 = vmatpush1.xpose.msra.mxu0 0.0
    %903 = vmatprep.subr.mxu0 0.0
    %904 = vmatpush1.xpose.msra.mxu0 0.0
    %905 = vmatprep.subr.mxu0 0.0
    %906 = vmatpush1.xpose.msra.mxu0 0.0
    %907 = vmatprep.subr.mxu0 0.0
    %908 = vmatpush1.xpose.msra.mxu0 0.0
    %909 = vmatprep.subr.mxu0 0.0
    %910 = vmatpush1.xpose.msra.mxu0 0.0
    %911 = vmatprep.subr.mxu0 0.0
    %912 = vmatpush1.xpose.msra.mxu0 0.0
    %913 = vmatprep.subr.mxu0 0.0
    %914 = vmatpush1.xpose.msra.mxu0 0.0
    %915 = vmatprep.subr.mxu0 0.0
    %916 = vmatpush1.xpose.msra.mxu0 0.0
    %917 = vmatprep.subr.mxu0 0.0
    %918 = vmatpush1.xpose.msra.mxu0 0.0
    %919 = vmatprep.mubr.f32.mxu0 0.0
    %920 = vmatmul.mubr.f32.gmra.mrb[0].mxu0 %v851
    %v921 = vpop.f32.mrb[0].mxu0
    %v922 = vadd.f32 0.0, %v921
    %v923 = vpop.f32.mrb[0].mxu0
    %924 = vdwg.mxu0
    %v925 = vsel %vm169, %v922, -inf
    %926 = vmax.xlane.f32.xlu0 %v925
    %v927 = vpop.xlane.xlu0 %926
    %v928 = vsub.f32 %v922, %v927
    %v929 = vmul.f32 %v928, 1.442695
    %v930 = vpow.pop %v929
    %v931 = vsel %vm169, %v930, 0.0
    %932 = vadd.xlane.f32.xlu0 %v931
    %v933 = vpop.xlane.xlu0 %932
    %v934 = vrcp.pop %v933
    %v935 = vmul.f32 %v930, %v934
    %936 = vrot.lane.b32.xlu0 %v163, 64
    %v937 = vpop.permute.xlu0 %936
    %v940 = vsel %vm169, %v935, 0
    %942 = vmatprep.subr.mxu0 0.0
    %943 = vmatpush1.msra.mxu0 %v937
    %944 = vmatprep.subr.mxu0 0.0
    %945 = vmatpush1.msra.mxu0 0.0
    %946 = vmatprep.subr.mxu0 0.0
    %947 = vmatpush1.msra.mxu0 0.0
    %948 = vmatprep.subr.mxu0 0.0
    %949 = vmatpush1.msra.mxu0 0.0
    %950 = vmatprep.subr.mxu0 0.0
    %951 = vmatpush1.msra.mxu0 0.0
    %952 = vmatprep.subr.mxu0 0.0
    %953 = vmatpush1.msra.mxu0 0.0
    %954 = vmatprep.subr.mxu0 0.0
    %955 = vmatpush1.msra.mxu0 0.0
    %956 = vmatprep.subr.mxu0 0.0
    %957 = vmatpush1.msra.mxu0 0.0
    %958 = vmatprep.subr.mxu0 0.0
    %959 = vmatpush1.msra.mxu0 0.0
    %960 = vmatprep.subr.mxu0 0.0
    %961 = vmatpush1.msra.mxu0 0.0
    %962 = vmatprep.subr.mxu0 0.0
    %963 = vmatpush1.msra.mxu0 0.0
    %964 = vmatprep.subr.mxu0 0.0
    %965 = vmatpush1.msra.mxu0 0.0
    %966 = vmatprep.subr.mxu0 0.0
    %967 = vmatpush1.msra.mxu0 0.0
    %968 = vmatprep.subr.mxu0 0.0
    %969 = vmatpush1.msra.mxu0 0.0
    %970 = vmatprep.subr.mxu0 0.0
    %971 = vmatpush1.msra.mxu0 0.0
    %972 = vmatprep.subr.mxu0 0.0
    %973 = vmatpush1.msra.mxu0 0.0
    %974 = vmatprep.subr.mxu0 0.0
    %975 = vmatpush1.msra.mxu0 0.0
    %976 = vmatprep.subr.mxu0 0.0
    %977 = vmatpush1.msra.mxu0 0.0
    %978 = vmatprep.subr.mxu0 0.0
    %979 = vmatpush1.msra.mxu0 0.0
    %980 = vmatprep.subr.mxu0 0.0
    %981 = vmatpush1.msra.mxu0 0.0
    %982 = vmatprep.subr.mxu0 0.0
    %983 = vmatpush1.msra.mxu0 0.0
    %984 = vmatprep.subr.mxu0 0.0
    %985 = vmatpush1.msra.mxu0 0.0
    %986 = vmatprep.subr.mxu0 0.0
    %987 = vmatpush1.msra.mxu0 0.0
    %988 = vmatprep.subr.mxu0 0.0
    %989 = vmatpush1.msra.mxu0 0.0
    %990 = vmatprep.subr.mxu0 0.0
    %991 = vmatpush1.msra.mxu0 0.0
    %992 = vmatprep.subr.mxu0 0.0
    %993 = vmatpush1.msra.mxu0 0.0
    %994 = vmatprep.subr.mxu0 0.0
    %995 = vmatpush1.msra.mxu0 0.0
    %996 = vmatprep.subr.mxu0 0.0
    %997 = vmatpush1.msra.mxu0 0.0
    %998 = vmatprep.subr.mxu0 0.0
    %999 = vmatpush1.msra.mxu0 0.0
    %1000 = vmatprep.subr.mxu0 0.0
    %1001 = vmatpush1.msra.mxu0 0.0
    %1002 = vmatprep.subr.mxu0 0.0
    %1003 = vmatpush1.msra.mxu0 0.0
    %1004 = vmatprep.subr.mxu0 0.0
    %1005 = vmatpush1.msra.mxu0 0.0
    %1006 = vmatprep.mubr.f32.mxu0 0.0
    %1007 = vmatmul.mubr.f32.gmra.mrb[0].mxu0 %v940
    %v1008 = vpop.f32.mrb[0].mxu0
    %v1009 = vadd.f32 0.0, %v1008
    %v1010 = vpop.f32.mrb[0].mxu0
    %1011 = vdwg.mxu0
    %1012 = vrot.lane.b32.xlu0 %v163, 120
    %v1013 = vpop.permute.xlu0 %1012
    %1014 = vrot.lane.b32.xlu0 %v163, 88
    %v1015 = vpop.permute.xlu0 %1014
    %v1016 = vsel %vm169, %v1013, 0
    %v1018 = vsel %vm169, %v1015, 0
    %1020 = vmatprep.subr.mxu0 0.0
    %1021 = vmatpush1.xpose.msra.mxu0 %v1018
    %1022 = vmatprep.subr.mxu0 0.0
    %1023 = vmatpush1.xpose.msra.mxu0 0.0
    %1024 = vmatprep.subr.mxu0 0.0
    %1025 = vmatpush1.xpose.msra.mxu0 0.0
    %1026 = vmatprep.subr.mxu0 0.0
    %1027 = vmatpush1.xpose.msra.mxu0 0.0
    %1028 = vmatprep.subr.mxu0 0.0
    %1029 = vmatpush1.xpose.msra.mxu0 0.0
    %1030 = vmatprep.subr.mxu0 0.0
    %1031 = vmatpush1.xpose.msra.mxu0 0.0
    %1032 = vmatprep.subr.mxu0 0.0
    %1033 = vmatpush1.xpose.msra.mxu0 0.0
    %1034 = vmatprep.subr.mxu0 0.0
    %1035 = vmatpush1.xpose.msra.mxu0 0.0
    %1036 = vmatprep.subr.mxu0 0.0
    %1037 = vmatpush1.xpose.msra.mxu0 0.0
    %1038 = vmatprep.subr.mxu0 0.0
    %1039 = vmatpush1.xpose.msra.mxu0 0.0
    %1040 = vmatprep.subr.mxu0 0.0
    %1041 = vmatpush1.xpose.msra.mxu0 0.0
    %1042 = vmatprep.subr.mxu0 0.0
    %1043 = vmatpush1.xpose.msra.mxu0 0.0
    %1044 = vmatprep.subr.mxu0 0.0
    %1045 = vmatpush1.xpose.msra.mxu0 0.0
    %1046 = vmatprep.subr.mxu0 0.0
    %1047 = vmatpush1.xpose.msra.mxu0 0.0
    %1048 = vmatprep.subr.mxu0 0.0
    %1049 = vmatpush1.xpose.msra.mxu0 0.0
    %1050 = vmatprep.subr.mxu0 0.0
    %1051 = vmatpush1.xpose.msra.mxu0 0.0
    %1052 = vmatprep.subr.mxu0 0.0
    %1053 = vmatpush1.xpose.msra.mxu0 0.0
    %1054 = vmatprep.subr.mxu0 0.0
    %1055 = vmatpush1.xpose.msra.mxu0 0.0
    %1056 = vmatprep.subr.mxu0 0.0
    %1057 = vmatpush1.xpose.msra.mxu0 0.0
    %1058 = vmatprep.subr.mxu0 0.0
    %1059 = vmatpush1.xpose.msra.mxu0 0.0
    %1060 = vmatprep.subr.mxu0 0.0
    %1061 = vmatpush1.xpose.msra.mxu0 0.0
    %1062 = vmatprep.subr.mxu0 0.0
    %1063 = vmatpush1.xpose.msra.mxu0 0.0
    %1064 = vmatprep.subr.mxu0 0.0
    %1065 = vmatpush1.xpose.msra.mxu0 0.0
    %1066 = vmatprep.subr.mxu0 0.0
    %1067 = vmatpush1.xpose.msra.mxu0 0.0
    %1068 = vmatprep.subr.mxu0 0.0
    %1069 = vmatpush1.xpose.msra.mxu0 0.0
    %1070 = vmatprep.subr.mxu0 0.0
    %1071 = vmatpush1.xpose.msra.mxu0 0.0
    %1072 = vmatprep.subr.mxu0 0.0
    %1073 = vmatpush1.xpose.msra.mxu0 0.0
    %1074 = vmatprep.subr.mxu0 0.0
    %1075 = vmatpush1.xpose.msra.mxu0 0.0
    %1076 = vmatprep.subr.mxu0 0.0
    %1077 = vmatpush1.xpose.msra.mxu0 0.0
    %1078 = vmatprep.subr.mxu0 0.0
    %1079 = vmatpush1.xpose.msra.mxu0 0.0
    %1080 = vmatprep.subr.mxu0 0.0
    %1081 = vmatpush1.xpose.msra.mxu0 0.0
    %1082 = vmatprep.subr.mxu0 0.0
    %1083 = vmatpush1.xpose.msra.mxu0 0.0
    %1084 = vmatprep.mubr.f32.mxu0 0.0
    %1085 = vmatmul.mubr.f32.gmra.mrb[0].mxu0 %v1016
    %v1086 = vpop.f32.mrb[0].mxu0
    %v1087 = vadd.f32 0.0, %v1086
    %v1088 = vpop.f32.mrb[0].mxu0
    %1089 = vdwg.mxu0
    %v1090 = vsel %vm169, %v1087, -inf
    %1091 = vmax.xlane.f32.xlu0 %v1090
    %v1092 = vpop.xlane.xlu0 %1091
    %v1093 = vsub.f32 %v1087, %v1092
    %v1094 = vmul.f32 %v1093, 1.442695
    %v1095 = vpow.pop %v1094
    %v1096 = vsel %vm169, %v1095, 0.0
    %1097 = vadd.xlane.f32.xlu0 %v1096
    %v1098 = vpop.xlane.xlu0 %1097
    %v1099 = vrcp.pop %v1098
    %v1100 = vmul.f32 %v1095, %v1099
    %1101 = vrot.lane.b32.xlu0 %v163, 56
    %v1102 = vpop.permute.xlu0 %1101
    %v1105 = vsel %vm169, %v1100, 0
    %1107 = vmatprep.subr.mxu0 0.0
    %1108 = vmatpush1.msra.mxu0 %v1102
    %1109 = vmatprep.subr.mxu0 0.0
    %1110 = vmatpush1.msra.mxu0 0.0
    %1111 = vmatprep.subr.mxu0 0.0
    %1112 = vmatpush1.msra.mxu0 0.0
    %1113 = vmatprep.subr.mxu0 0.0
    %1114 = vmatpush1.msra.mxu0 0.0
    %1115 = vmatprep.subr.mxu0 0.0
    %1116 = vmatpush1.msra.mxu0 0.0
    %1117 = vmatprep.subr.mxu0 0.0
    %1118 = vmatpush1.msra.mxu0 0.0
    %1119 = vmatprep.subr.mxu0 0.0
    %1120 = vmatpush1.msra.mxu0 0.0
    %1121 = vmatprep.subr.mxu0 0.0
    %1122 = vmatpush1.msra.mxu0 0.0
    %1123 = vmatprep.subr.mxu0 0.0
    %1124 = vmatpush1.msra.mxu0 0.0
    %1125 = vmatprep.subr.mxu0 0.0
    %1126 = vmatpush1.msra.mxu0 0.0
    %1127 = vmatprep.subr.mxu0 0.0
    %1128 = vmatpush1.msra.mxu0 0.0
    %1129 = vmatprep.subr.mxu0 0.0
    %1130 = vmatpush1.msra.mxu0 0.0
    %1131 = vmatprep.subr.mxu0 0.0
    %1132 = vmatpush1.msra.mxu0 0.0
    %1133 = vmatprep.subr.mxu0 0.0
    %1134 = vmatpush1.msra.mxu0 0.0
    %1135 = vmatprep.subr.mxu0 0.0
    %1136 = vmatpush1.msra.mxu0 0.0
    %1137 = vmatprep.subr.mxu0 0.0
    %1138 = vmatpush1.msra.mxu0 0.0
    %1139 = vmatprep.subr.mxu0 0.0
    %1140 = vmatpush1.msra.mxu0 0.0
    %1141 = vmatprep.subr.mxu0 0.0
    %1142 = vmatpush1.msra.mxu0 0.0
    %1143 = vmatprep.subr.mxu0 0.0
    %1144 = vmatpush1.msra.mxu0 0.0
    %1145 = vmatprep.subr.mxu0 0.0
    %1146 = vmatpush1.msra.mxu0 0.0
    %1147 = vmatprep.subr.mxu0 0.0
    %1148 = vmatpush1.msra.mxu0 0.0
    %1149 = vmatprep.subr.mxu0 0.0
    %1150 = vmatpush1.msra.mxu0 0.0
    %1151 = vmatprep.subr.mxu0 0.0
    %1152 = vmatpush1.msra.mxu0 0.0
    %1153 = vmatprep.subr.mxu0 0.0
    %1154 = vmatpush1.msra.mxu0 0.0
    %1155 = vmatprep.subr.mxu0 0.0
    %1156 = vmatpush1.msra.mxu0 0.0
    %1157 = vmatprep.subr.mxu0 0.0
    %1158 = vmatpush1.msra.mxu0 0.0
    %1159 = vmatprep.subr.mxu0 0.0
    %1160 = vmatpush1.msra.mxu0 0.0
    %1161 = vmatprep.subr.mxu0 0.0
    %1162 = vmatpush1.msra.mxu0 0.0
    %1163 = vmatprep.subr.mxu0 0.0
    %1164 = vmatpush1.msra.mxu0 0.0
    %1165 = vmatprep.subr.mxu0 0.0
    %1166 = vmatpush1.msra.mxu0 0.0
    %1167 = vmatprep.subr.mxu0 0.0
    %1168 = vmatpush1.msra.mxu0 0.0
    %1169 = vmatprep.subr.mxu0 0.0
    %1170 = vmatpush1.msra.mxu0 0.0
    %1171 = vmatprep.mubr.f32.mxu0 0.0
    %1172 = vmatmul.mubr.f32.gmra.mrb[0].mxu0 %v1105
    %v1173 = vpop.f32.mrb[0].mxu0
    %v1174 = vadd.f32 0.0, %v1173
    %v1175 = vpop.f32.mrb[0].mxu0
    %1176 = vdwg.mxu0
    %1177 = vrot.lane.b32.xlu0 %v163, 112
    %v1178 = vpop.permute.xlu0 %1177
    %1179 = vrot.lane.b32.xlu0 %v163, 80
    %v1180 = vpop.permute.xlu0 %1179
    %v1181 = vsel %vm169, %v1178, 0
    %v1183 = vsel %vm169, %v1180, 0
    %1185 = vmatprep.subr.mxu0 0.0
    %1186 = vmatpush1.xpose.msra.mxu0 %v1183
    %1187 = vmatprep.subr.mxu0 0.0
    %1188 = vmatpush1.xpose.msra.mxu0 0.0
    %1189 = vmatprep.subr.mxu0 0.0
    %1190 = vmatpush1.xpose.msra.mxu0 0.0
    %1191 = vmatprep.subr.mxu0 0.0
    %1192 = vmatpush1.xpose.msra.mxu0 0.0
    %1193 = vmatprep.subr.mxu0 0.0
    %1194 = vmatpush1.xpose.msra.mxu0 0.0
    %1195 = vmatprep.subr.mxu0 0.0
    %1196 = vmatpush1.xpose.msra.mxu0 0.0
    %1197 = vmatprep.subr.mxu0 0.0
    %1198 = vmatpush1.xpose.msra.mxu0 0.0
    %1199 = vmatprep.subr.mxu0 0.0
    %1200 = vmatpush1.xpose.msra.mxu0 0.0
    %1201 = vmatprep.subr.mxu0 0.0
    %1202 = vmatpush1.xpose.msra.mxu0 0.0
    %1203 = vmatprep.subr.mxu0 0.0
    %1204 = vmatpush1.xpose.msra.mxu0 0.0
    %1205 = vmatprep.subr.mxu0 0.0
    %1206 = vmatpush1.xpose.msra.mxu0 0.0
    %1207 = vmatprep.subr.mxu0 0.0
    %1208 = vmatpush1.xpose.msra.mxu0 0.0
    %1209 = vmatprep.subr.mxu0 0.0
    %1210 = vmatpush1.xpose.msra.mxu0 0.0
    %1211 = vmatprep.subr.mxu0 0.0
    %1212 = vmatpush1.xpose.msra.mxu0 0.0
    %1213 = vmatprep.subr.mxu0 0.0
    %1214 = vmatpush1.xpose.msra.mxu0 0.0
    %1215 = vmatprep.subr.mxu0 0.0
    %1216 = vmatpush1.xpose.msra.mxu0 0.0
    %1217 = vmatprep.subr.mxu0 0.0
    %1218 = vmatpush1.xpose.msra.mxu0 0.0
    %1219 = vmatprep.subr.mxu0 0.0
    %1220 = vmatpush1.xpose.msra.mxu0 0.0
    %1221 = vmatprep.subr.mxu0 0.0
    %1222 = vmatpush1.xpose.msra.mxu0 0.0
    %1223 = vmatprep.subr.mxu0 0.0
    %1224 = vmatpush1.xpose.msra.mxu0 0.0
    %1225 = vmatprep.subr.mxu0 0.0
    %1226 = vmatpush1.xpose.msra.mxu0 0.0
    %1227 = vmatprep.subr.mxu0 0.0
    %1228 = vmatpush1.xpose.msra.mxu0 0.0
    %1229 = vmatprep.subr.mxu0 0.0
    %1230 = vmatpush1.xpose.msra.mxu0 0.0
    %1231 = vmatprep.subr.mxu0 0.0
    %1232 = vmatpush1.xpose.msra.mxu0 0.0
    %1233 = vmatprep.subr.mxu0 0.0
    %1234 = vmatpush1.xpose.msra.mxu0 0.0
    %1235 = vmatprep.subr.mxu0 0.0
    %1236 = vmatpush1.xpose.msra.mxu0 0.0
    %1237 = vmatprep.subr.mxu0 0.0
    %1238 = vmatpush1.xpose.msra.mxu0 0.0
    %1239 = vmatprep.subr.mxu0 0.0
    %1240 = vmatpush1.xpose.msra.mxu0 0.0
    %1241 = vmatprep.subr.mxu0 0.0
    %1242 = vmatpush1.xpose.msra.mxu0 0.0
    %1243 = vmatprep.subr.mxu0 0.0
    %1244 = vmatpush1.xpose.msra.mxu0 0.0
    %1245 = vmatprep.subr.mxu0 0.0
    %1246 = vmatpush1.xpose.msra.mxu0 0.0
    %1247 = vmatprep.subr.mxu0 0.0
    %1248 = vmatpush1.xpose.msra.mxu0 0.0
    %1249 = vmatprep.mubr.f32.mxu0 0.0
    %1250 = vmatmul.mubr.f32.gmra.mrb[0].mxu0 %v1181
    %v1251 = vpop.f32.mrb[0].mxu0
    %v1252 = vadd.f32 0.0, %v1251
    %v1253 = vpop.f32.mrb[0].mxu0
    %1254 = vdwg.mxu0
    %v1255 = vsel %vm169, %v1252, -inf
    %1256 = vmax.xlane.f32.xlu0 %v1255
    %v1257 = vpop.xlane.xlu0 %1256
    %v1258 = vsub.f32 %v1252, %v1257
    %v1259 = vmul.f32 %v1258, 1.442695
    %v1260 = vpow.pop %v1259
    %v1261 = vsel %vm169, %v1260, 0.0
    %1262 = vadd.xlane.f32.xlu0 %v1261
    %v1263 = vpop.xlane.xlu0 %1262
    %v1264 = vrcp.pop %v1263
    %v1265 = vmul.f32 %v1260, %v1264
    %1266 = vrot.lane.b32.xlu0 %v163, 48
    %v1267 = vpop.permute.xlu0 %1266
    %v1270 = vsel %vm169, %v1265, 0
    %1272 = vmatprep.subr.mxu0 0.0
    %1273 = vmatpush1.msra.mxu0 %v1267
    %1274 = vmatprep.subr.mxu0 0.0
    %1275 = vmatpush1.msra.mxu0 0.0
    %1276 = vmatprep.subr.mxu0 0.0
    %1277 = vmatpush1.msra.mxu0 0.0
    %1278 = vmatprep.subr.mxu0 0.0
    %1279 = vmatpush1.msra.mxu0 0.0
    %1280 = vmatprep.subr.mxu0 0.0
    %1281 = vmatpush1.msra.mxu0 0.0
    %1282 = vmatprep.subr.mxu0 0.0
    %1283 = vmatpush1.msra.mxu0 0.0
    %1284 = vmatprep.subr.mxu0 0.0
    %1285 = vmatpush1.msra.mxu0 0.0
    %1286 = vmatprep.subr.mxu0 0.0
    %1287 = vmatpush1.msra.mxu0 0.0
    %1288 = vmatprep.subr.mxu0 0.0
    %1289 = vmatpush1.msra.mxu0 0.0
    %1290 = vmatprep.subr.mxu0 0.0
    %1291 = vmatpush1.msra.mxu0 0.0
    %1292 = vmatprep.subr.mxu0 0.0
    %1293 = vmatpush1.msra.mxu0 0.0
    %1294 = vmatprep.subr.mxu0 0.0
    %1295 = vmatpush1.msra.mxu0 0.0
    %1296 = vmatprep.subr.mxu0 0.0
    %1297 = vmatpush1.msra.mxu0 0.0
    %1298 = vmatprep.subr.mxu0 0.0
    %1299 = vmatpush1.msra.mxu0 0.0
    %1300 = vmatprep.subr.mxu0 0.0
    %1301 = vmatpush1.msra.mxu0 0.0
    %1302 = vmatprep.subr.mxu0 0.0
    %1303 = vmatpush1.msra.mxu0 0.0
    %1304 = vmatprep.subr.mxu0 0.0
    %1305 = vmatpush1.msra.mxu0 0.0
    %1306 = vmatprep.subr.mxu0 0.0
    %1307 = vmatpush1.msra.mxu0 0.0
    %1308 = vmatprep.subr.mxu0 0.0
    %1309 = vmatpush1.msra.mxu0 0.0
    %1310 = vmatprep.subr.mxu0 0.0
    %1311 = vmatpush1.msra.mxu0 0.0
    %1312 = vmatprep.subr.mxu0 0.0
    %1313 = vmatpush1.msra.mxu0 0.0
    %1314 = vmatprep.subr.mxu0 0.0
    %1315 = vmatpush1.msra.mxu0 0.0
    %1316 = vmatprep.subr.mxu0 0.0
    %1317 = vmatpush1.msra.mxu0 0.0
    %1318 = vmatprep.subr.mxu0 0.0
    %1319 = vmatpush1.msra.mxu0 0.0
    %1320 = vmatprep.subr.mxu0 0.0
    %1321 = vmatpush1.msra.mxu0 0.0
    %1322 = vmatprep.subr.mxu0 0.0
    %1323 = vmatpush1.msra.mxu0 0.0
    %1324 = vmatprep.subr.mxu0 0.0
    %1325 = vmatpush1.msra.mxu0 0.0
    %1326 = vmatprep.subr.mxu0 0.0
    %1327 = vmatpush1.msra.mxu0 0.0
    %1328 = vmatprep.subr.mxu0 0.0
    %1329 = vmatpush1.msra.mxu0 0.0
    %1330 = vmatprep.subr.mxu0 0.0
    %1331 = vmatpush1.msra.mxu0 0.0
    %1332 = vmatprep.subr.mxu0 0.0
    %1333 = vmatpush1.msra.mxu0 0.0
    %1334 = vmatprep.subr.mxu0 0.0
    %1335 = vmatpush1.msra.mxu0 0.0
    %1336 = vmatprep.mubr.f32.mxu0 0.0
    %1337 = vmatmul.mubr.f32.gmra.mrb[0].mxu0 %v1270
    %v1338 = vpop.f32.mrb[0].mxu0
    %v1339 = vadd.f32 0.0, %v1338
    %v1340 = vpop.f32.mrb[0].mxu0
    %1341 = vdwg.mxu0
    %1342 = vrot.lane.b32.xlu0 %v163, 104
    %v1343 = vpop.permute.xlu0 %1342
    %1344 = vrot.lane.b32.xlu0 %v163, 72
    %v1345 = vpop.permute.xlu0 %1344
    %v1346 = vsel %vm169, %v1343, 0
    %v1348 = vsel %vm169, %v1345, 0
    %1350 = vmatprep.subr.mxu0 0.0
    %1351 = vmatpush1.xpose.msra.mxu0 %v1348
    %1352 = vmatprep.subr.mxu0 0.0
    %1353 = vmatpush1.xpose.msra.mxu0 0.0
    %1354 = vmatprep.subr.mxu0 0.0
    %1355 = vmatpush1.xpose.msra.mxu0 0.0
    %1356 = vmatprep.subr.mxu0 0.0
    %1357 = vmatpush1.xpose.msra.mxu0 0.0
    %1358 = vmatprep.subr.mxu0 0.0
    %1359 = vmatpush1.xpose.msra.mxu0 0.0
    %1360 = vmatprep.subr.mxu0 0.0
    %1361 = vmatpush1.xpose.msra.mxu0 0.0
    %1362 = vmatprep.subr.mxu0 0.0
    %1363 = vmatpush1.xpose.msra.mxu0 0.0
    %1364 = vmatprep.subr.mxu0 0.0
    %1365 = vmatpush1.xpose.msra.mxu0 0.0
    %1366 = vmatprep.subr.mxu0 0.0
    %1367 = vmatpush1.xpose.msra.mxu0 0.0
    %1368 = vmatprep.subr.mxu0 0.0
    %1369 = vmatpush1.xpose.msra.mxu0 0.0
    %1370 = vmatprep.subr.mxu0 0.0
    %1371 = vmatpush1.xpose.msra.mxu0 0.0
    %1372 = vmatprep.subr.mxu0 0.0
    %1373 = vmatpush1.xpose.msra.mxu0 0.0
    %1374 = vmatprep.subr.mxu0 0.0
    %1375 = vmatpush1.xpose.msra.mxu0 0.0
    %1376 = vmatprep.subr.mxu0 0.0
    %1377 = vmatpush1.xpose.msra.mxu0 0.0
    %1378 = vmatprep.subr.mxu0 0.0
    %1379 = vmatpush1.xpose.msra.mxu0 0.0
    %1380 = vmatprep.subr.mxu0 0.0
    %1381 = vmatpush1.xpose.msra.mxu0 0.0
    %1382 = vmatprep.subr.mxu0 0.0
    %1383 = vmatpush1.xpose.msra.mxu0 0.0
    %1384 = vmatprep.subr.mxu0 0.0
    %1385 = vmatpush1.xpose.msra.mxu0 0.0
    %1386 = vmatprep.subr.mxu0 0.0
    %1387 = vmatpush1.xpose.msra.mxu0 0.0
    %1388 = vmatprep.subr.mxu0 0.0
    %1389 = vmatpush1.xpose.msra.mxu0 0.0
    %1390 = vmatprep.subr.mxu0 0.0
    %1391 = vmatpush1.xpose.msra.mxu0 0.0
    %1392 = vmatprep.subr.mxu0 0.0
    %1393 = vmatpush1.xpose.msra.mxu0 0.0
    %1394 = vmatprep.subr.mxu0 0.0
    %1395 = vmatpush1.xpose.msra.mxu0 0.0
    %1396 = vmatprep.subr.mxu0 0.0
    %1397 = vmatpush1.xpose.msra.mxu0 0.0
    %1398 = vmatprep.subr.mxu0 0.0
    %1399 = vmatpush1.xpose.msra.mxu0 0.0
    %1400 = vmatprep.subr.mxu0 0.0
    %1401 = vmatpush1.xpose.msra.mxu0 0.0
    %1402 = vmatprep.subr.mxu0 0.0
    %1403 = vmatpush1.xpose.msra.mxu0 0.0
    %1404 = vmatprep.subr.mxu0 0.0
    %1405 = vmatpush1.xpose.msra.mxu0 0.0
    %1406 = vmatprep.subr.mxu0 0.0
    %1407 = vmatpush1.xpose.msra.mxu0 0.0
    %1408 = vmatprep.subr.mxu0 0.0
    %1409 = vmatpush1.xpose.msra.mxu0 0.0
    %1410 = vmatprep.subr.mxu0 0.0
    %1411 = vmatpush1.xpose.msra.mxu0 0.0
    %1412 = vmatprep.subr.mxu0 0.0
    %1413 = vmatpush1.xpose.msra.mxu0 0.0
    %1414 = vmatprep.mubr.f32.mxu0 0.0
    %1415 = vmatmul.mubr.f32.gmra.mrb[0].mxu0 %v1346
    %v1416 = vpop.f32.mrb[0].mxu0
    %v1417 = vadd.f32 0.0, %v1416
    %v1418 = vpop.f32.mrb[0].mxu0
    %1419 = vdwg.mxu0
    %v1420 = vsel %vm169, %v1417, -inf
    %1421 = vmax.xlane.f32.xlu0 %v1420
    %v1422 = vpop.xlane.xlu0 %1421
    %v1423 = vsub.f32 %v1417, %v1422
    %v1424 = vmul.f32 %v1423, 1.442695
    %v1425 = vpow.pop %v1424
    %v1426 = vsel %vm169, %v1425, 0.0
    %1427 = vadd.xlane.f32.xlu0 %v1426
    %v1428 = vpop.xlane.xlu0 %1427
    %v1429 = vrcp.pop %v1428
    %v1430 = vmul.f32 %v1425, %v1429
    %1431 = vrot.lane.b32.xlu0 %v163, 40
    %v1432 = vpop.permute.xlu0 %1431
    %v1435 = vsel %vm169, %v1430, 0
    %1437 = vmatprep.subr.mxu0 0.0
    %1438 = vmatpush1.msra.mxu0 %v1432
    %1439 = vmatprep.subr.mxu0 0.0
    %1440 = vmatpush1.msra.mxu0 0.0
    %1441 = vmatprep.subr.mxu0 0.0
    %1442 = vmatpush1.msra.mxu0 0.0
    %1443 = vmatprep.subr.mxu0 0.0
    %1444 = vmatpush1.msra.mxu0 0.0
    %1445 = vmatprep.subr.mxu0 0.0
    %1446 = vmatpush1.msra.mxu0 0.0
    %1447 = vmatprep.subr.mxu0 0.0
    %1448 = vmatpush1.msra.mxu0 0.0
    %1449 = vmatprep.subr.mxu0 0.0
    %1450 = vmatpush1.msra.mxu0 0.0
    %1451 = vmatprep.subr.mxu0 0.0
    %1452 = vmatpush1.msra.mxu0 0.0
    %1453 = vmatprep.subr.mxu0 0.0
    %1454 = vmatpush1.msra.mxu0 0.0
    %1455 = vmatprep.subr.mxu0 0.0
    %1456 = vmatpush1.msra.mxu0 0.0
    %1457 = vmatprep.subr.mxu0 0.0
    %1458 = vmatpush1.msra.mxu0 0.0
    %1459 = vmatprep.subr.mxu0 0.0
    %1460 = vmatpush1.msra.mxu0 0.0
    %1461 = vmatprep.subr.mxu0 0.0
    %1462 = vmatpush1.msra.mxu0 0.0
    %1463 = vmatprep.subr.mxu0 0.0
    %1464 = vmatpush1.msra.mxu0 0.0
    %1465 = vmatprep.subr.mxu0 0.0
    %1466 = vmatpush1.msra.mxu0 0.0
    %1467 = vmatprep.subr.mxu0 0.0
    %1468 = vmatpush1.msra.mxu0 0.0
    %1469 = vmatprep.subr.mxu0 0.0
    %1470 = vmatpush1.msra.mxu0 0.0
    %1471 = vmatprep.subr.mxu0 0.0
    %1472 = vmatpush1.msra.mxu0 0.0
    %1473 = vmatprep.subr.mxu0 0.0
    %1474 = vmatpush1.msra.mxu0 0.0
    %1475 = vmatprep.subr.mxu0 0.0
    %1476 = vmatpush1.msra.mxu0 0.0
    %1477 = vmatprep.subr.mxu0 0.0
    %1478 = vmatpush1.msra.mxu0 0.0
    %1479 = vmatprep.subr.mxu0 0.0
    %1480 = vmatpush1.msra.mxu0 0.0
    %1481 = vmatprep.subr.mxu0 0.0
    %1482 = vmatpush1.msra.mxu0 0.0
    %1483 = vmatprep.subr.mxu0 0.0
    %1484 = vmatpush1.msra.mxu0 0.0
    %1485 = vmatprep.subr.mxu0 0.0
    %1486 = vmatpush1.msra.mxu0 0.0
    %1487 = vmatprep.subr.mxu0 0.0
    %1488 = vmatpush1.msra.mxu0 0.0
    %1489 = vmatprep.subr.mxu0 0.0
    %1490 = vmatpush1.msra.mxu0 0.0
    %1491 = vmatprep.subr.mxu0 0.0
    %1492 = vmatpush1.msra.mxu0 0.0
    %1493 = vmatprep.subr.mxu0 0.0
    %1494 = vmatpush1.msra.mxu0 0.0
    %1495 = vmatprep.subr.mxu0 0.0
    %1496 = vmatpush1.msra.mxu0 0.0
    %1497 = vmatprep.subr.mxu0 0.0
    %1498 = vmatpush1.msra.mxu0 0.0
    %1499 = vmatprep.subr.mxu0 0.0
    %1500 = vmatpush1.msra.mxu0 0.0
    %1501 = vmatprep.mubr.f32.mxu0 0.0
    %1502 = vmatmul.mubr.f32.gmra.mrb[0].mxu0 %v1435
    %v1503 = vpop.f32.mrb[0].mxu0
    %v1504 = vadd.f32 0.0, %v1503
    %v1505 = vpop.f32.mrb[0].mxu0
    %1506 = vdwg.mxu0
    %v1507 = vadd.f32 %v935, %v1100
    %v1508 = vadd.f32 %v1507, %v1265
    %v1509 = vadd.f32 %v1508, %v1430
    %v1510 = vmul.f32 %v1509, 0.25
    %s1511 = scalar_lea.vmem [#allocation4], 8
    %1512 = vst.msk [vmem:[%s1511] sm:$0xff] %vm169, %v1510
    %1514 = vrot.lane.b32.xlu0 %v1174, 8
    %v1515 = vpop.permute.xlu0 %1514
    %1518 = vrot.lane.b32.xlu0 %v1339, 16
    %v1519 = vpop.permute.xlu0 %1518
    %1522 = vrot.lane.b32.xlu0 %v1504, 24
    %v1523 = vpop.permute.xlu0 %1522
    %v1525 = vsel %vm169, %v1009, %v1515
    %v1526 = vsel %vm844, %v1525, %v1519
    %v1527 = vsel %vm846, %v1526, %v1523
    %v1529 = vlaneseq
    %v1530 = vshrl.u32 %v1529, 7
    %v1531 = vsub.s32 0, %v1530
    %v1532 = vrot.slane %v63, %v1531
    %v1535 = vsel %vm84, %v847, 0
    %v1538 = vsel %vm84, %v1527, 0
    %1540 = vmatprep.subr.mxu0 0.0
    %1541 = vmatpush1.msra.mxu0 %v59
    %1542 = vmatprep.subr.mxu0 0.0
    %1543 = vmatpush1.msra.mxu0 %v60
    %1544 = vmatprep.subr.mxu0 0.0
    %1545 = vmatpush1.msra.mxu0 %v61
    %1546 = vmatprep.subr.mxu0 0.0
    %1547 = vmatpush1.msra.mxu0 %v62
    %1548 = vmatprep.subr.mxu0 0.0
    %1549 = vmatpush1.msra.mxu0 0.0
    %1550 = vmatprep.subr.mxu0 0.0
    %1551 = vmatpush1.msra.mxu0 0.0
    %1552 = vmatprep.subr.mxu0 0.0
    %1553 = vmatpush1.msra.mxu0 0.0
    %1554 = vmatprep.subr.mxu0 0.0
    %1555 = vmatpush1.msra.mxu0 0.0
    %1556 = vmatprep.subr.mxu0 0.0
    %1557 = vmatpush1.msra.mxu0 0.0
    %1558 = vmatprep.subr.mxu0 0.0
    %1559 = vmatpush1.msra.mxu0 0.0
    %1560 = vmatprep.subr.mxu0 0.0
    %1561 = vmatpush1.msra.mxu0 0.0
    %1562 = vmatprep.subr.mxu0 0.0
    %1563 = vmatpush1.msra.mxu0 0.0
    %1564 = vmatprep.subr.mxu0 0.0
    %1565 = vmatpush1.msra.mxu0 0.0
    %1566 = vmatprep.subr.mxu0 0.0
    %1567 = vmatpush1.msra.mxu0 0.0
    %1568 = vmatprep.subr.mxu0 0.0
    %1569 = vmatpush1.msra.mxu0 0.0
    %1570 = vmatprep.subr.mxu0 0.0
    %1571 = vmatpush1.msra.mxu0 0.0
    %1572 = vmatprep.subr.mxu0 0.0
    %1573 = vmatpush1.msra.mxu0 0.0
    %1574 = vmatprep.subr.mxu0 0.0
    %1575 = vmatpush1.msra.mxu0 0.0
    %1576 = vmatprep.subr.mxu0 0.0
    %1577 = vmatpush1.msra.mxu0 0.0
    %1578 = vmatprep.subr.mxu0 0.0
    %1579 = vmatpush1.msra.mxu0 0.0
    %1580 = vmatprep.subr.mxu0 0.0
    %1581 = vmatpush1.msra.mxu0 0.0
    %1582 = vmatprep.subr.mxu0 0.0
    %1583 = vmatpush1.msra.mxu0 0.0
    %1584 = vmatprep.subr.mxu0 0.0
    %1585 = vmatpush1.msra.mxu0 0.0
    %1586 = vmatprep.subr.mxu0 0.0
    %1587 = vmatpush1.msra.mxu0 0.0
    %1588 = vmatprep.subr.mxu0 0.0
    %1589 = vmatpush1.msra.mxu0 0.0
    %1590 = vmatprep.subr.mxu0 0.0
    %1591 = vmatpush1.msra.mxu0 0.0
    %1592 = vmatprep.subr.mxu0 0.0
    %1593 = vmatpush1.msra.mxu0 0.0
    %1594 = vmatprep.subr.mxu0 0.0
    %1595 = vmatpush1.msra.mxu0 0.0
    %1596 = vmatprep.subr.mxu0 0.0
    %1597 = vmatpush1.msra.mxu0 0.0
    %1598 = vmatprep.subr.mxu0 0.0
    %1599 = vmatpush1.msra.mxu0 0.0
    %1600 = vmatprep.subr.mxu0 0.0
    %1601 = vmatpush1.msra.mxu0 0.0
    %1602 = vmatprep.subr.mxu0 0.0
    %1603 = vmatpush1.msra.mxu0 0.0
    %1604 = vmatprep.mubr.f32.mxu0 0.0
    %1605 = vmatmul.mubr.f32.gmra.mrb[0].mxu0 %v1535
    %v1606 = vpop.f32.mrb[0].mxu0
    %v1607 = vadd.f32 %v1532, %v1606
    %v1608 = vpop.f32.mrb[0].mxu0
    %1609 = vmatprep.mubr.f32.mxu0 0.0
    %1610 = vmatmul.mubr.f32.gmra.mrb[0].mxu0 %v1538
    %v1611 = vpop.f32.mrb[0].mxu0
    %v1612 = vadd.f32 %v1532, %v1611
    %v1613 = vpop.f32.mrb[0].mxu0
    %1614 = vdwg.mxu0
    %v1615 = vld [vmem:[%s1] sm:$0xff]
    %v1617 = vsel %vm169, %v1615, 0
    %1619 = vmatprep.subr.mxu0 0.0
    %1620 = vmatpush1.msra.mxu0 %v1607
    %1621 = vmatprep.subr.mxu0 0.0
    %1622 = vmatpush1.msra.mxu0 0.0
    %1623 = vmatprep.subr.mxu0 0.0
    %1624 = vmatpush1.msra.mxu0 0.0
    %1625 = vmatprep.subr.mxu0 0.0
    %1626 = vmatpush1.msra.mxu0 0.0
    %1627 = vmatprep.subr.mxu0 0.0
    %1628 = vmatpush1.msra.mxu0 0.0
    %1629 = vmatprep.subr.mxu0 0.0
    %1630 = vmatpush1.msra.mxu0 0.0
    %1631 = vmatprep.subr.mxu0 0.0
    %1632 = vmatpush1.msra.mxu0 0.0
    %1633 = vmatprep.subr.mxu0 0.0
    %1634 = vmatpush1.msra.mxu0 0.0
    %1635 = vmatprep.subr.mxu0 0.0
    %1636 = vmatpush1.msra.mxu0 0.0
    %1637 = vmatprep.subr.mxu0 0.0
    %1638 = vmatpush1.msra.mxu0 0.0
    %1639 = vmatprep.subr.mxu0 0.0
    %1640 = vmatpush1.msra.mxu0 0.0
    %1641 = vmatprep.subr.mxu0 0.0
    %1642 = vmatpush1.msra.mxu0 0.0
    %1643 = vmatprep.subr.mxu0 0.0
    %1644 = vmatpush1.msra.mxu0 0.0
    %1645 = vmatprep.subr.mxu0 0.0
    %1646 = vmatpush1.msra.mxu0 0.0
    %1647 = vmatprep.subr.mxu0 0.0
    %1648 = vmatpush1.msra.mxu0 0.0
    %1649 = vmatprep.subr.mxu0 0.0
    %1650 = vmatpush1.msra.mxu0 0.0
    %1651 = vmatprep.subr.mxu0 0.0
    %1652 = vmatpush1.msra.mxu0 0.0
    %1653 = vmatprep.subr.mxu0 0.0
    %1654 = vmatpush1.msra.mxu0 0.0
    %1655 = vmatprep.subr.mxu0 0.0
    %1656 = vmatpush1.msra.mxu0 0.0
    %1657 = vmatprep.subr.mxu0 0.0
    %1658 = vmatpush1.msra.mxu0 0.0
    %1659 = vmatprep.subr.mxu0 0.0
    %1660 = vmatpush1.msra.mxu0 0.0
    %1661 = vmatprep.subr.mxu0 0.0
    %1662 = vmatpush1.msra.mxu0 0.0
    %1663 = vmatprep.subr.mxu0 0.0
    %1664 = vmatpush1.msra.mxu0 0.0
    %1665 = vmatprep.subr.mxu0 0.0
    %1666 = vmatpush1.msra.mxu0 0.0
    %1667 = vmatprep.subr.mxu0 0.0
    %1668 = vmatpush1.msra.mxu0 0.0
    %1669 = vmatprep.subr.mxu0 0.0
    %1670 = vmatpush1.msra.mxu0 0.0
    %1671 = vmatprep.subr.mxu0 0.0
    %1672 = vmatpush1.msra.mxu0 0.0
    %1673 = vmatprep.subr.mxu0 0.0
    %1674 = vmatpush1.msra.mxu0 0.0
    %1675 = vmatprep.subr.mxu0 0.0
    %1676 = vmatpush1.msra.mxu0 0.0
    %1677 = vmatprep.subr.mxu0 0.0
    %1678 = vmatpush1.msra.mxu0 0.0
    %1679 = vmatprep.subr.mxu0 0.0
    %1680 = vmatpush1.msra.mxu0 0.0
    %1681 = vmatprep.subr.mxu0 0.0
    %1682 = vmatpush1.msra.mxu0 0.0
    %1683 = vmatprep.mubr.f32.mxu0 0.0
    %1684 = vmatmul.mubr.f32.gmra.mrb[0].mxu0 %v1617
    %v1685 = vpop.f32.mrb[0].mxu0
    %v1686 = vadd.f32 0.0, %v1685
    %v1687 = vpop.f32.mrb[0].mxu0
    %1688 = vdwg.mxu0
    %s1689 = scalar_lea.vmem %s1, 8
    %v1690 = vld [vmem:[%s1689] sm:$0xff]
    %v1692 = vsel %vm169, %v1690, 0
    %1694 = vmatprep.subr.mxu0 0.0
    %1695 = vmatpush1.msra.mxu0 %v1612
    %1696 = vmatprep.subr.mxu0 0.0
    %1697 = vmatpush1.msra.mxu0 0.0
    %1698 = vmatprep.subr.mxu0 0.0
    %1699 = vmatpush1.msra.mxu0 0.0
    %1700 = vmatprep.subr.mxu0 0.0
    %1701 = vmatpush1.msra.mxu0 0.0
    %1702 = vmatprep.subr.mxu0 0.0
    %1703 = vmatpush1.msra.mxu0 0.0
    %1704 = vmatprep.subr.mxu0 0.0
    %1705 = vmatpush1.msra.mxu0 0.0
    %1706 = vmatprep.subr.mxu0 0.0
    %1707 = vmatpush1.msra.mxu0 0.0
    %1708 = vmatprep.subr.mxu0 0.0
    %1709 = vmatpush1.msra.mxu0 0.0
    %1710 = vmatprep.subr.mxu0 0.0
    %1711 = vmatpush1.msra.mxu0 0.0
    %1712 = vmatprep.subr.mxu0 0.0
    %1713 = vmatpush1.msra.mxu0 0.0
    %1714 = vmatprep.subr.mxu0 0.0
    %1715 = vmatpush1.msra.mxu0 0.0
    %1716 = vmatprep.subr.mxu0 0.0
    %1717 = vmatpush1.msra.mxu0 0.0
    %1718 = vmatprep.subr.mxu0 0.0
    %1719 = vmatpush1.msra.mxu0 0.0
    %1720 = vmatprep.subr.mxu0 0.0
    %1721 = vmatpush1.msra.mxu0 0.0
    %1722 = vmatprep.subr.mxu0 0.0
    %1723 = vmatpush1.msra.mxu0 0.0
    %1724 = vmatprep.subr.mxu0 0.0
    %1725 = vmatpush1.msra.mxu0 0.0
    %1726 = vmatprep.subr.mxu0 0.0
    %1727 = vmatpush1.msra.mxu0 0.0
    %1728 = vmatprep.subr.mxu0 0.0
    %1729 = vmatpush1.msra.mxu0 0.0
    %1730 = vmatprep.subr.mxu0 0.0
    %1731 = vmatpush1.msra.mxu0 0.0
    %1732 = vmatprep.subr.mxu0 0.0
    %1733 = vmatpush1.msra.mxu0 0.0
    %1734 = vmatprep.subr.mxu0 0.0
    %1735 = vmatpush1.msra.mxu0 0.0
    %1736 = vmatprep.subr.mxu0 0.0
    %1737 = vmatpush1.msra.mxu0 0.0
    %1738 = vmatprep.subr.mxu0 0.0
    %1739 = vmatpush1.msra.mxu0 0.0
    %1740 = vmatprep.subr.mxu0 0.0
    %1741 = vmatpush1.msra.mxu0 0.0
    %1742 = vmatprep.subr.mxu0 0.0
    %1743 = vmatpush1.msra.mxu0 0.0
    %1744 = vmatprep.subr.mxu0 0.0
    %1745 = vmatpush1.msra.mxu0 0.0
    %1746 = vmatprep.subr.mxu0 0.0
    %1747 = vmatpush1.msra.mxu0 0.0
    %1748 = vmatprep.subr.mxu0 0.0
    %1749 = vmatpush1.msra.mxu0 0.0
    %1750 = vmatprep.subr.mxu0 0.0
    %1751 = vmatpush1.msra.mxu0 0.0
    %1752 = vmatprep.subr.mxu0 0.0
    %1753 = vmatpush1.msra.mxu0 0.0
    %1754 = vmatprep.subr.mxu0 0.0
    %1755 = vmatpush1.msra.mxu0 0.0
    %1756 = vmatprep.subr.mxu0 0.0
    %1757 = vmatpush1.msra.mxu0 0.0
    %1758 = vmatprep.mubr.f32.mxu0 0.0
    %1759 = vmatmul.mubr.f32.gmra.mrb[0].mxu0 %v1692
    %v1760 = vpop.f32.mrb[0].mxu0
    %v1761 = vadd.f32 0.0, %v1760
    %v1762 = vpop.f32.mrb[0].mxu0
    %1763 = vdwg.mxu0
    %v1764 = vadd.f32 %v51, %v1686
    %v1765 = vadd.f32 %v53, %v1761
    %v1766 = vsel %vm84, %v1764, 0.0
    %1767 = vadd.xlane.f32.xlu0 %v1766
    %v1768 = vpop.xlane.xlu0 %1767
    %v1769 = vsel %vm84, %v1765, 0.0
    %1770 = vadd.xlane.f32.xlu0 %v1769
    %v1771 = vpop.xlane.xlu0 %1770
    %v1772 = vrcp.pop 32.0
    %v1773 = vmul.f32 %v1768, %v1772
    %v1774 = vmul.f32 %v1771, %v1772
    %v1775 = vsub.f32 %v1764, %v1773
    %v1776 = vsub.f32 %v1765, %v1774
    %v1777 = vmul.f32 %v1775, %v1775
    %v1778 = vmul.f32 %v1776, %v1776
    %v1779 = vsel %vm84, %v1777, 0.0
    %1780 = vadd.xlane.f32.xlu0 %v1779
    %v1781 = vpop.xlane.xlu0 %1780
    %v1782 = vsel %vm84, %v1778, 0.0
    %1783 = vadd.xlane.f32.xlu0 %v1782
    %v1784 = vpop.xlane.xlu0 %1783
    %v1785 = vmul.f32 %v1781, %v1772
    %v1786 = vmul.f32 %v1784, %v1772
    %v1787 = vadd.f32 %v1785, 1e-05
    %v1788 = vadd.f32 %v1786, 1e-05
    %v1789 = vrsqrt.pop %v1787
    %v1790 = vrsqrt.pop %v1788
    %v1791 = vmul.f32 %v1775, %v1789
    %v1792 = vmul.f32 %v1776, %v1790
    %v1794 = vlaneseq
    %v1795 = vshrl.u32 %v1794, 7
    %v1796 = vsub.s32 0, %v1795
    %v1797 = vrot.slane %v74, %v1796
    %v1799 = vmul.f32 %v1791, %v1797
    %v1800 = vmul.f32 %v1792, %v1797
    %v1802 = vlaneseq
    %v1803 = vshrl.u32 %v1802, 7
    %v1804 = vsub.s32 0, %v1803
    %v1805 = vrot.slane %v75, %v1804
    %v1807 = vadd.f32 %v1799, %v1805
    %v1808 = vadd.f32 %v1800, %v1805
    %v1810 = vlaneseq
    %v1811 = vshrl.u32 %v1810, 7
    %v1812 = vsub.s32 0, %v1811
    %v1813 = vrot.slane %v68, %v1812
    %v1816 = vsel %vm84, %v1807, 0
    %v1819 = vsel %vm84, %v1808, 0
    %1821 = vmatprep.subr.mxu0 0.0
    %1822 = vmatpush1.msra.mxu0 %v64
    %1823 = vmatprep.subr.mxu0 0.0
    %1824 = vmatpush1.msra.mxu0 %v65
    %1825 = vmatprep.subr.mxu0 0.0
    %1826 = vmatpush1.msra.mxu0 %v66
    %1827 = vmatprep.subr.mxu0 0.0
    %1828 = vmatpush1.msra.mxu0 %v67
    %1829 = vmatprep.subr.mxu0 0.0
    %1830 = vmatpush1.msra.mxu0 0.0
    %1831 = vmatprep.subr.mxu0 0.0
    %1832 = vmatpush1.msra.mxu0 0.0
    %1833 = vmatprep.subr.mxu0 0.0
    %1834 = vmatpush1.msra.mxu0 0.0
    %1835 = vmatprep.subr.mxu0 0.0
    %1836 = vmatpush1.msra.mxu0 0.0
    %1837 = vmatprep.subr.mxu0 0.0
    %1838 = vmatpush1.msra.mxu0 0.0
    %1839 = vmatprep.subr.mxu0 0.0
    %1840 = vmatpush1.msra.mxu0 0.0
    %1841 = vmatprep.subr.mxu0 0.0
    %1842 = vmatpush1.msra.mxu0 0.0
    %1843 = vmatprep.subr.mxu0 0.0
    %1844 = vmatpush1.msra.mxu0 0.0
    %1845 = vmatprep.subr.mxu0 0.0
    %1846 = vmatpush1.msra.mxu0 0.0
    %1847 = vmatprep.subr.mxu0 0.0
    %1848 = vmatpush1.msra.mxu0 0.0
    %1849 = vmatprep.subr.mxu0 0.0
    %1850 = vmatpush1.msra.mxu0 0.0
    %1851 = vmatprep.subr.mxu0 0.0
    %1852 = vmatpush1.msra.mxu0 0.0
    %1853 = vmatprep.subr.mxu0 0.0
    %1854 = vmatpush1.msra.mxu0 0.0
    %1855 = vmatprep.subr.mxu0 0.0
    %1856 = vmatpush1.msra.mxu0 0.0
    %1857 = vmatprep.subr.mxu0 0.0
    %1858 = vmatpush1.msra.mxu0 0.0
    %1859 = vmatprep.subr.mxu0 0.0
    %1860 = vmatpush1.msra.mxu0 0.0
    %1861 = vmatprep.subr.mxu0 0.0
    %1862 = vmatpush1.msra.mxu0 0.0
    %1863 = vmatprep.subr.mxu0 0.0
    %1864 = vmatpush1.msra.mxu0 0.0
    %1865 = vmatprep.subr.mxu0 0.0
    %1866 = vmatpush1.msra.mxu0 0.0
    %1867 = vmatprep.subr.mxu0 0.0
    %1868 = vmatpush1.msra.mxu0 0.0
    %1869 = vmatprep.subr.mxu0 0.0
    %1870 = vmatpush1.msra.mxu0 0.0
    %1871 = vmatprep.subr.mxu0 0.0
    %1872 = vmatpush1.msra.mxu0 0.0
    %1873 = vmatprep.subr.mxu0 0.0
    %1874 = vmatpush1.msra.mxu0 0.0
    %1875 = vmatprep.subr.mxu0 0.0
    %1876 = vmatpush1.msra.mxu0 0.0
    %1877 = vmatprep.subr.mxu0 0.0
    %1878 = vmatpush1.msra.mxu0 0.0
    %1879 = vmatprep.subr.mxu0 0.0
    %1880 = vmatpush1.msra.mxu0 0.0
    %1881 = vmatprep.subr.mxu0 0.0
    %1882 = vmatpush1.msra.mxu0 0.0
    %1883 = vmatprep.subr.mxu0 0.0
    %1884 = vmatpush1.msra.mxu0 0.0
    %1885 = vmatprep.mubr.f32.mxu0 0.0
    %1886 = vmatmul.mubr.f32.gmra.mrb[0].mxu0 %v1816
    %v1887 = vpop.f32.mrb[0].mxu0
    %v1888 = vadd.f32 %v1813, %v1887
    %v1889 = vpop.f32.mrb[0].mxu0
    %1890 = vmatprep.mubr.f32.mxu0 0.0
    %1891 = vmatmul.mubr.f32.gmra.mrb[0].mxu0 %v1819
    %v1892 = vpop.f32.mrb[0].mxu0
    %v1893 = vadd.f32 %v1813, %v1892
    %v1894 = vpop.f32.mrb[0].mxu0
    %1895 = vdwg.mxu0
    %v1896 = vmul.f32 %v1888, 0.5
    %v1897 = vmul.f32 %v1893, 0.5
    %v1898 = vmul.f32 %v1888, 0.70710677
    %v1899 = vmul.f32 %v1893, 0.70710677
    %v1900 = verf.f32.pop %v1898
    %v1901 = verf.f32.pop %v1899
    %v1902 = vadd.f32 %v1900, 1.0
    %v1903 = vadd.f32 %v1901, 1.0
    %v1904 = vmul.f32 %v1896, %v1902
    %v1905 = vmul.f32 %v1897, %v1903
    %v1907 = vlaneseq
    %v1908 = vshrl.u32 %v1907, 7
    %v1909 = vsub.s32 0, %v1908
    %v1910 = vrot.slane %v73, %v1909
    %v1913 = vsel %vm84, %v1904, 0
    %v1916 = vsel %vm84, %v1905, 0
    %1918 = vmatprep.subr.mxu0 0.0
    %1919 = vmatpush1.msra.mxu0 %v69
    %1920 = vmatprep.subr.mxu0 0.0
    %1921 = vmatpush1.msra.mxu0 %v70
    %1922 = vmatprep.subr.mxu0 0.0
    %1923 = vmatpush1.msra.mxu0 %v71
    %1924 = vmatprep.subr.mxu0 0.0
    %1925 = vmatpush1.msra.mxu0 %v72
    %1926 = vmatprep.subr.mxu0 0.0
    %1927 = vmatpush1.msra.mxu0 0.0
    %1928 = vmatprep.subr.mxu0 0.0
    %1929 = vmatpush1.msra.mxu0 0.0
    %1930 = vmatprep.subr.mxu0 0.0
    %1931 = vmatpush1.msra.mxu0 0.0
    %1932 = vmatprep.subr.mxu0 0.0
    %1933 = vmatpush1.msra.mxu0 0.0
    %1934 = vmatprep.subr.mxu0 0.0
    %1935 = vmatpush1.msra.mxu0 0.0
    %1936 = vmatprep.subr.mxu0 0.0
    %1937 = vmatpush1.msra.mxu0 0.0
    %1938 = vmatprep.subr.mxu0 0.0
    %1939 = vmatpush1.msra.mxu0 0.0
    %1940 = vmatprep.subr.mxu0 0.0
    %1941 = vmatpush1.msra.mxu0 0.0
    %1942 = vmatprep.subr.mxu0 0.0
    %1943 = vmatpush1.msra.mxu0 0.0
    %1944 = vmatprep.subr.mxu0 0.0
    %1945 = vmatpush1.msra.mxu0 0.0
    %1946 = vmatprep.subr.mxu0 0.0
    %1947 = vmatpush1.msra.mxu0 0.0
    %1948 = vmatprep.subr.mxu0 0.0
    %1949 = vmatpush1.msra.mxu0 0.0
    %1950 = vmatprep.subr.mxu0 0.0
    %1951 = vmatpush1.msra.mxu0 0.0
    %1952 = vmatprep.subr.mxu0 0.0
    %1953 = vmatpush1.msra.mxu0 0.0
    %1954 = vmatprep.subr.mxu0 0.0
    %1955 = vmatpush1.msra.mxu0 0.0
    %1956 = vmatprep.subr.mxu0 0.0
    %1957 = vmatpush1.msra.mxu0 0.0
    %1958 = vmatprep.subr.mxu0 0.0
    %1959 = vmatpush1.msra.mxu0 0.0
    %1960 = vmatprep.subr.mxu0 0.0
    %1961 = vmatpush1.msra.mxu0 0.0
    %1962 = vmatprep.subr.mxu0 0.0
    %1963 = vmatpush1.msra.mxu0 0.0
    %1964 = vmatprep.subr.mxu0 0.0
    %1965 = vmatpush1.msra.mxu0 0.0
    %1966 = vmatprep.subr.mxu0 0.0
    %1967 = vmatpush1.msra.mxu0 0.0
    %1968 = vmatprep.subr.mxu0 0.0
    %1969 = vmatpush1.msra.mxu0 0.0
    %1970 = vmatprep.subr.mxu0 0.0
    %1971 = vmatpush1.msra.mxu0 0.0
    %1972 = vmatprep.subr.mxu0 0.0
    %1973 = vmatpush1.msra.mxu0 0.0
    %1974 = vmatprep.subr.mxu0 0.0
    %1975 = vmatpush1.msra.mxu0 0.0
    %1976 = vmatprep.subr.mxu0 0.0
    %1977 = vmatpush1.msra.mxu0 0.0
    %1978 = vmatprep.subr.mxu0 0.0
    %1979 = vmatpush1.msra.mxu0 0.0
    %1980 = vmatprep.subr.mxu0 0.0
    %1981 = vmatpush1.msra.mxu0 0.0
    %1982 = vmatprep.mubr.f32.mxu0 0.0
    %1983 = vmatmul.mubr.f32.gmra.mrb[0].mxu0 %v1913
    %v1984 = vpop.f32.mrb[0].mxu0
    %v1985 = vadd.f32 %v1910, %v1984
    %v1986 = vpop.f32.mrb[0].mxu0
    %1987 = vmatprep.mubr.f32.mxu0 0.0
    %1988 = vmatmul.mubr.f32.gmra.mrb[0].mxu0 %v1916
    %v1989 = vpop.f32.mrb[0].mxu0
    %v1990 = vadd.f32 %v1910, %v1989
    %v1991 = vpop.f32.mrb[0].mxu0
    %1992 = vdwg.mxu0
    %v1993 = vadd.f32 %v1807, %v1985
    %v1994 = vadd.f32 %v1808, %v1990
    %v1995 = vsel %vm84, %v1993, 0.0
    %1996 = vadd.xlane.f32.xlu0 %v1995
    %v1997 = vpop.xlane.xlu0 %1996
    %v1998 = vsel %vm84, %v1994, 0.0
    %1999 = vadd.xlane.f32.xlu0 %v1998
    %v2000 = vpop.xlane.xlu0 %1999
    %v2001 = vmul.f32 %v1997, %v1772
    %v2002 = vmul.f32 %v2000, %v1772
    %v2003 = vsub.f32 %v1993, %v2001
    %v2004 = vsub.f32 %v1994, %v2002
    %v2005 = vmul.f32 %v2003, %v2003
    %v2006 = vmul.f32 %v2004, %v2004
    %v2007 = vsel %vm84, %v2005, 0.0
    %2008 = vadd.xlane.f32.xlu0 %v2007
    %v2009 = vpop.xlane.xlu0 %2008
    %v2010 = vsel %vm84, %v2006, 0.0
    %2011 = vadd.xlane.f32.xlu0 %v2010
    %v2012 = vpop.xlane.xlu0 %2011
    %v2013 = vmul.f32 %v2009, %v1772
    %v2014 = vmul.f32 %v2012, %v1772
    %v2015 = vadd.f32 %v2013, 1e-05
    %v2016 = vadd.f32 %v2014, 1e-05
    %v2017 = vrsqrt.pop %v2015
    %v2018 = vrsqrt.pop %v2016
    %v2019 = vmul.f32 %v2003, %v2017
    %v2020 = vmul.f32 %v2004, %v2018
    %v2022 = vlaneseq
    %v2023 = vshrl.u32 %v2022, 7
    %v2024 = vsub.s32 0, %v2023
    %v2025 = vrot.slane %v76, %v2024
    %v2027 = vmul.f32 %v2019, %v2025
    %v2028 = vmul.f32 %v2020, %v2025
    %v2030 = vlaneseq
    %v2031 = vshrl.u32 %v2030, 7
    %v2032 = vsub.s32 0, %v2031
    %v2033 = vrot.slane %v77, %v2032
    %v2035 = vadd.f32 %v2027, %v2033
    %v2036 = vadd.f32 %v2028, %v2033
    %v2038 = vsel %vm84, %v2035, 0
    %v2041 = vsel %vm84, %v2036, 0
    %2043 = vmatprep.subr.mxu0 0.0
    %2044 = vmatpush1.msra.mxu0 %v54
    %2045 = vmatprep.subr.mxu0 0.0
    %2046 = vmatpush1.msra.mxu0 %v55
    %2047 = vmatprep.subr.mxu0 0.0
    %2048 = vmatpush1.msra.mxu0 %v56
    %2049 = vmatprep.subr.mxu0 0.0
    %2050 = vmatpush1.msra.mxu0 %v57
    %2051 = vmatprep.subr.mxu0 0.0
    %2052 = vmatpush1.msra.mxu0 0.0
    %2053 = vmatprep.subr.mxu0 0.0
    %2054 = vmatpush1.msra.mxu0 0.0
    %2055 = vmatprep.subr.mxu0 0.0
    %2056 = vmatpush1.msra.mxu0 0.0
    %2057 = vmatprep.subr.mxu0 0.0
    %2058 = vmatpush1.msra.mxu0 0.0
    %2059 = vmatprep.subr.mxu0 0.0
    %2060 = vmatpush1.msra.mxu0 0.0
    %2061 = vmatprep.subr.mxu0 0.0
    %2062 = vmatpush1.msra.mxu0 0.0
    %2063 = vmatprep.subr.mxu0 0.0
    %2064 = vmatpush1.msra.mxu0 0.0
    %2065 = vmatprep.subr.mxu0 0.0
    %2066 = vmatpush1.msra.mxu0 0.0
    %2067 = vmatprep.subr.mxu0 0.0
    %2068 = vmatpush1.msra.mxu0 0.0
    %2069 = vmatprep.subr.mxu0 0.0
    %2070 = vmatpush1.msra.mxu0 0.0
    %2071 = vmatprep.subr.mxu0 0.0
    %2072 = vmatpush1.msra.mxu0 0.0
    %2073 = vmatprep.subr.mxu0 0.0
    %2074 = vmatpush1.msra.mxu0 0.0
    %2075 = vmatprep.subr.mxu0 0.0
    %2076 = vmatpush1.msra.mxu0 0.0
    %2077 = vmatprep.subr.mxu0 0.0
    %2078 = vmatpush1.msra.mxu0 0.0
    %2079 = vmatprep.subr.mxu0 0.0
    %2080 = vmatpush1.msra.mxu0 0.0
    %2081 = vmatprep.subr.mxu0 0.0
    %2082 = vmatpush1.msra.mxu0 0.0
    %2083 = vmatprep.subr.mxu0 0.0
    %2084 = vmatpush1.msra.mxu0 0.0
    %2085 = vmatprep.subr.mxu0 0.0
    %2086 = vmatpush1.msra.mxu0 0.0
    %2087 = vmatprep.subr.mxu0 0.0
    %2088 = vmatpush1.msra.mxu0 0.0
    %2089 = vmatprep.subr.mxu0 0.0
    %2090 = vmatpush1.msra.mxu0 0.0
    %2091 = vmatprep.subr.mxu0 0.0
    %2092 = vmatpush1.msra.mxu0 0.0
    %2093 = vmatprep.subr.mxu0 0.0
    %2094 = vmatpush1.msra.mxu0 0.0
    %2095 = vmatprep.subr.mxu0 0.0
    %2096 = vmatpush1.msra.mxu0 0.0
    %2097 = vmatprep.subr.mxu0 0.0
    %2098 = vmatpush1.msra.mxu0 0.0
    %2099 = vmatprep.subr.mxu0 0.0
    %2100 = vmatpush1.msra.mxu0 0.0
    %2101 = vmatprep.subr.mxu0 0.0
    %2102 = vmatpush1.msra.mxu0 0.0
    %2103 = vmatprep.subr.mxu0 0.0
    %2104 = vmatpush1.msra.mxu0 0.0
    %2105 = vmatprep.subr.mxu0 0.0
    %2106 = vmatpush1.msra.mxu0 0.0
    %2107 = vmatprep.mubr.f32.mxu0 0.0
    %2108 = vmatmul.mubr.f32.gmra.mrb[0].mxu0 %v2038
    %v2109 = vpop.f32.mrb[0].mxu0
    %v2110 = vadd.f32 %v82, %v2109
    %v2111 = vpop.f32.mrb[0].mxu0
    %2112 = vmatprep.mubr.f32.mxu0 0.0
    %2113 = vmatmul.mubr.f32.gmra.mrb[0].mxu0 %v2041
    %v2114 = vpop.f32.mrb[0].mxu0
    %v2115 = vadd.f32 %v82, %v2114
    %v2116 = vpop.f32.mrb[0].mxu0
    %2117 = vdwg.mxu0
    %2119 = vrot.lane.b32.xlu0 %v2110, 96
    %v2120 = vpop.permute.xlu0 %2119
    %v2121 = vsel %vm169, %v2110, 0
    %v2123 = vsel %vm169, %v2120, 0
    %2125 = vmatprep.subr.mxu0 0.0
    %2126 = vmatpush1.xpose.msra.mxu0 %v2123
    %2127 = vmatprep.subr.mxu0 0.0
    %2128 = vmatpush1.xpose.msra.mxu0 0.0
    %2129 = vmatprep.subr.mxu0 0.0
    %2130 = vmatpush1.xpose.msra.mxu0 0.0
    %2131 = vmatprep.subr.mxu0 0.0
    %2132 = vmatpush1.xpose.msra.mxu0 0.0
    %2133 = vmatprep.subr.mxu0 0.0
    %2134 = vmatpush1.xpose.msra.mxu0 0.0
    %2135 = vmatprep.subr.mxu0 0.0
    %2136 = vmatpush1.xpose.msra.mxu0 0.0
    %2137 = vmatprep.subr.mxu0 0.0
    %2138 = vmatpush1.xpose.msra.mxu0 0.0
    %2139 = vmatprep.subr.mxu0 0.0
    %2140 = vmatpush1.xpose.msra.mxu0 0.0
    %2141 = vmatprep.subr.mxu0 0.0
    %2142 = vmatpush1.xpose.msra.mxu0 0.0
    %2143 = vmatprep.subr.mxu0 0.0
    %2144 = vmatpush1.xpose.msra.mxu0 0.0
    %2145 = vmatprep.subr.mxu0 0.0
    %2146 = vmatpush1.xpose.msra.mxu0 0.0
    %2147 = vmatprep.subr.mxu0 0.0
    %2148 = vmatpush1.xpose.msra.mxu0 0.0
    %2149 = vmatprep.subr.mxu0 0.0
    %2150 = vmatpush1.xpose.msra.mxu0 0.0
    %2151 = vmatprep.subr.mxu0 0.0
    %2152 = vmatpush1.xpose.msra.mxu0 0.0
    %2153 = vmatprep.subr.mxu0 0.0
    %2154 = vmatpush1.xpose.msra.mxu0 0.0
    %2155 = vmatprep.subr.mxu0 0.0
    %2156 = vmatpush1.xpose.msra.mxu0 0.0
    %2157 = vmatprep.subr.mxu0 0.0
    %2158 = vmatpush1.xpose.msra.mxu0 0.0
    %2159 = vmatprep.subr.mxu0 0.0
    %2160 = vmatpush1.xpose.msra.mxu0 0.0
    %2161 = vmatprep.subr.mxu0 0.0
    %2162 = vmatpush1.xpose.msra.mxu0 0.0
    %2163 = vmatprep.subr.mxu0 0.0
    %2164 = vmatpush1.xpose.msra.mxu0 0.0
    %2165 = vmatprep.subr.mxu0 0.0
    %2166 = vmatpush1.xpose.msra.mxu0 0.0
    %2167 = vmatprep.subr.mxu0 0.0
    %2168 = vmatpush1.xpose.msra.mxu0 0.0
    %2169 = vmatprep.subr.mxu0 0.0
    %2170 = vmatpush1.xpose.msra.mxu0 0.0
    %2171 = vmatprep.subr.mxu0 0.0
    %2172 = vmatpush1.xpose.msra.mxu0 0.0
    %2173 = vmatprep.subr.mxu0 0.0
    %2174 = vmatpush1.xpose.msra.mxu0 0.0
    %2175 = vmatprep.subr.mxu0 0.0
    %2176 = vmatpush1.xpose.msra.mxu0 0.0
    %2177 = vmatprep.subr.mxu0 0.0
    %2178 = vmatpush1.xpose.msra.mxu0 0.0
    %2179 = vmatprep.subr.mxu0 0.0
    %2180 = vmatpush1.xpose.msra.mxu0 0.0
    %2181 = vmatprep.subr.mxu0 0.0
    %2182 = vmatpush1.xpose.msra.mxu0 0.0
    %2183 = vmatprep.subr.mxu0 0.0
    %2184 = vmatpush1.xpose.msra.mxu0 0.0
    %2185 = vmatprep.subr.mxu0 0.0
    %2186 = vmatpush1.xpose.msra.mxu0 0.0
    %2187 = vmatprep.subr.mxu0 0.0
    %2188 = vmatpush1.xpose.msra.mxu0 0.0
    %2189 = vmatprep.mubr.f32.mxu0 0.0
    %2190 = vmatmul.mubr.f32.gmra.mrb[0].mxu0 %v2121
    %v2191 = vpop.f32.mrb[0].mxu0
    %v2192 = vadd.f32 0.0, %v2191
    %v2193 = vpop.f32.mrb[0].mxu0
    %2194 = vdwg.mxu0
    %v2195 = vsel %vm169, %v2192, -inf
    %2196 = vmax.xlane.f32.xlu0 %v2195
    %v2197 = vpop.xlane.xlu0 %2196
    %v2198 = vsub.f32 %v2192, %v2197
    %v2199 = vmul.f32 %v2198, 1.442695
    %v2200 = vpow.pop %v2199
    %v2201 = vsel %vm169, %v2200, 0.0
    %2202 = vadd.xlane.f32.xlu0 %v2201
    %v2203 = vpop.xlane.xlu0 %2202
    %v2204 = vrcp.pop %v2203
    %v2205 = vmul.f32 %v2200, %v2204
    %2206 = vrot.lane.b32.xlu0 %v2110, 64
    %v2207 = vpop.permute.xlu0 %2206
    %v2210 = vsel %vm169, %v2205, 0
    %2212 = vmatprep.subr.mxu0 0.0
    %2213 = vmatpush1.msra.mxu0 %v2207
    %2214 = vmatprep.subr.mxu0 0.0
    %2215 = vmatpush1.msra.mxu0 0.0
    %2216 = vmatprep.subr.mxu0 0.0
    %2217 = vmatpush1.msra.mxu0 0.0
    %2218 = vmatprep.subr.mxu0 0.0
    %2219 = vmatpush1.msra.mxu0 0.0
    %2220 = vmatprep.subr.mxu0 0.0
    %2221 = vmatpush1.msra.mxu0 0.0
    %2222 = vmatprep.subr.mxu0 0.0
    %2223 = vmatpush1.msra.mxu0 0.0
    %2224 = vmatprep.subr.mxu0 0.0
    %2225 = vmatpush1.msra.mxu0 0.0
    %2226 = vmatprep.subr.mxu0 0.0
    %2227 = vmatpush1.msra.mxu0 0.0
    %2228 = vmatprep.subr.mxu0 0.0
    %2229 = vmatpush1.msra.mxu0 0.0
    %2230 = vmatprep.subr.mxu0 0.0
    %2231 = vmatpush1.msra.mxu0 0.0
    %2232 = vmatprep.subr.mxu0 0.0
    %2233 = vmatpush1.msra.mxu0 0.0
    %2234 = vmatprep.subr.mxu0 0.0
    %2235 = vmatpush1.msra.mxu0 0.0
    %2236 = vmatprep.subr.mxu0 0.0
    %2237 = vmatpush1.msra.mxu0 0.0
    %2238 = vmatprep.subr.mxu0 0.0
    %2239 = vmatpush1.msra.mxu0 0.0
    %2240 = vmatprep.subr.mxu0 0.0
    %2241 = vmatpush1.msra.mxu0 0.0
    %2242 = vmatprep.subr.mxu0 0.0
    %2243 = vmatpush1.msra.mxu0 0.0
    %2244 = vmatprep.subr.mxu0 0.0
    %2245 = vmatpush1.msra.mxu0 0.0
    %2246 = vmatprep.subr.mxu0 0.0
    %2247 = vmatpush1.msra.mxu0 0.0
    %2248 = vmatprep.subr.mxu0 0.0
    %2249 = vmatpush1.msra.mxu0 0.0
    %2250 = vmatprep.subr.mxu0 0.0
    %2251 = vmatpush1.msra.mxu0 0.0
    %2252 = vmatprep.subr.mxu0 0.0
    %2253 = vmatpush1.msra.mxu0 0.0
    %2254 = vmatprep.subr.mxu0 0.0
    %2255 = vmatpush1.msra.mxu0 0.0
    %2256 = vmatprep.subr.mxu0 0.0
    %2257 = vmatpush1.msra.mxu0 0.0
    %2258 = vmatprep.subr.mxu0 0.0
    %2259 = vmatpush1.msra.mxu0 0.0
    %2260 = vmatprep.subr.mxu0 0.0
    %2261 = vmatpush1.msra.mxu0 0.0
    %2262 = vmatprep.subr.mxu0 0.0
    %2263 = vmatpush1.msra.mxu0 0.0
    %2264 = vmatprep.subr.mxu0 0.0
    %2265 = vmatpush1.msra.mxu0 0.0
    %2266 = vmatprep.subr.mxu0 0.0
    %2267 = vmatpush1.msra.mxu0 0.0
    %2268 = vmatprep.subr.mxu0 0.0
    %2269 = vmatpush1.msra.mxu0 0.0
    %2270 = vmatprep.subr.mxu0 0.0
    %2271 = vmatpush1.msra.mxu0 0.0
    %2272 = vmatprep.subr.mxu0 0.0
    %2273 = vmatpush1.msra.mxu0 0.0
    %2274 = vmatprep.subr.mxu0 0.0
    %2275 = vmatpush1.msra.mxu0 0.0
    %2276 = vmatprep.mubr.f32.mxu0 0.0
    %2277 = vmatmul.mubr.f32.gmra.mrb[0].mxu0 %v2210
    %v2278 = vpop.f32.mrb[0].mxu0
    %v2279 = vadd.f32 0.0, %v2278
    %v2280 = vpop.f32.mrb[0].mxu0
    %2281 = vdwg.mxu0
    %2282 = vrot.lane.b32.xlu0 %v2110, 120
    %v2283 = vpop.permute.xlu0 %2282
    %2284 = vrot.lane.b32.xlu0 %v2110, 88
    %v2285 = vpop.permute.xlu0 %2284
    %v2286 = vsel %vm169, %v2283, 0
    %v2288 = vsel %vm169, %v2285, 0
    %2290 = vmatprep.subr.mxu0 0.0
    %2291 = vmatpush1.xpose.msra.mxu0 %v2288
    %2292 = vmatprep.subr.mxu0 0.0
    %2293 = vmatpush1.xpose.msra.mxu0 0.0
    %2294 = vmatprep.subr.mxu0 0.0
    %2295 = vmatpush1.xpose.msra.mxu0 0.0
    %2296 = vmatprep.subr.mxu0 0.0
    %2297 = vmatpush1.xpose.msra.mxu0 0.0
    %2298 = vmatprep.subr.mxu0 0.0
    %2299 = vmatpush1.xpose.msra.mxu0 0.0
    %2300 = vmatprep.subr.mxu0 0.0
    %2301 = vmatpush1.xpose.msra.mxu0 0.0
    %2302 = vmatprep.subr.mxu0 0.0
    %2303 = vmatpush1.xpose.msra.mxu0 0.0
    %2304 = vmatprep.subr.mxu0 0.0
    %2305 = vmatpush1.xpose.msra.mxu0 0.0
    %2306 = vmatprep.subr.mxu0 0.0
    %2307 = vmatpush1.xpose.msra.mxu0 0.0
    %2308 = vmatprep.subr.mxu0 0.0
    %2309 = vmatpush1.xpose.msra.mxu0 0.0
    %2310 = vmatprep.subr.mxu0 0.0
    %2311 = vmatpush1.xpose.msra.mxu0 0.0
    %2312 = vmatprep.subr.mxu0 0.0
    %2313 = vmatpush1.xpose.msra.mxu0 0.0
    %2314 = vmatprep.subr.mxu0 0.0
    %2315 = vmatpush1.xpose.msra.mxu0 0.0
    %2316 = vmatprep.subr.mxu0 0.0
    %2317 = vmatpush1.xpose.msra.mxu0 0.0
    %2318 = vmatprep.subr.mxu0 0.0
    %2319 = vmatpush1.xpose.msra.mxu0 0.0
    %2320 = vmatprep.subr.mxu0 0.0
    %2321 = vmatpush1.xpose.msra.mxu0 0.0
    %2322 = vmatprep.subr.mxu0 0.0
    %2323 = vmatpush1.xpose.msra.mxu0 0.0
    %2324 = vmatprep.subr.mxu0 0.0
    %2325 = vmatpush1.xpose.msra.mxu0 0.0
    %2326 = vmatprep.subr.mxu0 0.0
    %2327 = vmatpush1.xpose.msra.mxu0 0.0
    %2328 = vmatprep.subr.mxu0 0.0
    %2329 = vmatpush1.xpose.msra.mxu0 0.0
    %2330 = vmatprep.subr.mxu0 0.0
    %2331 = vmatpush1.xpose.msra.mxu0 0.0
    %2332 = vmatprep.subr.mxu0 0.0
    %2333 = vmatpush1.xpose.msra.mxu0 0.0
    %2334 = vmatprep.subr.mxu0 0.0
    %2335 = vmatpush1.xpose.msra.mxu0 0.0
    %2336 = vmatprep.subr.mxu0 0.0
    %2337 = vmatpush1.xpose.msra.mxu0 0.0
    %2338 = vmatprep.subr.mxu0 0.0
    %2339 = vmatpush1.xpose.msra.mxu0 0.0
    %2340 = vmatprep.subr.mxu0 0.0
    %2341 = vmatpush1.xpose.msra.mxu0 0.0
    %2342 = vmatprep.subr.mxu0 0.0
    %2343 = vmatpush1.xpose.msra.mxu0 0.0
    %2344 = vmatprep.subr.mxu0 0.0
    %2345 = vmatpush1.xpose.msra.mxu0 0.0
    %2346 = vmatprep.subr.mxu0 0.0
    %2347 = vmatpush1.xpose.msra.mxu0 0.0
    %2348 = vmatprep.subr.mxu0 0.0
    %2349 = vmatpush1.xpose.msra.mxu0 0.0
    %2350 = vmatprep.subr.mxu0 0.0
    %2351 = vmatpush1.xpose.msra.mxu0 0.0
    %2352 = vmatprep.subr.mxu0 0.0
    %2353 = vmatpush1.xpose.msra.mxu0 0.0
    %2354 = vmatprep.mubr.f32.mxu0 0.0
    %2355 = vmatmul.mubr.f32.gmra.mrb[0].mxu0 %v2286
    %v2356 = vpop.f32.mrb[0].mxu0
    %v2357 = vadd.f32 0.0, %v2356
    %v2358 = vpop.f32.mrb[0].mxu0
    %2359 = vdwg.mxu0
    %v2360 = vsel %vm169, %v2357, -inf
    %2361 = vmax.xlane.f32.xlu0 %v2360
    %v2362 = vpop.xlane.xlu0 %2361
    %v2363 = vsub.f32 %v2357, %v2362
    %v2364 = vmul.f32 %v2363, 1.442695
    %v2365 = vpow.pop %v2364
    %v2366 = vsel %vm169, %v2365, 0.0
    %2367 = vadd.xlane.f32.xlu0 %v2366
    %v2368 = vpop.xlane.xlu0 %2367
    %v2369 = vrcp.pop %v2368
    %v2370 = vmul.f32 %v2365, %v2369
    %2371 = vrot.lane.b32.xlu0 %v2110, 56
    %v2372 = vpop.permute.xlu0 %2371
    %v2375 = vsel %vm169, %v2370, 0
    %2377 = vmatprep.subr.mxu0 0.0
    %2378 = vmatpush1.msra.mxu0 %v2372
    %2379 = vmatprep.subr.mxu0 0.0
    %2380 = vmatpush1.msra.mxu0 0.0
    %2381 = vmatprep.subr.mxu0 0.0
    %2382 = vmatpush1.msra.mxu0 0.0
    %2383 = vmatprep.subr.mxu0 0.0
    %2384 = vmatpush1.msra.mxu0 0.0
    %2385 = vmatprep.subr.mxu0 0.0
    %2386 = vmatpush1.msra.mxu0 0.0
    %2387 = vmatprep.subr.mxu0 0.0
    %2388 = vmatpush1.msra.mxu0 0.0
    %2389 = vmatprep.subr.mxu0 0.0
    %2390 = vmatpush1.msra.mxu0 0.0
    %2391 = vmatprep.subr.mxu0 0.0
    %2392 = vmatpush1.msra.mxu0 0.0
    %2393 = vmatprep.subr.mxu0 0.0
    %2394 = vmatpush1.msra.mxu0 0.0
    %2395 = vmatprep.subr.mxu0 0.0
    %2396 = vmatpush1.msra.mxu0 0.0
    %2397 = vmatprep.subr.mxu0 0.0
    %2398 = vmatpush1.msra.mxu0 0.0
    %2399 = vmatprep.subr.mxu0 0.0
    %2400 = vmatpush1.msra.mxu0 0.0
    %2401 = vmatprep.subr.mxu0 0.0
    %2402 = vmatpush1.msra.mxu0 0.0
    %2403 = vmatprep.subr.mxu0 0.0
    %2404 = vmatpush1.msra.mxu0 0.0
    %2405 = vmatprep.subr.mxu0 0.0
    %2406 = vmatpush1.msra.mxu0 0.0
    %2407 = vmatprep.subr.mxu0 0.0
    %2408 = vmatpush1.msra.mxu0 0.0
    %2409 = vmatprep.subr.mxu0 0.0
    %2410 = vmatpush1.msra.mxu0 0.0
    %2411 = vmatprep.subr.mxu0 0.0
    %2412 = vmatpush1.msra.mxu0 0.0
    %2413 = vmatprep.subr.mxu0 0.0
    %2414 = vmatpush1.msra.mxu0 0.0
    %2415 = vmatprep.subr.mxu0 0.0
    %2416 = vmatpush1.msra.mxu0 0.0
    %2417 = vmatprep.subr.mxu0 0.0
    %2418 = vmatpush1.msra.mxu0 0.0
    %2419 = vmatprep.subr.mxu0 0.0
    %2420 = vmatpush1.msra.mxu0 0.0
    %2421 = vmatprep.subr.mxu0 0.0
    %2422 = vmatpush1.msra.mxu0 0.0
    %2423 = vmatprep.subr.mxu0 0.0
    %2424 = vmatpush1.msra.mxu0 0.0
    %2425 = vmatprep.subr.mxu0 0.0
    %2426 = vmatpush1.msra.mxu0 0.0
    %2427 = vmatprep.subr.mxu0 0.0
    %2428 = vmatpush1.msra.mxu0 0.0
    %2429 = vmatprep.subr.mxu0 0.0
    %2430 = vmatpush1.msra.mxu0 0.0
    %2431 = vmatprep.subr.mxu0 0.0
    %2432 = vmatpush1.msra.mxu0 0.0
    %2433 = vmatprep.subr.mxu0 0.0
    %2434 = vmatpush1.msra.mxu0 0.0
    %2435 = vmatprep.subr.mxu0 0.0
    %2436 = vmatpush1.msra.mxu0 0.0
    %2437 = vmatprep.subr.mxu0 0.0
    %2438 = vmatpush1.msra.mxu0 0.0
    %2439 = vmatprep.subr.mxu0 0.0
    %2440 = vmatpush1.msra.mxu0 0.0
    %2441 = vmatprep.mubr.f32.mxu0 0.0
    %2442 = vmatmul.mubr.f32.gmra.mrb[0].mxu0 %v2375
    %v2443 = vpop.f32.mrb[0].mxu0
    %v2444 = vadd.f32 0.0, %v2443
    %v2445 = vpop.f32.mrb[0].mxu0
    %2446 = vdwg.mxu0
    %2447 = vrot.lane.b32.xlu0 %v2110, 112
    %v2448 = vpop.permute.xlu0 %2447
    %2449 = vrot.lane.b32.xlu0 %v2110, 80
    %v2450 = vpop.permute.xlu0 %2449
    %v2451 = vsel %vm169, %v2448, 0
    %v2453 = vsel %vm169, %v2450, 0
    %2455 = vmatprep.subr.mxu0 0.0
    %2456 = vmatpush1.xpose.msra.mxu0 %v2453
    %2457 = vmatprep.subr.mxu0 0.0
    %2458 = vmatpush1.xpose.msra.mxu0 0.0
    %2459 = vmatprep.subr.mxu0 0.0
    %2460 = vmatpush1.xpose.msra.mxu0 0.0
    %2461 = vmatprep.subr.mxu0 0.0
    %2462 = vmatpush1.xpose.msra.mxu0 0.0
    %2463 = vmatprep.subr.mxu0 0.0
    %2464 = vmatpush1.xpose.msra.mxu0 0.0
    %2465 = vmatprep.subr.mxu0 0.0
    %2466 = vmatpush1.xpose.msra.mxu0 0.0
    %2467 = vmatprep.subr.mxu0 0.0
    %2468 = vmatpush1.xpose.msra.mxu0 0.0
    %2469 = vmatprep.subr.mxu0 0.0
    %2470 = vmatpush1.xpose.msra.mxu0 0.0
    %2471 = vmatprep.subr.mxu0 0.0
    %2472 = vmatpush1.xpose.msra.mxu0 0.0
    %2473 = vmatprep.subr.mxu0 0.0
    %2474 = vmatpush1.xpose.msra.mxu0 0.0
    %2475 = vmatprep.subr.mxu0 0.0
    %2476 = vmatpush1.xpose.msra.mxu0 0.0
    %2477 = vmatprep.subr.mxu0 0.0
    %2478 = vmatpush1.xpose.msra.mxu0 0.0
    %2479 = vmatprep.subr.mxu0 0.0
    %2480 = vmatpush1.xpose.msra.mxu0 0.0
    %2481 = vmatprep.subr.mxu0 0.0
    %2482 = vmatpush1.xpose.msra.mxu0 0.0
    %2483 = vmatprep.subr.mxu0 0.0
    %2484 = vmatpush1.xpose.msra.mxu0 0.0
    %2485 = vmatprep.subr.mxu0 0.0
    %2486 = vmatpush1.xpose.msra.mxu0 0.0
    %2487 = vmatprep.subr.mxu0 0.0
    %2488 = vmatpush1.xpose.msra.mxu0 0.0
    %2489 = vmatprep.subr.mxu0 0.0
    %2490 = vmatpush1.xpose.msra.mxu0 0.0
    %2491 = vmatprep.subr.mxu0 0.0
    %2492 = vmatpush1.xpose.msra.mxu0 0.0
    %2493 = vmatprep.subr.mxu0 0.0
    %2494 = vmatpush1.xpose.msra.mxu0 0.0
    %2495 = vmatprep.subr.mxu0 0.0
    %2496 = vmatpush1.xpose.msra.mxu0 0.0
    %2497 = vmatprep.subr.mxu0 0.0
    %2498 = vmatpush1.xpose.msra.mxu0 0.0
    %2499 = vmatprep.subr.mxu0 0.0
    %2500 = vmatpush1.xpose.msra.mxu0 0.0
    %2501 = vmatprep.subr.mxu0 0.0
    %2502 = vmatpush1.xpose.msra.mxu0 0.0
    %2503 = vmatprep.subr.mxu0 0.0
    %2504 = vmatpush1.xpose.msra.mxu0 0.0
    %2505 = vmatprep.subr.mxu0 0.0
    %2506 = vmatpush1.xpose.msra.mxu0 0.0
    %2507 = vmatprep.subr.mxu0 0.0
    %2508 = vmatpush1.xpose.msra.mxu0 0.0
    %2509 = vmatprep.subr.mxu0 0.0
    %2510 = vmatpush1.xpose.msra.mxu0 0.0
    %2511 = vmatprep.subr.mxu0 0.0
    %2512 = vmatpush1.xpose.msra.mxu0 0.0
    %2513 = vmatprep.subr.mxu0 0.0
    %2514 = vmatpush1.xpose.msra.mxu0 0.0
    %2515 = vmatprep.subr.mxu0 0.0
    %2516 = vmatpush1.xpose.msra.mxu0 0.0
    %2517 = vmatprep.subr.mxu0 0.0
    %2518 = vmatpush1.xpose.msra.mxu0 0.0
    %2519 = vmatprep.mubr.f32.mxu0 0.0
    %2520 = vmatmul.mubr.f32.gmra.mrb[0].mxu0 %v2451
    %v2521 = vpop.f32.mrb[0].mxu0
    %v2522 = vadd.f32 0.0, %v2521
    %v2523 = vpop.f32.mrb[0].mxu0
    %2524 = vdwg.mxu0
    %v2525 = vsel %vm169, %v2522, -inf
    %2526 = vmax.xlane.f32.xlu0 %v2525
    %v2527 = vpop.xlane.xlu0 %2526
    %v2528 = vsub.f32 %v2522, %v2527
    %v2529 = vmul.f32 %v2528, 1.442695
    %v2530 = vpow.pop %v2529
    %v2531 = vsel %vm169, %v2530, 0.0
    %2532 = vadd.xlane.f32.xlu0 %v2531
    %v2533 = vpop.xlane.xlu0 %2532
    %v2534 = vrcp.pop %v2533
    %v2535 = vmul.f32 %v2530, %v2534
    %2536 = vrot.lane.b32.xlu0 %v2110, 48
    %v2537 = vpop.permute.xlu0 %2536
    %v2540 = vsel %vm169, %v2535, 0
    %2542 = vmatprep.subr.mxu0 0.0
    %2543 = vmatpush1.msra.mxu0 %v2537
    %2544 = vmatprep.subr.mxu0 0.0
    %2545 = vmatpush1.msra.mxu0 0.0
    %2546 = vmatprep.subr.mxu0 0.0
    %2547 = vmatpush1.msra.mxu0 0.0
    %2548 = vmatprep.subr.mxu0 0.0
    %2549 = vmatpush1.msra.mxu0 0.0
    %2550 = vmatprep.subr.mxu0 0.0
    %2551 = vmatpush1.msra.mxu0 0.0
    %2552 = vmatprep.subr.mxu0 0.0
    %2553 = vmatpush1.msra.mxu0 0.0
    %2554 = vmatprep.subr.mxu0 0.0
    %2555 = vmatpush1.msra.mxu0 0.0
    %2556 = vmatprep.subr.mxu0 0.0
    %2557 = vmatpush1.msra.mxu0 0.0
    %2558 = vmatprep.subr.mxu0 0.0
    %2559 = vmatpush1.msra.mxu0 0.0
    %2560 = vmatprep.subr.mxu0 0.0
    %2561 = vmatpush1.msra.mxu0 0.0
    %2562 = vmatprep.subr.mxu0 0.0
    %2563 = vmatpush1.msra.mxu0 0.0
    %2564 = vmatprep.subr.mxu0 0.0
    %2565 = vmatpush1.msra.mxu0 0.0
    %2566 = vmatprep.subr.mxu0 0.0
    %2567 = vmatpush1.msra.mxu0 0.0
    %2568 = vmatprep.subr.mxu0 0.0
    %2569 = vmatpush1.msra.mxu0 0.0
    %2570 = vmatprep.subr.mxu0 0.0
    %2571 = vmatpush1.msra.mxu0 0.0
    %2572 = vmatprep.subr.mxu0 0.0
    %2573 = vmatpush1.msra.mxu0 0.0
    %2574 = vmatprep.subr.mxu0 0.0
    %2575 = vmatpush1.msra.mxu0 0.0
    %2576 = vmatprep.subr.mxu0 0.0
    %2577 = vmatpush1.msra.mxu0 0.0
    %2578 = vmatprep.subr.mxu0 0.0
    %2579 = vmatpush1.msra.mxu0 0.0
    %2580 = vmatprep.subr.mxu0 0.0
    %2581 = vmatpush1.msra.mxu0 0.0
    %2582 = vmatprep.subr.mxu0 0.0
    %2583 = vmatpush1.msra.mxu0 0.0
    %2584 = vmatprep.subr.mxu0 0.0
    %2585 = vmatpush1.msra.mxu0 0.0
    %2586 = vmatprep.subr.mxu0 0.0
    %2587 = vmatpush1.msra.mxu0 0.0
    %2588 = vmatprep.subr.mxu0 0.0
    %2589 = vmatpush1.msra.mxu0 0.0
    %2590 = vmatprep.subr.mxu0 0.0
    %2591 = vmatpush1.msra.mxu0 0.0
    %2592 = vmatprep.subr.mxu0 0.0
    %2593 = vmatpush1.msra.mxu0 0.0
    %2594 = vmatprep.subr.mxu0 0.0
    %2595 = vmatpush1.msra.mxu0 0.0
    %2596 = vmatprep.subr.mxu0 0.0
    %2597 = vmatpush1.msra.mxu0 0.0
    %2598 = vmatprep.subr.mxu0 0.0
    %2599 = vmatpush1.msra.mxu0 0.0
    %2600 = vmatprep.subr.mxu0 0.0
    %2601 = vmatpush1.msra.mxu0 0.0
    %2602 = vmatprep.subr.mxu0 0.0
    %2603 = vmatpush1.msra.mxu0 0.0
    %2604 = vmatprep.subr.mxu0 0.0
    %2605 = vmatpush1.msra.mxu0 0.0
    %2606 = vmatprep.mubr.f32.mxu0 0.0
    %2607 = vmatmul.mubr.f32.gmra.mrb[0].mxu0 %v2540
    %v2608 = vpop.f32.mrb[0].mxu0
    %v2609 = vadd.f32 0.0, %v2608
    %v2610 = vpop.f32.mrb[0].mxu0
    %2611 = vdwg.mxu0
    %2612 = vrot.lane.b32.xlu0 %v2110, 104
    %v2613 = vpop.permute.xlu0 %2612
    %2614 = vrot.lane.b32.xlu0 %v2110, 72
    %v2615 = vpop.permute.xlu0 %2614
    %v2616 = vsel %vm169, %v2613, 0
    %v2618 = vsel %vm169, %v2615, 0
    %2620 = vmatprep.subr.mxu0 0.0
    %2621 = vmatpush1.xpose.msra.mxu0 %v2618
    %2622 = vmatprep.subr.mxu0 0.0
    %2623 = vmatpush1.xpose.msra.mxu0 0.0
    %2624 = vmatprep.subr.mxu0 0.0
    %2625 = vmatpush1.xpose.msra.mxu0 0.0
    %2626 = vmatprep.subr.mxu0 0.0
    %2627 = vmatpush1.xpose.msra.mxu0 0.0
    %2628 = vmatprep.subr.mxu0 0.0
    %2629 = vmatpush1.xpose.msra.mxu0 0.0
    %2630 = vmatprep.subr.mxu0 0.0
    %2631 = vmatpush1.xpose.msra.mxu0 0.0
    %2632 = vmatprep.subr.mxu0 0.0
    %2633 = vmatpush1.xpose.msra.mxu0 0.0
    %2634 = vmatprep.subr.mxu0 0.0
    %2635 = vmatpush1.xpose.msra.mxu0 0.0
    %2636 = vmatprep.subr.mxu0 0.0
    %2637 = vmatpush1.xpose.msra.mxu0 0.0
    %2638 = vmatprep.subr.mxu0 0.0
    %2639 = vmatpush1.xpose.msra.mxu0 0.0
    %2640 = vmatprep.subr.mxu0 0.0
    %2641 = vmatpush1.xpose.msra.mxu0 0.0
    %2642 = vmatprep.subr.mxu0 0.0
    %2643 = vmatpush1.xpose.msra.mxu0 0.0
    %2644 = vmatprep.subr.mxu0 0.0
    %2645 = vmatpush1.xpose.msra.mxu0 0.0
    %2646 = vmatprep.subr.mxu0 0.0
    %2647 = vmatpush1.xpose.msra.mxu0 0.0
    %2648 = vmatprep.subr.mxu0 0.0
    %2649 = vmatpush1.xpose.msra.mxu0 0.0
    %2650 = vmatprep.subr.mxu0 0.0
    %2651 = vmatpush1.xpose.msra.mxu0 0.0
    %2652 = vmatprep.subr.mxu0 0.0
    %2653 = vmatpush1.xpose.msra.mxu0 0.0
    %2654 = vmatprep.subr.mxu0 0.0
    %2655 = vmatpush1.xpose.msra.mxu0 0.0
    %2656 = vmatprep.subr.mxu0 0.0
    %2657 = vmatpush1.xpose.msra.mxu0 0.0
    %2658 = vmatprep.subr.mxu0 0.0
    %2659 = vmatpush1.xpose.msra.mxu0 0.0
    %2660 = vmatprep.subr.mxu0 0.0
    %2661 = vmatpush1.xpose.msra.mxu0 0.0
    %2662 = vmatprep.subr.mxu0 0.0
    %2663 = vmatpush1.xpose.msra.mxu0 0.0
    %2664 = vmatprep.subr.mxu0 0.0
    %2665 = vmatpush1.xpose.msra.mxu0 0.0
    %2666 = vmatprep.subr.mxu0 0.0
    %2667 = vmatpush1.xpose.msra.mxu0 0.0
    %2668 = vmatprep.subr.mxu0 0.0
    %2669 = vmatpush1.xpose.msra.mxu0 0.0
    %2670 = vmatprep.subr.mxu0 0.0
    %2671 = vmatpush1.xpose.msra.mxu0 0.0
    %2672 = vmatprep.subr.mxu0 0.0
    %2673 = vmatpush1.xpose.msra.mxu0 0.0
    %2674 = vmatprep.subr.mxu0 0.0
    %2675 = vmatpush1.xpose.msra.mxu0 0.0
    %2676 = vmatprep.subr.mxu0 0.0
    %2677 = vmatpush1.xpose.msra.mxu0 0.0
    %2678 = vmatprep.subr.mxu0 0.0
    %2679 = vmatpush1.xpose.msra.mxu0 0.0
    %2680 = vmatprep.subr.mxu0 0.0
    %2681 = vmatpush1.xpose.msra.mxu0 0.0
    %2682 = vmatprep.subr.mxu0 0.0
    %2683 = vmatpush1.xpose.msra.mxu0 0.0
    %2684 = vmatprep.mubr.f32.mxu0 0.0
    %2685 = vmatmul.mubr.f32.gmra.mrb[0].mxu0 %v2616
    %v2686 = vpop.f32.mrb[0].mxu0
    %v2687 = vadd.f32 0.0, %v2686
    %v2688 = vpop.f32.mrb[0].mxu0
    %2689 = vdwg.mxu0
    %v2690 = vsel %vm169, %v2687, -inf
    %2691 = vmax.xlane.f32.xlu0 %v2690
    %v2692 = vpop.xlane.xlu0 %2691
    %v2693 = vsub.f32 %v2687, %v2692
    %v2694 = vmul.f32 %v2693, 1.442695
    %v2695 = vpow.pop %v2694
    %v2696 = vsel %vm169, %v2695, 0.0
    %2697 = vadd.xlane.f32.xlu0 %v2696
    %v2698 = vpop.xlane.xlu0 %2697
    %v2699 = vrcp.pop %v2698
    %v2700 = vmul.f32 %v2695, %v2699
    %2701 = vrot.lane.b32.xlu0 %v2110, 40
    %v2702 = vpop.permute.xlu0 %2701
    %v2705 = vsel %vm169, %v2700, 0
    %2707 = vmatprep.subr.mxu0 0.0
    %2708 = vmatpush1.msra.mxu0 %v2702
    %2709 = vmatprep.subr.mxu0 0.0
    %2710 = vmatpush1.msra.mxu0 0.0
    %2711 = vmatprep.subr.mxu0 0.0
    %2712 = vmatpush1.msra.mxu0 0.0
    %2713 = vmatprep.subr.mxu0 0.0
    %2714 = vmatpush1.msra.mxu0 0.0
    %2715 = vmatprep.subr.mxu0 0.0
    %2716 = vmatpush1.msra.mxu0 0.0
    %2717 = vmatprep.subr.mxu0 0.0
    %2718 = vmatpush1.msra.mxu0 0.0
    %2719 = vmatprep.subr.mxu0 0.0
    %2720 = vmatpush1.msra.mxu0 0.0
    %2721 = vmatprep.subr.mxu0 0.0
    %2722 = vmatpush1.msra.mxu0 0.0
    %2723 = vmatprep.subr.mxu0 0.0
    %2724 = vmatpush1.msra.mxu0 0.0
    %2725 = vmatprep.subr.mxu0 0.0
    %2726 = vmatpush1.msra.mxu0 0.0
    %2727 = vmatprep.subr.mxu0 0.0
    %2728 = vmatpush1.msra.mxu0 0.0
    %2729 = vmatprep.subr.mxu0 0.0
    %2730 = vmatpush1.msra.mxu0 0.0
    %2731 = vmatprep.subr.mxu0 0.0
    %2732 = vmatpush1.msra.mxu0 0.0
    %2733 = vmatprep.subr.mxu0 0.0
    %2734 = vmatpush1.msra.mxu0 0.0
    %2735 = vmatprep.subr.mxu0 0.0
    %2736 = vmatpush1.msra.mxu0 0.0
    %2737 = vmatprep.subr.mxu0 0.0
    %2738 = vmatpush1.msra.mxu0 0.0
    %2739 = vmatprep.subr.mxu0 0.0
    %2740 = vmatpush1.msra.mxu0 0.0
    %2741 = vmatprep.subr.mxu0 0.0
    %2742 = vmatpush1.msra.mxu0 0.0
    %2743 = vmatprep.subr.mxu0 0.0
    %2744 = vmatpush1.msra.mxu0 0.0
    %2745 = vmatprep.subr.mxu0 0.0
    %2746 = vmatpush1.msra.mxu0 0.0
    %2747 = vmatprep.subr.mxu0 0.0
    %2748 = vmatpush1.msra.mxu0 0.0
    %2749 = vmatprep.subr.mxu0 0.0
    %2750 = vmatpush1.msra.mxu0 0.0
    %2751 = vmatprep.subr.mxu0 0.0
    %2752 = vmatpush1.msra.mxu0 0.0
    %2753 = vmatprep.subr.mxu0 0.0
    %2754 = vmatpush1.msra.mxu0 0.0
    %2755 = vmatprep.subr.mxu0 0.0
    %2756 = vmatpush1.msra.mxu0 0.0
    %2757 = vmatprep.subr.mxu0 0.0
    %2758 = vmatpush1.msra.mxu0 0.0
    %2759 = vmatprep.subr.mxu0 0.0
    %2760 = vmatpush1.msra.mxu0 0.0
    %2761 = vmatprep.subr.mxu0 0.0
    %2762 = vmatpush1.msra.mxu0 0.0
    %2763 = vmatprep.subr.mxu0 0.0
    %2764 = vmatpush1.msra.mxu0 0.0
    %2765 = vmatprep.subr.mxu0 0.0
    %2766 = vmatpush1.msra.mxu0 0.0
    %2767 = vmatprep.subr.mxu0 0.0
    %2768 = vmatpush1.msra.mxu0 0.0
    %2769 = vmatprep.subr.mxu0 0.0
    %2770 = vmatpush1.msra.mxu0 0.0
    %2771 = vmatprep.mubr.f32.mxu0 0.0
    %2772 = vmatmul.mubr.f32.gmra.mrb[0].mxu0 %v2705
    %v2773 = vpop.f32.mrb[0].mxu0
    %v2774 = vadd.f32 0.0, %v2773
    %v2775 = vpop.f32.mrb[0].mxu0
    %2776 = vdwg.mxu0
    %v2777 = vadd.f32 %v2205, %v2370
    %v2778 = vadd.f32 %v2777, %v2535
    %v2779 = vadd.f32 %v2778, %v2700
    %v2780 = vmul.f32 %v2779, 0.25
    %s2781 = scalar_lea.vmem [#allocation4], 16
    %2782 = vst.msk [vmem:[%s2781] sm:$0xff] %vm169, %v2780
    %2784 = vrot.lane.b32.xlu0 %v2444, 8
    %v2785 = vpop.permute.xlu0 %2784
    %2788 = vrot.lane.b32.xlu0 %v2609, 16
    %v2789 = vpop.permute.xlu0 %2788
    %2792 = vrot.lane.b32.xlu0 %v2774, 24
    %v2793 = vpop.permute.xlu0 %2792
    %v2795 = vsel %vm169, %v2279, %v2785
    %v2796 = vsel %vm844, %v2795, %v2789
    %v2797 = vsel %vm846, %v2796, %v2793
    %2799 = vrot.lane.b32.xlu0 %v2115, 96
    %v2800 = vpop.permute.xlu0 %2799
    %v2801 = vsel %vm169, %v2115, 0
    %v2803 = vsel %vm169, %v2800, 0
    %2805 = vmatprep.subr.mxu0 0.0
    %2806 = vmatpush1.xpose.msra.mxu0 %v2803
    %2807 = vmatprep.subr.mxu0 0.0
    %2808 = vmatpush1.xpose.msra.mxu0 0.0
    %2809 = vmatprep.subr.mxu0 0.0
    %2810 = vmatpush1.xpose.msra.mxu0 0.0
    %2811 = vmatprep.subr.mxu0 0.0
    %2812 = vmatpush1.xpose.msra.mxu0 0.0
    %2813 = vmatprep.subr.mxu0 0.0
    %2814 = vmatpush1.xpose.msra.mxu0 0.0
    %2815 = vmatprep.subr.mxu0 0.0
    %2816 = vmatpush1.xpose.msra.mxu0 0.0
    %2817 = vmatprep.subr.mxu0 0.0
    %2818 = vmatpush1.xpose.msra.mxu0 0.0
    %2819 = vmatprep.subr.mxu0 0.0
    %2820 = vmatpush1.xpose.msra.mxu0 0.0
    %2821 = vmatprep.subr.mxu0 0.0
    %2822 = vmatpush1.xpose.msra.mxu0 0.0
    %2823 = vmatprep.subr.mxu0 0.0
    %2824 = vmatpush1.xpose.msra.mxu0 0.0
    %2825 = vmatprep.subr.mxu0 0.0
    %2826 = vmatpush1.xpose.msra.mxu0 0.0
    %2827 = vmatprep.subr.mxu0 0.0
    %2828 = vmatpush1.xpose.msra.mxu0 0.0
    %2829 = vmatprep.subr.mxu0 0.0
    %2830 = vmatpush1.xpose.msra.mxu0 0.0
    %2831 = vmatprep.subr.mxu0 0.0
    %2832 = vmatpush1.xpose.msra.mxu0 0.0
    %2833 = vmatprep.subr.mxu0 0.0
    %2834 = vmatpush1.xpose.msra.mxu0 0.0
    %2835 = vmatprep.subr.mxu0 0.0
    %2836 = vmatpush1.xpose.msra.mxu0 0.0
    %2837 = vmatprep.subr.mxu0 0.0
    %2838 = vmatpush1.xpose.msra.mxu0 0.0
    %2839 = vmatprep.subr.mxu0 0.0
    %2840 = vmatpush1.xpose.msra.mxu0 0.0
    %2841 = vmatprep.subr.mxu0 0.0
    %2842 = vmatpush1.xpose.msra.mxu0 0.0
    %2843 = vmatprep.subr.mxu0 0.0
    %2844 = vmatpush1.xpose.msra.mxu0 0.0
    %2845 = vmatprep.subr.mxu0 0.0
    %2846 = vmatpush1.xpose.msra.mxu0 0.0
    %2847 = vmatprep.subr.mxu0 0.0
    %2848 = vmatpush1.xpose.msra.mxu0 0.0
    %2849 = vmatprep.subr.mxu0 0.0
    %2850 = vmatpush1.xpose.msra.mxu0 0.0
    %2851 = vmatprep.subr.mxu0 0.0
    %2852 = vmatpush1.xpose.msra.mxu0 0.0
    %2853 = vmatprep.subr.mxu0 0.0
    %2854 = vmatpush1.xpose.msra.mxu0 0.0
    %2855 = vmatprep.subr.mxu0 0.0
    %2856 = vmatpush1.xpose.msra.mxu0 0.0
    %2857 = vmatprep.subr.mxu0 0.0
    %2858 = vmatpush1.xpose.msra.mxu0 0.0
    %2859 = vmatprep.subr.mxu0 0.0
    %2860 = vmatpush1.xpose.msra.mxu0 0.0
    %2861 = vmatprep.subr.mxu0 0.0
    %2862 = vmatpush1.xpose.msra.mxu0 0.0
    %2863 = vmatprep.subr.mxu0 0.0
    %2864 = vmatpush1.xpose.msra.mxu0 0.0
    %2865 = vmatprep.subr.mxu0 0.0
    %2866 = vmatpush1.xpose.msra.mxu0 0.0
    %2867 = vmatprep.subr.mxu0 0.0
    %2868 = vmatpush1.xpose.msra.mxu0 0.0
    %2869 = vmatprep.mubr.f32.mxu0 0.0
    %2870 = vmatmul.mubr.f32.gmra.mrb[0].mxu0 %v2801
    %v2871 = vpop.f32.mrb[0].mxu0
    %v2872 = vadd.f32 0.0, %v2871
    %v2873 = vpop.f32.mrb[0].mxu0
    %2874 = vdwg.mxu0
    %v2875 = vsel %vm169, %v2872, -inf
    %2876 = vmax.xlane.f32.xlu0 %v2875
    %v2877 = vpop.xlane.xlu0 %2876
    %v2878 = vsub.f32 %v2872, %v2877
    %v2879 = vmul.f32 %v2878, 1.442695
    %v2880 = vpow.pop %v2879
    %v2881 = vsel %vm169, %v2880, 0.0
    %2882 = vadd.xlane.f32.xlu0 %v2881
    %v2883 = vpop.xlane.xlu0 %2882
    %v2884 = vrcp.pop %v2883
    %v2885 = vmul.f32 %v2880, %v2884
    %2886 = vrot.lane.b32.xlu0 %v2115, 64
    %v2887 = vpop.permute.xlu0 %2886
    %v2890 = vsel %vm169, %v2885, 0
    %2892 = vmatprep.subr.mxu0 0.0
    %2893 = vmatpush1.msra.mxu0 %v2887
    %2894 = vmatprep.subr.mxu0 0.0
    %2895 = vmatpush1.msra.mxu0 0.0
    %2896 = vmatprep.subr.mxu0 0.0
    %2897 = vmatpush1.msra.mxu0 0.0
    %2898 = vmatprep.subr.mxu0 0.0
    %2899 = vmatpush1.msra.mxu0 0.0
    %2900 = vmatprep.subr.mxu0 0.0
    %2901 = vmatpush1.msra.mxu0 0.0
    %2902 = vmatprep.subr.mxu0 0.0
    %2903 = vmatpush1.msra.mxu0 0.0
    %2904 = vmatprep.subr.mxu0 0.0
    %2905 = vmatpush1.msra.mxu0 0.0
    %2906 = vmatprep.subr.mxu0 0.0
    %2907 = vmatpush1.msra.mxu0 0.0
    %2908 = vmatprep.subr.mxu0 0.0
    %2909 = vmatpush1.msra.mxu0 0.0
    %2910 = vmatprep.subr.mxu0 0.0
    %2911 = vmatpush1.msra.mxu0 0.0
    %2912 = vmatprep.subr.mxu0 0.0
    %2913 = vmatpush1.msra.mxu0 0.0
    %2914 = vmatprep.subr.mxu0 0.0
    %2915 = vmatpush1.msra.mxu0 0.0
    %2916 = vmatprep.subr.mxu0 0.0
    %2917 = vmatpush1.msra.mxu0 0.0
    %2918 = vmatprep.subr.mxu0 0.0
    %2919 = vmatpush1.msra.mxu0 0.0
    %2920 = vmatprep.subr.mxu0 0.0
    %2921 = vmatpush1.msra.mxu0 0.0
    %2922 = vmatprep.subr.mxu0 0.0
    %2923 = vmatpush1.msra.mxu0 0.0
    %2924 = vmatprep.subr.mxu0 0.0
    %2925 = vmatpush1.msra.mxu0 0.0
    %2926 = vmatprep.subr.mxu0 0.0
    %2927 = vmatpush1.msra.mxu0 0.0
    %2928 = vmatprep.subr.mxu0 0.0
    %2929 = vmatpush1.msra.mxu0 0.0
    %2930 = vmatprep.subr.mxu0 0.0
    %2931 = vmatpush1.msra.mxu0 0.0
    %2932 = vmatprep.subr.mxu0 0.0
    %2933 = vmatpush1.msra.mxu0 0.0
    %2934 = vmatprep.subr.mxu0 0.0
    %2935 = vmatpush1.msra.mxu0 0.0
    %2936 = vmatprep.subr.mxu0 0.0
    %2937 = vmatpush1.msra.mxu0 0.0
    %2938 = vmatprep.subr.mxu0 0.0
    %2939 = vmatpush1.msra.mxu0 0.0
    %2940 = vmatprep.subr.mxu0 0.0
    %2941 = vmatpush1.msra.mxu0 0.0
    %2942 = vmatprep.subr.mxu0 0.0
    %2943 = vmatpush1.msra.mxu0 0.0
    %2944 = vmatprep.subr.mxu0 0.0
    %2945 = vmatpush1.msra.mxu0 0.0
    %2946 = vmatprep.subr.mxu0 0.0
    %2947 = vmatpush1.msra.mxu0 0.0
    %2948 = vmatprep.subr.mxu0 0.0
    %2949 = vmatpush1.msra.mxu0 0.0
    %2950 = vmatprep.subr.mxu0 0.0
    %2951 = vmatpush1.msra.mxu0 0.0
    %2952 = vmatprep.subr.mxu0 0.0
    %2953 = vmatpush1.msra.mxu0 0.0
    %2954 = vmatprep.subr.mxu0 0.0
    %2955 = vmatpush1.msra.mxu0 0.0
    %2956 = vmatprep.mubr.f32.mxu0 0.0
    %2957 = vmatmul.mubr.f32.gmra.mrb[0].mxu0 %v2890
    %v2958 = vpop.f32.mrb[0].mxu0
    %v2959 = vadd.f32 0.0, %v2958
    %v2960 = vpop.f32.mrb[0].mxu0
    %2961 = vdwg.mxu0
    %2962 = vrot.lane.b32.xlu0 %v2115, 120
    %v2963 = vpop.permute.xlu0 %2962
    %2964 = vrot.lane.b32.xlu0 %v2115, 88
    %v2965 = vpop.permute.xlu0 %2964
    %v2966 = vsel %vm169, %v2963, 0
    %v2968 = vsel %vm169, %v2965, 0
    %2970 = vmatprep.subr.mxu0 0.0
    %2971 = vmatpush1.xpose.msra.mxu0 %v2968
    %2972 = vmatprep.subr.mxu0 0.0
    %2973 = vmatpush1.xpose.msra.mxu0 0.0
    %2974 = vmatprep.subr.mxu0 0.0
    %2975 = vmatpush1.xpose.msra.mxu0 0.0
    %2976 = vmatprep.subr.mxu0 0.0
    %2977 = vmatpush1.xpose.msra.mxu0 0.0
    %2978 = vmatprep.subr.mxu0 0.0
    %2979 = vmatpush1.xpose.msra.mxu0 0.0
    %2980 = vmatprep.subr.mxu0 0.0
    %2981 = vmatpush1.xpose.msra.mxu0 0.0
    %2982 = vmatprep.subr.mxu0 0.0
    %2983 = vmatpush1.xpose.msra.mxu0 0.0
    %2984 = vmatprep.subr.mxu0 0.0
    %2985 = vmatpush1.xpose.msra.mxu0 0.0
    %2986 = vmatprep.subr.mxu0 0.0
    %2987 = vmatpush1.xpose.msra.mxu0 0.0
    %2988 = vmatprep.subr.mxu0 0.0
    %2989 = vmatpush1.xpose.msra.mxu0 0.0
    %2990 = vmatprep.subr.mxu0 0.0
    %2991 = vmatpush1.xpose.msra.mxu0 0.0
    %2992 = vmatprep.subr.mxu0 0.0
    %2993 = vmatpush1.xpose.msra.mxu0 0.0
    %2994 = vmatprep.subr.mxu0 0.0
    %2995 = vmatpush1.xpose.msra.mxu0 0.0
    %2996 = vmatprep.subr.mxu0 0.0
    %2997 = vmatpush1.xpose.msra.mxu0 0.0
    %2998 = vmatprep.subr.mxu0 0.0
    %2999 = vmatpush1.xpose.msra.mxu0 0.0
    %3000 = vmatprep.subr.mxu0 0.0
    %3001 = vmatpush1.xpose.msra.mxu0 0.0
    %3002 = vmatprep.subr.mxu0 0.0
    %3003 = vmatpush1.xpose.msra.mxu0 0.0
    %3004 = vmatprep.subr.mxu0 0.0
    %3005 = vmatpush1.xpose.msra.mxu0 0.0
    %3006 = vmatprep.subr.mxu0 0.0
    %3007 = vmatpush1.xpose.msra.mxu0 0.0
    %3008 = vmatprep.subr.mxu0 0.0
    %3009 = vmatpush1.xpose.msra.mxu0 0.0
    %3010 = vmatprep.subr.mxu0 0.0
    %3011 = vmatpush1.xpose.msra.mxu0 0.0
    %3012 = vmatprep.subr.mxu0 0.0
    %3013 = vmatpush1.xpose.msra.mxu0 0.0
    %3014 = vmatprep.subr.mxu0 0.0
    %3015 = vmatpush1.xpose.msra.mxu0 0.0
    %3016 = vmatprep.subr.mxu0 0.0
    %3017 = vmatpush1.xpose.msra.mxu0 0.0
    %3018 = vmatprep.subr.mxu0 0.0
    %3019 = vmatpush1.xpose.msra.mxu0 0.0
    %3020 = vmatprep.subr.mxu0 0.0
    %3021 = vmatpush1.xpose.msra.mxu0 0.0
    %3022 = vmatprep.subr.mxu0 0.0
    %3023 = vmatpush1.xpose.msra.mxu0 0.0
    %3024 = vmatprep.subr.mxu0 0.0
    %3025 = vmatpush1.xpose.msra.mxu0 0.0
    %3026 = vmatprep.subr.mxu0 0.0
    %3027 = vmatpush1.xpose.msra.mxu0 0.0
    %3028 = vmatprep.subr.mxu0 0.0
    %3029 = vmatpush1.xpose.msra.mxu0 0.0
    %3030 = vmatprep.subr.mxu0 0.0
    %3031 = vmatpush1.xpose.msra.mxu0 0.0
    %3032 = vmatprep.subr.mxu0 0.0
    %3033 = vmatpush1.xpose.msra.mxu0 0.0
    %3034 = vmatprep.mubr.f32.mxu0 0.0
    %3035 = vmatmul.mubr.f32.gmra.mrb[0].mxu0 %v2966
    %v3036 = vpop.f32.mrb[0].mxu0
    %v3037 = vadd.f32 0.0, %v3036
    %v3038 = vpop.f32.mrb[0].mxu0
    %3039 = vdwg.mxu0
    %v3040 = vsel %vm169, %v3037, -inf
    %3041 = vmax.xlane.f32.xlu0 %v3040
    %v3042 = vpop.xlane.xlu0 %3041
    %v3043 = vsub.f32 %v3037, %v3042
    %v3044 = vmul.f32 %v3043, 1.442695
    %v3045 = vpow.pop %v3044
    %v3046 = vsel %vm169, %v3045, 0.0
    %3047 = vadd.xlane.f32.xlu0 %v3046
    %v3048 = vpop.xlane.xlu0 %3047
    %v3049 = vrcp.pop %v3048
    %v3050 = vmul.f32 %v3045, %v3049
    %3051 = vrot.lane.b32.xlu0 %v2115, 56
    %v3052 = vpop.permute.xlu0 %3051
    %v3055 = vsel %vm169, %v3050, 0
    %3057 = vmatprep.subr.mxu0 0.0
    %3058 = vmatpush1.msra.mxu0 %v3052
    %3059 = vmatprep.subr.mxu0 0.0
    %3060 = vmatpush1.msra.mxu0 0.0
    %3061 = vmatprep.subr.mxu0 0.0
    %3062 = vmatpush1.msra.mxu0 0.0
    %3063 = vmatprep.subr.mxu0 0.0
    %3064 = vmatpush1.msra.mxu0 0.0
    %3065 = vmatprep.subr.mxu0 0.0
    %3066 = vmatpush1.msra.mxu0 0.0
    %3067 = vmatprep.subr.mxu0 0.0
    %3068 = vmatpush1.msra.mxu0 0.0
    %3069 = vmatprep.subr.mxu0 0.0
    %3070 = vmatpush1.msra.mxu0 0.0
    %3071 = vmatprep.subr.mxu0 0.0
    %3072 = vmatpush1.msra.mxu0 0.0
    %3073 = vmatprep.subr.mxu0 0.0
    %3074 = vmatpush1.msra.mxu0 0.0
    %3075 = vmatprep.subr.mxu0 0.0
    %3076 = vmatpush1.msra.mxu0 0.0
    %3077 = vmatprep.subr.mxu0 0.0
    %3078 = vmatpush1.msra.mxu0 0.0
    %3079 = vmatprep.subr.mxu0 0.0
    %3080 = vmatpush1.msra.mxu0 0.0
    %3081 = vmatprep.subr.mxu0 0.0
    %3082 = vmatpush1.msra.mxu0 0.0
    %3083 = vmatprep.subr.mxu0 0.0
    %3084 = vmatpush1.msra.mxu0 0.0
    %3085 = vmatprep.subr.mxu0 0.0
    %3086 = vmatpush1.msra.mxu0 0.0
    %3087 = vmatprep.subr.mxu0 0.0
    %3088 = vmatpush1.msra.mxu0 0.0
    %3089 = vmatprep.subr.mxu0 0.0
    %3090 = vmatpush1.msra.mxu0 0.0
    %3091 = vmatprep.subr.mxu0 0.0
    %3092 = vmatpush1.msra.mxu0 0.0
    %3093 = vmatprep.subr.mxu0 0.0
    %3094 = vmatpush1.msra.mxu0 0.0
    %3095 = vmatprep.subr.mxu0 0.0
    %3096 = vmatpush1.msra.mxu0 0.0
    %3097 = vmatprep.subr.mxu0 0.0
    %3098 = vmatpush1.msra.mxu0 0.0
    %3099 = vmatprep.subr.mxu0 0.0
    %3100 = vmatpush1.msra.mxu0 0.0
    %3101 = vmatprep.subr.mxu0 0.0
    %3102 = vmatpush1.msra.mxu0 0.0
    %3103 = vmatprep.subr.mxu0 0.0
    %3104 = vmatpush1.msra.mxu0 0.0
    %3105 = vmatprep.subr.mxu0 0.0
    %3106 = vmatpush1.msra.mxu0 0.0
    %3107 = vmatprep.subr.mxu0 0.0
    %3108 = vmatpush1.msra.mxu0 0.0
    %3109 = vmatprep.subr.mxu0 0.0
    %3110 = vmatpush1.msra.mxu0 0.0
    %3111 = vmatprep.subr.mxu0 0.0
    %3112 = vmatpush1.msra.mxu0 0.0
    %3113 = vmatprep.subr.mxu0 0.0
    %3114 = vmatpush1.msra.mxu0 0.0
    %3115 = vmatprep.subr.mxu0 0.0
    %3116 = vmatpush1.msra.mxu0 0.0
    %3117 = vmatprep.subr.mxu0 0.0
    %3118 = vmatpush1.msra.mxu0 0.0
    %3119 = vmatprep.subr.mxu0 0.0
    %3120 = vmatpush1.msra.mxu0 0.0
    %3121 = vmatprep.mubr.f32.mxu0 0.0
    %3122 = vmatmul.mubr.f32.gmra.mrb[0].mxu0 %v3055
    %v3123 = vpop.f32.mrb[0].mxu0
    %v3124 = vadd.f32 0.0, %v3123
    %v3125 = vpop.f32.mrb[0].mxu0
    %3126 = vdwg.mxu0
    %3127 = vrot.lane.b32.xlu0 %v2115, 112
    %v3128 = vpop.permute.xlu0 %3127
    %3129 = vrot.lane.b32.xlu0 %v2115, 80
    %v3130 = vpop.permute.xlu0 %3129
    %v3131 = vsel %vm169, %v3128, 0
    %v3133 = vsel %vm169, %v3130, 0
    %3135 = vmatprep.subr.mxu0 0.0
    %3136 = vmatpush1.xpose.msra.mxu0 %v3133
    %3137 = vmatprep.subr.mxu0 0.0
    %3138 = vmatpush1.xpose.msra.mxu0 0.0
    %3139 = vmatprep.subr.mxu0 0.0
    %3140 = vmatpush1.xpose.msra.mxu0 0.0
    %3141 = vmatprep.subr.mxu0 0.0
    %3142 = vmatpush1.xpose.msra.mxu0 0.0
    %3143 = vmatprep.subr.mxu0 0.0
    %3144 = vmatpush1.xpose.msra.mxu0 0.0
    %3145 = vmatprep.subr.mxu0 0.0
    %3146 = vmatpush1.xpose.msra.mxu0 0.0
    %3147 = vmatprep.subr.mxu0 0.0
    %3148 = vmatpush1.xpose.msra.mxu0 0.0
    %3149 = vmatprep.subr.mxu0 0.0
    %3150 = vmatpush1.xpose.msra.mxu0 0.0
    %3151 = vmatprep.subr.mxu0 0.0
    %3152 = vmatpush1.xpose.msra.mxu0 0.0
    %3153 = vmatprep.subr.mxu0 0.0
    %3154 = vmatpush1.xpose.msra.mxu0 0.0
    %3155 = vmatprep.subr.mxu0 0.0
    %3156 = vmatpush1.xpose.msra.mxu0 0.0
    %3157 = vmatprep.subr.mxu0 0.0
    %3158 = vmatpush1.xpose.msra.mxu0 0.0
    %3159 = vmatprep.subr.mxu0 0.0
    %3160 = vmatpush1.xpose.msra.mxu0 0.0
    %3161 = vmatprep.subr.mxu0 0.0
    %3162 = vmatpush1.xpose.msra.mxu0 0.0
    %3163 = vmatprep.subr.mxu0 0.0
    %3164 = vmatpush1.xpose.msra.mxu0 0.0
    %3165 = vmatprep.subr.mxu0 0.0
    %3166 = vmatpush1.xpose.msra.mxu0 0.0
    %3167 = vmatprep.subr.mxu0 0.0
    %3168 = vmatpush1.xpose.msra.mxu0 0.0
    %3169 = vmatprep.subr.mxu0 0.0
    %3170 = vmatpush1.xpose.msra.mxu0 0.0
    %3171 = vmatprep.subr.mxu0 0.0
    %3172 = vmatpush1.xpose.msra.mxu0 0.0
    %3173 = vmatprep.subr.mxu0 0.0
    %3174 = vmatpush1.xpose.msra.mxu0 0.0
    %3175 = vmatprep.subr.mxu0 0.0
    %3176 = vmatpush1.xpose.msra.mxu0 0.0
    %3177 = vmatprep.subr.mxu0 0.0
    %3178 = vmatpush1.xpose.msra.mxu0 0.0
    %3179 = vmatprep.subr.mxu0 0.0
    %3180 = vmatpush1.xpose.msra.mxu0 0.0
    %3181 = vmatprep.subr.mxu0 0.0
    %3182 = vmatpush1.xpose.msra.mxu0 0.0
    %3183 = vmatprep.subr.mxu0 0.0
    %3184 = vmatpush1.xpose.msra.mxu0 0.0
    %3185 = vmatprep.subr.mxu0 0.0
    %3186 = vmatpush1.xpose.msra.mxu0 0.0
    %3187 = vmatprep.subr.mxu0 0.0
    %3188 = vmatpush1.xpose.msra.mxu0 0.0
    %3189 = vmatprep.subr.mxu0 0.0
    %3190 = vmatpush1.xpose.msra.mxu0 0.0
    %3191 = vmatprep.subr.mxu0 0.0
    %3192 = vmatpush1.xpose.msra.mxu0 0.0
    %3193 = vmatprep.subr.mxu0 0.0
    %3194 = vmatpush1.xpose.msra.mxu0 0.0
    %3195 = vmatprep.subr.mxu0 0.0
    %3196 = vmatpush1.xpose.msra.mxu0 0.0
    %3197 = vmatprep.subr.mxu0 0.0
    %3198 = vmatpush1.xpose.msra.mxu0 0.0
    %3199 = vmatprep.mubr.f32.mxu0 0.0
    %3200 = vmatmul.mubr.f32.gmra.mrb[0].mxu0 %v3131
    %v3201 = vpop.f32.mrb[0].mxu0
    %v3202 = vadd.f32 0.0, %v3201
    %v3203 = vpop.f32.mrb[0].mxu0
    %3204 = vdwg.mxu0
    %v3205 = vsel %vm169, %v3202, -inf
    %3206 = vmax.xlane.f32.xlu0 %v3205
    %v3207 = vpop.xlane.xlu0 %3206
    %v3208 = vsub.f32 %v3202, %v3207
    %v3209 = vmul.f32 %v3208, 1.442695
    %v3210 = vpow.pop %v3209
    %v3211 = vsel %vm169, %v3210, 0.0
    %3212 = vadd.xlane.f32.xlu0 %v3211
    %v3213 = vpop.xlane.xlu0 %3212
    %v3214 = vrcp.pop %v3213
    %v3215 = vmul.f32 %v3210, %v3214
    %3216 = vrot.lane.b32.xlu0 %v2115, 48
    %v3217 = vpop.permute.xlu0 %3216
    %v3220 = vsel %vm169, %v3215, 0
    %3222 = vmatprep.subr.mxu0 0.0
    %3223 = vmatpush1.msra.mxu0 %v3217
    %3224 = vmatprep.subr.mxu0 0.0
    %3225 = vmatpush1.msra.mxu0 0.0
    %3226 = vmatprep.subr.mxu0 0.0
    %3227 = vmatpush1.msra.mxu0 0.0
    %3228 = vmatprep.subr.mxu0 0.0
    %3229 = vmatpush1.msra.mxu0 0.0
    %3230 = vmatprep.subr.mxu0 0.0
    %3231 = vmatpush1.msra.mxu0 0.0
    %3232 = vmatprep.subr.mxu0 0.0
    %3233 = vmatpush1.msra.mxu0 0.0
    %3234 = vmatprep.subr.mxu0 0.0
    %3235 = vmatpush1.msra.mxu0 0.0
    %3236 = vmatprep.subr.mxu0 0.0
    %3237 = vmatpush1.msra.mxu0 0.0
    %3238 = vmatprep.subr.mxu0 0.0
    %3239 = vmatpush1.msra.mxu0 0.0
    %3240 = vmatprep.subr.mxu0 0.0
    %3241 = vmatpush1.msra.mxu0 0.0
    %3242 = vmatprep.subr.mxu0 0.0
    %3243 = vmatpush1.msra.mxu0 0.0
    %3244 = vmatprep.subr.mxu0 0.0
    %3245 = vmatpush1.msra.mxu0 0.0
    %3246 = vmatprep.subr.mxu0 0.0
    %3247 = vmatpush1.msra.mxu0 0.0
    %3248 = vmatprep.subr.mxu0 0.0
    %3249 = vmatpush1.msra.mxu0 0.0
    %3250 = vmatprep.subr.mxu0 0.0
    %3251 = vmatpush1.msra.mxu0 0.0
    %3252 = vmatprep.subr.mxu0 0.0
    %3253 = vmatpush1.msra.mxu0 0.0
    %3254 = vmatprep.subr.mxu0 0.0
    %3255 = vmatpush1.msra.mxu0 0.0
    %3256 = vmatprep.subr.mxu0 0.0
    %3257 = vmatpush1.msra.mxu0 0.0
    %3258 = vmatprep.subr.mxu0 0.0
    %3259 = vmatpush1.msra.mxu0 0.0
    %3260 = vmatprep.subr.mxu0 0.0
    %3261 = vmatpush1.msra.mxu0 0.0
    %3262 = vmatprep.subr.mxu0 0.0
    %3263 = vmatpush1.msra.mxu0 0.0
    %3264 = vmatprep.subr.mxu0 0.0
    %3265 = vmatpush1.msra.mxu0 0.0
    %3266 = vmatprep.subr.mxu0 0.0
    %3267 = vmatpush1.msra.mxu0 0.0
    %3268 = vmatprep.subr.mxu0 0.0
    %3269 = vmatpush1.msra.mxu0 0.0
    %3270 = vmatprep.subr.mxu0 0.0
    %3271 = vmatpush1.msra.mxu0 0.0
    %3272 = vmatprep.subr.mxu0 0.0
    %3273 = vmatpush1.msra.mxu0 0.0
    %3274 = vmatprep.subr.mxu0 0.0
    %3275 = vmatpush1.msra.mxu0 0.0
    %3276 = vmatprep.subr.mxu0 0.0
    %3277 = vmatpush1.msra.mxu0 0.0
    %3278 = vmatprep.subr.mxu0 0.0
    %3279 = vmatpush1.msra.mxu0 0.0
    %3280 = vmatprep.subr.mxu0 0.0
    %3281 = vmatpush1.msra.mxu0 0.0
    %3282 = vmatprep.subr.mxu0 0.0
    %3283 = vmatpush1.msra.mxu0 0.0
    %3284 = vmatprep.subr.mxu0 0.0
    %3285 = vmatpush1.msra.mxu0 0.0
    %3286 = vmatprep.mubr.f32.mxu0 0.0
    %3287 = vmatmul.mubr.f32.gmra.mrb[0].mxu0 %v3220
    %v3288 = vpop.f32.mrb[0].mxu0
    %v3289 = vadd.f32 0.0, %v3288
    %v3290 = vpop.f32.mrb[0].mxu0
    %3291 = vdwg.mxu0
    %3292 = vrot.lane.b32.xlu0 %v2115, 104
    %v3293 = vpop.permute.xlu0 %3292
    %3294 = vrot.lane.b32.xlu0 %v2115, 72
    %v3295 = vpop.permute.xlu0 %3294
    %v3296 = vsel %vm169, %v3293, 0
    %v3298 = vsel %vm169, %v3295, 0
    %3300 = vmatprep.subr.mxu0 0.0
    %3301 = vmatpush1.xpose.msra.mxu0 %v3298
    %3302 = vmatprep.subr.mxu0 0.0
    %3303 = vmatpush1.xpose.msra.mxu0 0.0
    %3304 = vmatprep.subr.mxu0 0.0
    %3305 = vmatpush1.xpose.msra.mxu0 0.0
    %3306 = vmatprep.subr.mxu0 0.0
    %3307 = vmatpush1.xpose.msra.mxu0 0.0
    %3308 = vmatprep.subr.mxu0 0.0
    %3309 = vmatpush1.xpose.msra.mxu0 0.0
    %3310 = vmatprep.subr.mxu0 0.0
    %3311 = vmatpush1.xpose.msra.mxu0 0.0
    %3312 = vmatprep.subr.mxu0 0.0
    %3313 = vmatpush1.xpose.msra.mxu0 0.0
    %3314 = vmatprep.subr.mxu0 0.0
    %3315 = vmatpush1.xpose.msra.mxu0 0.0
    %3316 = vmatprep.subr.mxu0 0.0
    %3317 = vmatpush1.xpose.msra.mxu0 0.0
    %3318 = vmatprep.subr.mxu0 0.0
    %3319 = vmatpush1.xpose.msra.mxu0 0.0
    %3320 = vmatprep.subr.mxu0 0.0
    %3321 = vmatpush1.xpose.msra.mxu0 0.0
    %3322 = vmatprep.subr.mxu0 0.0
    %3323 = vmatpush1.xpose.msra.mxu0 0.0
    %3324 = vmatprep.subr.mxu0 0.0
    %3325 = vmatpush1.xpose.msra.mxu0 0.0
    %3326 = vmatprep.subr.mxu0 0.0
    %3327 = vmatpush1.xpose.msra.mxu0 0.0
    %3328 = vmatprep.subr.mxu0 0.0
    %3329 = vmatpush1.xpose.msra.mxu0 0.0
    %3330 = vmatprep.subr.mxu0 0.0
    %3331 = vmatpush1.xpose.msra.mxu0 0.0
    %3332 = vmatprep.subr.mxu0 0.0
    %3333 = vmatpush1.xpose.msra.mxu0 0.0
    %3334 = vmatprep.subr.mxu0 0.0
    %3335 = vmatpush1.xpose.msra.mxu0 0.0
    %3336 = vmatprep.subr.mxu0 0.0
    %3337 = vmatpush1.xpose.msra.mxu0 0.0
    %3338 = vmatprep.subr.mxu0 0.0
    %3339 = vmatpush1.xpose.msra.mxu0 0.0
    %3340 = vmatprep.subr.mxu0 0.0
    %3341 = vmatpush1.xpose.msra.mxu0 0.0
    %3342 = vmatprep.subr.mxu0 0.0
    %3343 = vmatpush1.xpose.msra.mxu0 0.0
    %3344 = vmatprep.subr.mxu0 0.0
    %3345 = vmatpush1.xpose.msra.mxu0 0.0
    %3346 = vmatprep.subr.mxu0 0.0
    %3347 = vmatpush1.xpose.msra.mxu0 0.0
    %3348 = vmatprep.subr.mxu0 0.0
    %3349 = vmatpush1.xpose.msra.mxu0 0.0
    %3350 = vmatprep.subr.mxu0 0.0
    %3351 = vmatpush1.xpose.msra.mxu0 0.0
    %3352 = vmatprep.subr.mxu0 0.0
    %3353 = vmatpush1.xpose.msra.mxu0 0.0
    %3354 = vmatprep.subr.mxu0 0.0
    %3355 = vmatpush1.xpose.msra.mxu0 0.0
    %3356 = vmatprep.subr.mxu0 0.0
    %3357 = vmatpush1.xpose.msra.mxu0 0.0
    %3358 = vmatprep.subr.mxu0 0.0
    %3359 = vmatpush1.xpose.msra.mxu0 0.0
    %3360 = vmatprep.subr.mxu0 0.0
    %3361 = vmatpush1.xpose.msra.mxu0 0.0
    %3362 = vmatprep.subr.mxu0 0.0
    %3363 = vmatpush1.xpose.msra.mxu0 0.0
    %3364 = vmatprep.mubr.f32.mxu0 0.0
    %3365 = vmatmul.mubr.f32.gmra.mrb[0].mxu0 %v3296
    %v3366 = vpop.f32.mrb[0].mxu0
    %v3367 = vadd.f32 0.0, %v3366
    %v3368 = vpop.f32.mrb[0].mxu0
    %3369 = vdwg.mxu0
    %v3370 = vsel %vm169, %v3367, -inf
    %3371 = vmax.xlane.f32.xlu0 %v3370
    %v3372 = vpop.xlane.xlu0 %3371
    %v3373 = vsub.f32 %v3367, %v3372
    %v3374 = vmul.f32 %v3373, 1.442695
    %v3375 = vpow.pop %v3374
    %v3376 = vsel %vm169, %v3375, 0.0
    %3377 = vadd.xlane.f32.xlu0 %v3376
    %v3378 = vpop.xlane.xlu0 %3377
    %v3379 = vrcp.pop %v3378
    %v3380 = vmul.f32 %v3375, %v3379
    %3381 = vrot.lane.b32.xlu0 %v2115, 40
    %v3382 = vpop.permute.xlu0 %3381
    %v3385 = vsel %vm169, %v3380, 0
    %3387 = vmatprep.subr.mxu0 0.0
    %3388 = vmatpush1.msra.mxu0 %v3382
    %3389 = vmatprep.subr.mxu0 0.0
    %3390 = vmatpush1.msra.mxu0 0.0
    %3391 = vmatprep.subr.mxu0 0.0
    %3392 = vmatpush1.msra.mxu0 0.0
    %3393 = vmatprep.subr.mxu0 0.0
    %3394 = vmatpush1.msra.mxu0 0.0
    %3395 = vmatprep.subr.mxu0 0.0
    %3396 = vmatpush1.msra.mxu0 0.0
    %3397 = vmatprep.subr.mxu0 0.0
    %3398 = vmatpush1.msra.mxu0 0.0
    %3399 = vmatprep.subr.mxu0 0.0
    %3400 = vmatpush1.msra.mxu0 0.0
    %3401 = vmatprep.subr.mxu0 0.0
    %3402 = vmatpush1.msra.mxu0 0.0
    %3403 = vmatprep.subr.mxu0 0.0
    %3404 = vmatpush1.msra.mxu0 0.0
    %3405 = vmatprep.subr.mxu0 0.0
    %3406 = vmatpush1.msra.mxu0 0.0
    %3407 = vmatprep.subr.mxu0 0.0
    %3408 = vmatpush1.msra.mxu0 0.0
    %3409 = vmatprep.subr.mxu0 0.0
    %3410 = vmatpush1.msra.mxu0 0.0
    %3411 = vmatprep.subr.mxu0 0.0
    %3412 = vmatpush1.msra.mxu0 0.0
    %3413 = vmatprep.subr.mxu0 0.0
    %3414 = vmatpush1.msra.mxu0 0.0
    %3415 = vmatprep.subr.mxu0 0.0
    %3416 = vmatpush1.msra.mxu0 0.0
    %3417 = vmatprep.subr.mxu0 0.0
    %3418 = vmatpush1.msra.mxu0 0.0
    %3419 = vmatprep.subr.mxu0 0.0
    %3420 = vmatpush1.msra.mxu0 0.0
    %3421 = vmatprep.subr.mxu0 0.0
    %3422 = vmatpush1.msra.mxu0 0.0
    %3423 = vmatprep.subr.mxu0 0.0
    %3424 = vmatpush1.msra.mxu0 0.0
    %3425 = vmatprep.subr.mxu0 0.0
    %3426 = vmatpush1.msra.mxu0 0.0
    %3427 = vmatprep.subr.mxu0 0.0
    %3428 = vmatpush1.msra.mxu0 0.0
    %3429 = vmatprep.subr.mxu0 0.0
    %3430 = vmatpush1.msra.mxu0 0.0
    %3431 = vmatprep.subr.mxu0 0.0
    %3432 = vmatpush1.msra.mxu0 0.0
    %3433 = vmatprep.subr.mxu0 0.0
    %3434 = vmatpush1.msra.mxu0 0.0
    %3435 = vmatprep.subr.mxu0 0.0
    %3436 = vmatpush1.msra.mxu0 0.0
    %3437 = vmatprep.subr.mxu0 0.0
    %3438 = vmatpush1.msra.mxu0 0.0
    %3439 = vmatprep.subr.mxu0 0.0
    %3440 = vmatpush1.msra.mxu0 0.0
    %3441 = vmatprep.subr.mxu0 0.0
    %3442 = vmatpush1.msra.mxu0 0.0
    %3443 = vmatprep.subr.mxu0 0.0
    %3444 = vmatpush1.msra.mxu0 0.0
    %3445 = vmatprep.subr.mxu0 0.0
    %3446 = vmatpush1.msra.mxu0 0.0
    %3447 = vmatprep.subr.mxu0 0.0
    %3448 = vmatpush1.msra.mxu0 0.0
    %3449 = vmatprep.subr.mxu0 0.0
    %3450 = vmatpush1.msra.mxu0 0.0
    %3451 = vmatprep.mubr.f32.mxu0 0.0
    %3452 = vmatmul.mubr.f32.gmra.mrb[0].mxu0 %v3385
    %v3453 = vpop.f32.mrb[0].mxu0
    %v3454 = vadd.f32 0.0, %v3453
    %v3455 = vpop.f32.mrb[0].mxu0
    %3456 = vdwg.mxu0
    %v3457 = vadd.f32 %v2885, %v3050
    %v3458 = vadd.f32 %v3457, %v3215
    %v3459 = vadd.f32 %v3458, %v3380
    %v3460 = vmul.f32 %v3459, 0.25
    %s3461 = scalar_lea.vmem [#allocation4], 24
    %3462 = vst.msk [vmem:[%s3461] sm:$0xff] %vm169, %v3460
    %3464 = vrot.lane.b32.xlu0 %v3124, 8
    %v3465 = vpop.permute.xlu0 %3464
    %3468 = vrot.lane.b32.xlu0 %v3289, 16
    %v3469 = vpop.permute.xlu0 %3468
    %3472 = vrot.lane.b32.xlu0 %v3454, 24
    %v3473 = vpop.permute.xlu0 %3472
    %v3475 = vsel %vm169, %v2959, %v3465
    %v3476 = vsel %vm844, %v3475, %v3469
    %v3477 = vsel %vm846, %v3476, %v3473
    %v3479 = vsel %vm84, %v2797, 0
    %v3482 = vsel %vm84, %v3477, 0
    %3484 = vmatprep.subr.mxu0 0.0
    %3485 = vmatpush1.msra.mxu0 %v59
    %3486 = vmatprep.subr.mxu0 0.0
    %3487 = vmatpush1.msra.mxu0 %v60
    %3488 = vmatprep.subr.mxu0 0.0
    %3489 = vmatpush1.msra.mxu0 %v61
    %3490 = vmatprep.subr.mxu0 0.0
    %3491 = vmatpush1.msra.mxu0 %v62
    %3492 = vmatprep.subr.mxu0 0.0
    %3493 = vmatpush1.msra.mxu0 0.0
    %3494 = vmatprep.subr.mxu0 0.0
    %3495 = vmatpush1.msra.mxu0 0.0
    %3496 = vmatprep.subr.mxu0 0.0
    %3497 = vmatpush1.msra.mxu0 0.0
    %3498 = vmatprep.subr.mxu0 0.0
    %3499 = vmatpush1.msra.mxu0 0.0
    %3500 = vmatprep.subr.mxu0 0.0
    %3501 = vmatpush1.msra.mxu0 0.0
    %3502 = vmatprep.subr.mxu0 0.0
    %3503 = vmatpush1.msra.mxu0 0.0
    %3504 = vmatprep.subr.mxu0 0.0
    %3505 = vmatpush1.msra.mxu0 0.0
    %3506 = vmatprep.subr.mxu0 0.0
    %3507 = vmatpush1.msra.mxu0 0.0
    %3508 = vmatprep.subr.mxu0 0.0
    %3509 = vmatpush1.msra.mxu0 0.0
    %3510 = vmatprep.subr.mxu0 0.0
    %3511 = vmatpush1.msra.mxu0 0.0
    %3512 = vmatprep.subr.mxu0 0.0
    %3513 = vmatpush1.msra.mxu0 0.0
    %3514 = vmatprep.subr.mxu0 0.0
    %3515 = vmatpush1.msra.mxu0 0.0
    %3516 = vmatprep.subr.mxu0 0.0
    %3517 = vmatpush1.msra.mxu0 0.0
    %3518 = vmatprep.subr.mxu0 0.0
    %3519 = vmatpush1.msra.mxu0 0.0
    %3520 = vmatprep.subr.mxu0 0.0
    %3521 = vmatpush1.msra.mxu0 0.0
    %3522 = vmatprep.subr.mxu0 0.0
    %3523 = vmatpush1.msra.mxu0 0.0
    %3524 = vmatprep.subr.mxu0 0.0
    %3525 = vmatpush1.msra.mxu0 0.0
    %3526 = vmatprep.subr.mxu0 0.0
    %3527 = vmatpush1.msra.mxu0 0.0
    %3528 = vmatprep.subr.mxu0 0.0
    %3529 = vmatpush1.msra.mxu0 0.0
    %3530 = vmatprep.subr.mxu0 0.0
    %3531 = vmatpush1.msra.mxu0 0.0
    %3532 = vmatprep.subr.mxu0 0.0
    %3533 = vmatpush1.msra.mxu0 0.0
    %3534 = vmatprep.subr.mxu0 0.0
    %3535 = vmatpush1.msra.mxu0 0.0
    %3536 = vmatprep.subr.mxu0 0.0
    %3537 = vmatpush1.msra.mxu0 0.0
    %3538 = vmatprep.subr.mxu0 0.0
    %3539 = vmatpush1.msra.mxu0 0.0
    %3540 = vmatprep.subr.mxu0 0.0
    %3541 = vmatpush1.msra.mxu0 0.0
    %3542 = vmatprep.subr.mxu0 0.0
    %3543 = vmatpush1.msra.mxu0 0.0
    %3544 = vmatprep.subr.mxu0 0.0
    %3545 = vmatpush1.msra.mxu0 0.0
    %3546 = vmatprep.subr.mxu0 0.0
    %3547 = vmatpush1.msra.mxu0 0.0
    %3548 = vmatprep.mubr.f32.mxu0 0.0
    %3549 = vmatmul.mubr.f32.gmra.mrb[0].mxu0 %v3479
    %v3550 = vpop.f32.mrb[0].mxu0
    %v3551 = vadd.f32 %v1532, %v3550
    %v3552 = vpop.f32.mrb[0].mxu0
    %3553 = vmatprep.mubr.f32.mxu0 0.0
    %3554 = vmatmul.mubr.f32.gmra.mrb[0].mxu0 %v3482
    %v3555 = vpop.f32.mrb[0].mxu0
    %v3556 = vadd.f32 %v1532, %v3555
    %v3557 = vpop.f32.mrb[0].mxu0
    %3558 = vdwg.mxu0
    %v3559 = vld [vmem:[%s1] sm:$0xff]
    %v3561 = vsel %vm169, %v3559, 0
    %3563 = vmatprep.subr.mxu0 0.0
    %3564 = vmatpush1.msra.mxu0 %v3551
    %3565 = vmatprep.subr.mxu0 0.0
    %3566 = vmatpush1.msra.mxu0 0.0
    %3567 = vmatprep.subr.mxu0 0.0
    %3568 = vmatpush1.msra.mxu0 0.0
    %3569 = vmatprep.subr.mxu0 0.0
    %3570 = vmatpush1.msra.mxu0 0.0
    %3571 = vmatprep.subr.mxu0 0.0
    %3572 = vmatpush1.msra.mxu0 0.0
    %3573 = vmatprep.subr.mxu0 0.0
    %3574 = vmatpush1.msra.mxu0 0.0
    %3575 = vmatprep.subr.mxu0 0.0
    %3576 = vmatpush1.msra.mxu0 0.0
    %3577 = vmatprep.subr.mxu0 0.0
    %3578 = vmatpush1.msra.mxu0 0.0
    %3579 = vmatprep.subr.mxu0 0.0
    %3580 = vmatpush1.msra.mxu0 0.0
    %3581 = vmatprep.subr.mxu0 0.0
    %3582 = vmatpush1.msra.mxu0 0.0
    %3583 = vmatprep.subr.mxu0 0.0
    %3584 = vmatpush1.msra.mxu0 0.0
    %3585 = vmatprep.subr.mxu0 0.0
    %3586 = vmatpush1.msra.mxu0 0.0
    %3587 = vmatprep.subr.mxu0 0.0
    %3588 = vmatpush1.msra.mxu0 0.0
    %3589 = vmatprep.subr.mxu0 0.0
    %3590 = vmatpush1.msra.mxu0 0.0
    %3591 = vmatprep.subr.mxu0 0.0
    %3592 = vmatpush1.msra.mxu0 0.0
    %3593 = vmatprep.subr.mxu0 0.0
    %3594 = vmatpush1.msra.mxu0 0.0
    %3595 = vmatprep.subr.mxu0 0.0
    %3596 = vmatpush1.msra.mxu0 0.0
    %3597 = vmatprep.subr.mxu0 0.0
    %3598 = vmatpush1.msra.mxu0 0.0
    %3599 = vmatprep.subr.mxu0 0.0
    %3600 = vmatpush1.msra.mxu0 0.0
    %3601 = vmatprep.subr.mxu0 0.0
    %3602 = vmatpush1.msra.mxu0 0.0
    %3603 = vmatprep.subr.mxu0 0.0
    %3604 = vmatpush1.msra.mxu0 0.0
    %3605 = vmatprep.subr.mxu0 0.0
    %3606 = vmatpush1.msra.mxu0 0.0
    %3607 = vmatprep.subr.mxu0 0.0
    %3608 = vmatpush1.msra.mxu0 0.0
    %3609 = vmatprep.subr.mxu0 0.0
    %3610 = vmatpush1.msra.mxu0 0.0
    %3611 = vmatprep.subr.mxu0 0.0
    %3612 = vmatpush1.msra.mxu0 0.0
    %3613 = vmatprep.subr.mxu0 0.0
    %3614 = vmatpush1.msra.mxu0 0.0
    %3615 = vmatprep.subr.mxu0 0.0
    %3616 = vmatpush1.msra.mxu0 0.0
    %3617 = vmatprep.subr.mxu0 0.0
    %3618 = vmatpush1.msra.mxu0 0.0
    %3619 = vmatprep.subr.mxu0 0.0
    %3620 = vmatpush1.msra.mxu0 0.0
    %3621 = vmatprep.subr.mxu0 0.0
    %3622 = vmatpush1.msra.mxu0 0.0
    %3623 = vmatprep.subr.mxu0 0.0
    %3624 = vmatpush1.msra.mxu0 0.0
    %3625 = vmatprep.subr.mxu0 0.0
    %3626 = vmatpush1.msra.mxu0 0.0
    %3627 = vmatprep.mubr.f32.mxu0 0.0
    %3628 = vmatmul.mubr.f32.gmra.mrb[0].mxu0 %v3561
    %v3629 = vpop.f32.mrb[0].mxu0
    %v3630 = vadd.f32 0.0, %v3629
    %v3631 = vpop.f32.mrb[0].mxu0
    %3632 = vdwg.mxu0
    %v3633 = vld [vmem:[%s1689] sm:$0xff]
    %v3635 = vsel %vm169, %v3633, 0
    %3637 = vmatprep.subr.mxu0 0.0
    %3638 = vmatpush1.msra.mxu0 %v3556
    %3639 = vmatprep.subr.mxu0 0.0
    %3640 = vmatpush1.msra.mxu0 0.0
    %3641 = vmatprep.subr.mxu0 0.0
    %3642 = vmatpush1.msra.mxu0 0.0
    %3643 = vmatprep.subr.mxu0 0.0
    %3644 = vmatpush1.msra.mxu0 0.0
    %3645 = vmatprep.subr.mxu0 0.0
    %3646 = vmatpush1.msra.mxu0 0.0
    %3647 = vmatprep.subr.mxu0 0.0
    %3648 = vmatpush1.msra.mxu0 0.0
    %3649 = vmatprep.subr.mxu0 0.0
    %3650 = vmatpush1.msra.mxu0 0.0
    %3651 = vmatprep.subr.mxu0 0.0
    %3652 = vmatpush1.msra.mxu0 0.0
    %3653 = vmatprep.subr.mxu0 0.0
    %3654 = vmatpush1.msra.mxu0 0.0
    %3655 = vmatprep.subr.mxu0 0.0
    %3656 = vmatpush1.msra.mxu0 0.0
    %3657 = vmatprep.subr.mxu0 0.0
    %3658 = vmatpush1.msra.mxu0 0.0
    %3659 = vmatprep.subr.mxu0 0.0
    %3660 = vmatpush1.msra.mxu0 0.0
    %3661 = vmatprep.subr.mxu0 0.0
    %3662 = vmatpush1.msra.mxu0 0.0
    %3663 = vmatprep.subr.mxu0 0.0
    %3664 = vmatpush1.msra.mxu0 0.0
    %3665 = vmatprep.subr.mxu0 0.0
    %3666 = vmatpush1.msra.mxu0 0.0
    %3667 = vmatprep.subr.mxu0 0.0
    %3668 = vmatpush1.msra.mxu0 0.0
    %3669 = vmatprep.subr.mxu0 0.0
    %3670 = vmatpush1.msra.mxu0 0.0
    %3671 = vmatprep.subr.mxu0 0.0
    %3672 = vmatpush1.msra.mxu0 0.0
    %3673 = vmatprep.subr.mxu0 0.0
    %3674 = vmatpush1.msra.mxu0 0.0
    %3675 = vmatprep.subr.mxu0 0.0
    %3676 = vmatpush1.msra.mxu0 0.0
    %3677 = vmatprep.subr.mxu0 0.0
    %3678 = vmatpush1.msra.mxu0 0.0
    %3679 = vmatprep.subr.mxu0 0.0
    %3680 = vmatpush1.msra.mxu0 0.0
    %3681 = vmatprep.subr.mxu0 0.0
    %3682 = vmatpush1.msra.mxu0 0.0
    %3683 = vmatprep.subr.mxu0 0.0
    %3684 = vmatpush1.msra.mxu0 0.0
    %3685 = vmatprep.subr.mxu0 0.0
    %3686 = vmatpush1.msra.mxu0 0.0
    %3687 = vmatprep.subr.mxu0 0.0
    %3688 = vmatpush1.msra.mxu0 0.0
    %3689 = vmatprep.subr.mxu0 0.0
    %3690 = vmatpush1.msra.mxu0 0.0
    %3691 = vmatprep.subr.mxu0 0.0
    %3692 = vmatpush1.msra.mxu0 0.0
    %3693 = vmatprep.subr.mxu0 0.0
    %3694 = vmatpush1.msra.mxu0 0.0
    %3695 = vmatprep.subr.mxu0 0.0
    %3696 = vmatpush1.msra.mxu0 0.0
    %3697 = vmatprep.subr.mxu0 0.0
    %3698 = vmatpush1.msra.mxu0 0.0
    %3699 = vmatprep.subr.mxu0 0.0
    %3700 = vmatpush1.msra.mxu0 0.0
    %3701 = vmatprep.mubr.f32.mxu0 0.0
    %3702 = vmatmul.mubr.f32.gmra.mrb[0].mxu0 %v3635
    %v3703 = vpop.f32.mrb[0].mxu0
    %v3704 = vadd.f32 0.0, %v3703
    %v3705 = vpop.f32.mrb[0].mxu0
    %3706 = vdwg.mxu0
    %v3707 = vadd.f32 %v2035, %v3630
    %v3708 = vadd.f32 %v2036, %v3704
    %v3709 = vsel %vm84, %v3707, 0.0
    %3710 = vadd.xlane.f32.xlu0 %v3709
    %v3711 = vpop.xlane.xlu0 %3710
    %v3712 = vsel %vm84, %v3708, 0.0
    %3713 = vadd.xlane.f32.xlu0 %v3712
    %v3714 = vpop.xlane.xlu0 %3713
    %v3715 = vmul.f32 %v3711, %v1772
    %v3716 = vmul.f32 %v3714, %v1772
    %v3717 = vsub.f32 %v3707, %v3715
    %v3718 = vsub.f32 %v3708, %v3716
    %v3719 = vmul.f32 %v3717, %v3717
    %v3720 = vmul.f32 %v3718, %v3718
    %v3721 = vsel %vm84, %v3719, 0.0
    %3722 = vadd.xlane.f32.xlu0 %v3721
    %v3723 = vpop.xlane.xlu0 %3722
    %v3724 = vsel %vm84, %v3720, 0.0
    %3725 = vadd.xlane.f32.xlu0 %v3724
    %v3726 = vpop.xlane.xlu0 %3725
    %v3727 = vmul.f32 %v3723, %v1772
    %v3728 = vmul.f32 %v3726, %v1772
    %v3729 = vadd.f32 %v3727, 1e-05
    %v3730 = vadd.f32 %v3728, 1e-05
    %v3731 = vrsqrt.pop %v3729
    %v3732 = vrsqrt.pop %v3730
    %v3733 = vmul.f32 %v3717, %v3731
    %v3734 = vmul.f32 %v3718, %v3732
    %v3735 = vmul.f32 %v3733, %v1797
    %v3736 = vmul.f32 %v3734, %v1797
    %v3737 = vadd.f32 %v3735, %v1805
    %v3738 = vadd.f32 %v3736, %v1805
    %v3740 = vsel %vm84, %v3737, 0
    %v3743 = vsel %vm84, %v3738, 0
    %3745 = vmatprep.subr.mxu0 0.0
    %3746 = vmatpush1.msra.mxu0 %v64
    %3747 = vmatprep.subr.mxu0 0.0
    %3748 = vmatpush1.msra.mxu0 %v65
    %3749 = vmatprep.subr.mxu0 0.0
    %3750 = vmatpush1.msra.mxu0 %v66
    %3751 = vmatprep.subr.mxu0 0.0
    %3752 = vmatpush1.msra.mxu0 %v67
    %3753 = vmatprep.subr.mxu0 0.0
    %3754 = vmatpush1.msra.mxu0 0.0
    %3755 = vmatprep.subr.mxu0 0.0
    %3756 = vmatpush1.msra.mxu0 0.0
    %3757 = vmatprep.subr.mxu0 0.0
    %3758 = vmatpush1.msra.mxu0 0.0
    %3759 = vmatprep.subr.mxu0 0.0
    %3760 = vmatpush1.msra.mxu0 0.0
    %3761 = vmatprep.subr.mxu0 0.0
    %3762 = vmatpush1.msra.mxu0 0.0
    %3763 = vmatprep.subr.mxu0 0.0
    %3764 = vmatpush1.msra.mxu0 0.0
    %3765 = vmatprep.subr.mxu0 0.0
    %3766 = vmatpush1.msra.mxu0 0.0
    %3767 = vmatprep.subr.mxu0 0.0
    %3768 = vmatpush1.msra.mxu0 0.0
    %3769 = vmatprep.subr.mxu0 0.0
    %3770 = vmatpush1.msra.mxu0 0.0
    %3771 = vmatprep.subr.mxu0 0.0
    %3772 = vmatpush1.msra.mxu0 0.0
    %3773 = vmatprep.subr.mxu0 0.0
    %3774 = vmatpush1.msra.mxu0 0.0
    %3775 = vmatprep.subr.mxu0 0.0
    %3776 = vmatpush1.msra.mxu0 0.0
    %3777 = vmatprep.subr.mxu0 0.0
    %3778 = vmatpush1.msra.mxu0 0.0
    %3779 = vmatprep.subr.mxu0 0.0
    %3780 = vmatpush1.msra.mxu0 0.0
    %3781 = vmatprep.subr.mxu0 0.0
    %3782 = vmatpush1.msra.mxu0 0.0
    %3783 = vmatprep.subr.mxu0 0.0
    %3784 = vmatpush1.msra.mxu0 0.0
    %3785 = vmatprep.subr.mxu0 0.0
    %3786 = vmatpush1.msra.mxu0 0.0
    %3787 = vmatprep.subr.mxu0 0.0
    %3788 = vmatpush1.msra.mxu0 0.0
    %3789 = vmatprep.subr.mxu0 0.0
    %3790 = vmatpush1.msra.mxu0 0.0
    %3791 = vmatprep.subr.mxu0 0.0
    %3792 = vmatpush1.msra.mxu0 0.0
    %3793 = vmatprep.subr.mxu0 0.0
    %3794 = vmatpush1.msra.mxu0 0.0
    %3795 = vmatprep.subr.mxu0 0.0
    %3796 = vmatpush1.msra.mxu0 0.0
    %3797 = vmatprep.subr.mxu0 0.0
    %3798 = vmatpush1.msra.mxu0 0.0
    %3799 = vmatprep.subr.mxu0 0.0
    %3800 = vmatpush1.msra.mxu0 0.0
    %3801 = vmatprep.subr.mxu0 0.0
    %3802 = vmatpush1.msra.mxu0 0.0
    %3803 = vmatprep.subr.mxu0 0.0
    %3804 = vmatpush1.msra.mxu0 0.0
    %3805 = vmatprep.subr.mxu0 0.0
    %3806 = vmatpush1.msra.mxu0 0.0
    %3807 = vmatprep.subr.mxu0 0.0
    %3808 = vmatpush1.msra.mxu0 0.0
    %3809 = vmatprep.mubr.f32.mxu0 0.0
    %3810 = vmatmul.mubr.f32.gmra.mrb[0].mxu0 %v3740
    %v3811 = vpop.f32.mrb[0].mxu0
    %v3812 = vadd.f32 %v1813, %v3811
    %v3813 = vpop.f32.mrb[0].mxu0
    %3814 = vmatprep.mubr.f32.mxu0 0.0
    %3815 = vmatmul.mubr.f32.gmra.mrb[0].mxu0 %v3743
    %v3816 = vpop.f32.mrb[0].mxu0
    %v3817 = vadd.f32 %v1813, %v3816
    %v3818 = vpop.f32.mrb[0].mxu0
    %3819 = vdwg.mxu0
    %v3820 = vmul.f32 %v3812, 0.5
    %v3821 = vmul.f32 %v3817, 0.5
    %v3822 = vmul.f32 %v3812, 0.70710677
    %v3823 = vmul.f32 %v3817, 0.70710677
    %v3824 = verf.f32.pop %v3822
    %v3825 = verf.f32.pop %v3823
    %v3826 = vadd.f32 %v3824, 1.0
    %v3827 = vadd.f32 %v3825, 1.0
    %v3828 = vmul.f32 %v3820, %v3826
    %v3829 = vmul.f32 %v3821, %v3827
    %v3831 = vsel %vm84, %v3828, 0
    %v3834 = vsel %vm84, %v3829, 0
    %3836 = vmatprep.subr.mxu0 0.0
    %3837 = vmatpush1.msra.mxu0 %v69
    %3838 = vmatprep.subr.mxu0 0.0
    %3839 = vmatpush1.msra.mxu0 %v70
    %3840 = vmatprep.subr.mxu0 0.0
    %3841 = vmatpush1.msra.mxu0 %v71
    %3842 = vmatprep.subr.mxu0 0.0
    %3843 = vmatpush1.msra.mxu0 %v72
    %3844 = vmatprep.subr.mxu0 0.0
    %3845 = vmatpush1.msra.mxu0 0.0
    %3846 = vmatprep.subr.mxu0 0.0
    %3847 = vmatpush1.msra.mxu0 0.0
    %3848 = vmatprep.subr.mxu0 0.0
    %3849 = vmatpush1.msra.mxu0 0.0
    %3850 = vmatprep.subr.mxu0 0.0
    %3851 = vmatpush1.msra.mxu0 0.0
    %3852 = vmatprep.subr.mxu0 0.0
    %3853 = vmatpush1.msra.mxu0 0.0
    %3854 = vmatprep.subr.mxu0 0.0
    %3855 = vmatpush1.msra.mxu0 0.0
    %3856 = vmatprep.subr.mxu0 0.0
    %3857 = vmatpush1.msra.mxu0 0.0
    %3858 = vmatprep.subr.mxu0 0.0
    %3859 = vmatpush1.msra.mxu0 0.0
    %3860 = vmatprep.subr.mxu0 0.0
    %3861 = vmatpush1.msra.mxu0 0.0
    %3862 = vmatprep.subr.mxu0 0.0
    %3863 = vmatpush1.msra.mxu0 0.0
    %3864 = vmatprep.subr.mxu0 0.0
    %3865 = vmatpush1.msra.mxu0 0.0
    %3866 = vmatprep.subr.mxu0 0.0
    %3867 = vmatpush1.msra.mxu0 0.0
    %3868 = vmatprep.subr.mxu0 0.0
    %3869 = vmatpush1.msra.mxu0 0.0
    %3870 = vmatprep.subr.mxu0 0.0
    %3871 = vmatpush1.msra.mxu0 0.0
    %3872 = vmatprep.subr.mxu0 0.0
    %3873 = vmatpush1.msra.mxu0 0.0
    %3874 = vmatprep.subr.mxu0 0.0
    %3875 = vmatpush1.msra.mxu0 0.0
    %3876 = vmatprep.subr.mxu0 0.0
    %3877 = vmatpush1.msra.mxu0 0.0
    %3878 = vmatprep.subr.mxu0 0.0
    %3879 = vmatpush1.msra.mxu0 0.0
    %3880 = vmatprep.subr.mxu0 0.0
    %3881 = vmatpush1.msra.mxu0 0.0
    %3882 = vmatprep.subr.mxu0 0.0
    %3883 = vmatpush1.msra.mxu0 0.0
    %3884 = vmatprep.subr.mxu0 0.0
    %3885 = vmatpush1.msra.mxu0 0.0
    %3886 = vmatprep.subr.mxu0 0.0
    %3887 = vmatpush1.msra.mxu0 0.0
    %3888 = vmatprep.subr.mxu0 0.0
    %3889 = vmatpush1.msra.mxu0 0.0
    %3890 = vmatprep.subr.mxu0 0.0
    %3891 = vmatpush1.msra.mxu0 0.0
    %3892 = vmatprep.subr.mxu0 0.0
    %3893 = vmatpush1.msra.mxu0 0.0
    %3894 = vmatprep.subr.mxu0 0.0
    %3895 = vmatpush1.msra.mxu0 0.0
    %3896 = vmatprep.subr.mxu0 0.0
    %3897 = vmatpush1.msra.mxu0 0.0
    %3898 = vmatprep.subr.mxu0 0.0
    %3899 = vmatpush1.msra.mxu0 0.0
    %3900 = vmatprep.mubr.f32.mxu0 0.0
    %3901 = vmatmul.mubr.f32.gmra.mrb[0].mxu0 %v3831
    %v3902 = vpop.f32.mrb[0].mxu0
    %v3903 = vadd.f32 %v1910, %v3902
    %v3904 = vpop.f32.mrb[0].mxu0
    %3905 = vmatprep.mubr.f32.mxu0 0.0
    %3906 = vmatmul.mubr.f32.gmra.mrb[0].mxu0 %v3834
    %v3907 = vpop.f32.mrb[0].mxu0
    %v3908 = vadd.f32 %v1910, %v3907
    %v3909 = vpop.f32.mrb[0].mxu0
    %3910 = vdwg.mxu0
    %v3911 = vadd.f32 %v3737, %v3903
    %v3912 = vadd.f32 %v3738, %v3908
    %v3913 = vsel %vm84, %v3911, 0.0
    %3914 = vadd.xlane.f32.xlu0 %v3913
    %v3915 = vpop.xlane.xlu0 %3914
    %v3916 = vsel %vm84, %v3912, 0.0
    %3917 = vadd.xlane.f32.xlu0 %v3916
    %v3918 = vpop.xlane.xlu0 %3917
    %v3919 = vmul.f32 %v3915, %v1772
    %v3920 = vmul.f32 %v3918, %v1772
    %v3921 = vsub.f32 %v3911, %v3919
    %v3922 = vsub.f32 %v3912, %v3920
    %v3923 = vmul.f32 %v3921, %v3921
    %v3924 = vmul.f32 %v3922, %v3922
    %v3925 = vsel %vm84, %v3923, 0.0
    %3926 = vadd.xlane.f32.xlu0 %v3925
    %v3927 = vpop.xlane.xlu0 %3926
    %v3928 = vsel %vm84, %v3924, 0.0
    %3929 = vadd.xlane.f32.xlu0 %v3928
    %v3930 = vpop.xlane.xlu0 %3929
    %v3931 = vmul.f32 %v3927, %v1772
    %v3932 = vmul.f32 %v3930, %v1772
    %v3933 = vadd.f32 %v3931, 1e-05
    %v3934 = vadd.f32 %v3932, 1e-05
    %v3935 = vrsqrt.pop %v3933
    %v3936 = vrsqrt.pop %v3934
    %v3937 = vmul.f32 %v3921, %v3935
    %v3938 = vmul.f32 %v3922, %v3936
    %v3939 = vmul.f32 %v3937, %v2025
    %v3940 = vmul.f32 %v3938, %v2025
    %v3941 = vadd.f32 %v3939, %v2033
    %v3942 = vadd.f32 %v3940, %v2033
    %3943 = vst.msk [vmem:[#allocation2] sm:$0xff] %vm84, %v3941
    %s3944 = scalar_lea.vmem [#allocation2], 8
    %3945 = vst.msk [vmem:[%s3944] sm:$0xff] %vm84, %v3942
    // Predicated region
    $region58: #{transformer_encoder.1} parent=1 // pred_check
      _
    $region59: #{transformer_encoder.1} parent=1 // pred_check_branch
      %3947 = sbr.rel (0) target = $region61
    $region60: #{transformer_encoder.1} parent=1 // pred_region
      %s3949 = ssub.s32 256, 256
      %3950 = vsyncadd [#allocation3], %s3949
      %s3951 = sshll.u32 [#allocation2], 4
      %s3952 = int_to_ptr.vmem [resolvable:$true] %s3951
      %3957 = dma.vmem_to_hbm [thread:$0]  %s3952, 256, %s14, [#allocation3], 128, 128, 8
    $region61: #{transformer_encoder.1} parent=1 // pred_fallthru
      _
    // Predicated region
    $region62: #{transformer_encoder.1} parent=1 // pred_check
      _
    $region63: #{transformer_encoder.1} parent=1 // pred_check_branch
      %3959 = sbr.rel (0) target = $region65
    $region64: #{transformer_encoder.1} parent=1 // pred_region
      %s3961 = ssub.s32 512, 512
      %3962 = vsyncadd [#allocation5], %s3961
      %s3963 = sshll.u32 [#allocation4], 4
      %s3964 = int_to_ptr.vmem [resolvable:$true] %s3963
      %3969 = dma.vmem_to_hbm [thread:$0]  %s3964, 512, %s15, [#allocation5], 128, 128, 8
    $region65: #{transformer_encoder.1} parent=1 // pred_fallthru
      _
    // Predicated region
    $region66: #{transformer_encoder.1} parent=1 // pred_check
      _
    $region67: #{transformer_encoder.1} parent=1 // pred_check_branch
      %3971 = sbr.rel (0) target = $region69
    $region68: #{transformer_encoder.1} parent=1 // pred_region
      %3972 = dma.done [#allocation3], 256
    $region69: #{transformer_encoder.1} parent=1 // pred_fallthru
      _
    // Predicated region
    $region70: #{transformer_encoder.1} parent=1 // pred_check
      _
    $region71: #{transformer_encoder.1} parent=1 // pred_check_branch
      %3974 = sbr.rel (0) target = $region73
    $region72: #{transformer_encoder.1} parent=1 // pred_region
      %3975 = dma.done [#allocation5], 512
    $region73: #{transformer_encoder.1} parent=1 // pred_fallthru
      _
    %3976 = vsyncpa [#allocation3], 1
    %3977 = vsyncpa [#allocation5], 1

</llo_original>
